<compile_context>
chip_gen: v7x
topology: tpu7x:2x2x1
jax: 0.10.0
libtpu: 0.0.40
codegen_flags: <defaults>
</compile_context>

<pallas_src>
import functools

import numpy as np

import jax
import jax.numpy as jnp
from jax.experimental import pallas as pl
from jax.experimental.pallas import tpu as pltpu


# ----------------------------- Pallas kernel -----------------------------

def _bottleneck_kernel(xf_ref, xs_ref, g_ref, w1_ref, b1_ref, w2_ref, b2_ref,
                       w3_ref, b3_ref, wres_ref, o_ref):
    f32 = jnp.float32
    bf16 = jnp.bfloat16

    # conv1 (1x1) + bn1 + relu                                (P, width)
    h1 = jnp.dot(xf_ref[...], w1_ref[...], preferred_element_type=f32)
    h1 = jnp.maximum(h1 + b1_ref[...], 0.0).astype(bf16)

    # conv2 (3x3, stride=s, grouped via block-diagonal masked dense weights)
    # + bn2 + relu.  In-kernel im2col: per-tap 0/1 gather matmul (shift +
    # stride + zero padding in one exact selection), then the tap matmul,
    # accumulated in f32.                                     (Po, width)
    n_taps, po, _ = g_ref.shape
    width = w1_ref.shape[1]
    acc = jnp.zeros((po, width), f32)
    for t in range(n_taps):                       # static unroll (9 taps)
        col = jnp.dot(g_ref[t], h1, preferred_element_type=f32)  # exact gather
        acc = acc + jnp.dot(col.astype(bf16), w2_ref[t],
                            preferred_element_type=f32)
    h2 = jnp.maximum(acc + b2_ref[...], 0.0).astype(bf16)

    # conv3 (1x1) + bn3, fused residual 1x1 conv, add, relu.   (Po, planes)
    h3 = jnp.dot(h2, w3_ref[...], preferred_element_type=f32) + b3_ref[...]
    res = jnp.dot(xs_ref[...], wres_ref[...], preferred_element_type=f32)
    o_ref[...] = jnp.maximum(h3 + res, 0.0).astype(o_ref.dtype)


# ----------------------------- host-side helpers -----------------------------

def _tap_gather_matrices(H, W, stride):
    """(9, Ho*Wo, H*W) 0/1 matrices: tap t selects the (dy,dx) neighbor of each
    strided output position (zero row where the 3x3 window hits the padding)."""
    Ho = (H - 1) // stride + 1
    Wo = (W - 1) // stride + 1
    yo, xo = np.meshgrid(np.arange(Ho), np.arange(Wo), indexing="ij")
    out_idx = (yo * Wo + xo).reshape(-1)
    G = np.zeros((9, Ho * Wo, H * W), np.float32)
    for t in range(9):
        dy, dx = t // 3, t % 3
        yi = yo * stride + dy - 1
        xi = xo * stride + dx - 1
        valid = ((yi >= 0) & (yi < H) & (xi >= 0) & (xi < W)).reshape(-1)
        in_idx = (np.clip(yi, 0, H - 1) * W + np.clip(xi, 0, W - 1)).reshape(-1)
        G[t, out_idx[valid], in_idx[valid]] = 1.0
    return jnp.asarray(G, jnp.bfloat16)           # 0/1 are exact in bf16


def _fold_bn(w, gamma, beta, mean, var, eps=1e-5):
    """Fold eval-mode BN into conv weight (last dim = Cout) + bias."""
    s = gamma / jnp.sqrt(var + eps)
    return w * s, beta - mean * s


def _bn_params(key, c):
    k1, k2, k3, k4 = jax.random.split(key, 4)
    gamma = 0.5 + jax.random.uniform(k1, (c,), jnp.float32)
    beta = 0.1 * jax.random.normal(k2, (c,), jnp.float32)
    mean = 0.1 * jax.random.normal(k3, (c,), jnp.float32)
    var = 0.5 + jax.random.uniform(k4, (c,), jnp.float32)
    return gamma, beta, mean, var


def make_bottleneck_params(key, inplanes, width, planes, groups):
    ks = jax.random.split(key, 7)

    def conv_w(k, shape, fan_in):
        return jax.random.normal(k, shape, jnp.float32) / jnp.sqrt(float(fan_in))

    # conv1 (1x1) + bn1
    w1 = conv_w(ks[0], (inplanes, width), inplanes)
    w1, b1 = _fold_bn(w1, *_bn_params(ks[1], width))

    # conv2 (3x3 grouped) + bn2 -- dense weight with block-diagonal mask
    cg = width // groups
    w2 = conv_w(ks[2], (3, 3, width, width), 9 * cg)
    gin = jnp.arange(width) // cg
    mask = (gin[:, None] == gin[None, :]).astype(jnp.float32)    # (Cin, Cout)
    w2 = w2 * mask[None, None, :, :]
    w2, b2 = _fold_bn(w2, *_bn_params(ks[3], width))
    w2 = w2.reshape(9, width, width)                             # tap-major dy*3+dx

    # conv3 (1x1) + bn3
    w3 = conv_w(ks[4], (width, planes), width)
    w3, b3 = _fold_bn(w3, *_bn_params(ks[5], planes))

    # res (1x1 conv, stride=s, no BN, no bias) -- matches the spec module
    wres = conv_w(ks[6], (inplanes, planes), inplanes)

    bf = jnp.bfloat16
    return dict(
        w1=w1.astype(bf), b1=b1.reshape(1, width).astype(jnp.float32),
        w2=w2.astype(bf), b2=b2.reshape(1, width).astype(jnp.float32),
        w3=w3.astype(bf), b3=b3.reshape(1, planes).astype(jnp.float32),
        res_w=wres.astype(bf),
    )


# ----------------------------- forward wrapper -----------------------------

def bottleneck_forward(x_nchw, params, stride=2):
    """x: (N, Cin, H, W) f32 -> (N, planes, Ho, Wo) f32. Single fused pallas_call."""
    N, Cin, H, W = x_nchw.shape
    Ho = (H - 1) // stride + 1
    Wo = (W - 1) // stride + 1
    P, Po = H * W, Ho * Wo
    width = params["w1"].shape[1]
    planes = params["w3"].shape[1]

    x = jnp.transpose(x_nchw, (0, 2, 3, 1))                       # NCHW -> NHWC
    xf = x.reshape(N, P, Cin).astype(jnp.bfloat16)                # conv1 input
    xs = x[:, ::stride, ::stride, :].reshape(N, Po, Cin).astype(jnp.bfloat16)
    g = _tap_gather_matrices(H, W, stride)                        # (9, Po, P)

    out = pl.pallas_call(
        _bottleneck_kernel,
        out_shape=jax.ShapeDtypeStruct((N, Po, planes), jnp.float32),
        grid_spec=pltpu.PrefetchScalarGridSpec(
            num_scalar_prefetch=0,
            grid=(N,),
            in_specs=[
                pl.BlockSpec((None, P, Cin), lambda n: (n, 0, 0)),      # xf
                pl.BlockSpec((None, Po, Cin), lambda n: (n, 0, 0)),     # xs
                pl.BlockSpec((9, Po, P), lambda n: (0, 0, 0)),          # gather
                pl.BlockSpec((Cin, width), lambda n: (0, 0)),           # w1
                pl.BlockSpec((1, width), lambda n: (0, 0)),             # b1
                pl.BlockSpec((9, width, width), lambda n: (0, 0, 0)),   # w2
                pl.BlockSpec((1, width), lambda n: (0, 0)),             # b2
                pl.BlockSpec((width, planes), lambda n: (0, 0)),        # w3
                pl.BlockSpec((1, planes), lambda n: (0, 0)),            # b3
                pl.BlockSpec((Cin, planes), lambda n: (0, 0)),          # res_w
            ],
            out_specs=pl.BlockSpec((None, Po, planes), lambda n: (n, 0, 0)),
        ),
        compiler_params=pltpu.CompilerParams(
            dimension_semantics=("parallel",)),
    )(xf, xs, g,
      params["w1"], params["b1"], params["w2"], params["b2"],
      params["w3"], params["b3"], params["res_w"])

    out = out.reshape(N, Ho, Wo, planes)
    return jnp.transpose(out, (0, 3, 1, 2))                       # NHWC -> NCHW


# ----------------------------- main -----------------------------

if __name__ == "__main__":
    N, H, W = 2, 16, 16
    inplanes, width, planes, groups, stride = 64, 64, 128, 32, 2

    key = jax.random.PRNGKey(0)
    kx, kp = jax.random.split(key)
    x = jax.random.normal(kx, (N, inplanes, H, W), jnp.float32)
    params = make_bottleneck_params(kp, inplanes, width, planes, groups)

    fwd = jax.jit(functools.partial(bottleneck_forward, params=params,
                                    stride=stride))
    out = fwd(x)
    jax.block_until_ready(out)

    Ho = (H - 1) // stride + 1
    Wo = (W - 1) // stride + 1
    assert out.shape == (N, planes, Ho, Wo), out.shape
    assert out.dtype == jnp.float32
    print("KERNEL_OK")
</pallas_src>

<mosaic_0001>
module attributes {stable_mosaic.version = 11 : i64} {
  func.func @_bottleneck_kernel(%arg0: i32, %arg1: memref<1x256x64xbf16, #tpu.memory_space<vmem>>, %arg2: memref<1x64x64xbf16, #tpu.memory_space<vmem>>, %arg3: memref<9x64x256xbf16, #tpu.memory_space<vmem>>, %arg4: memref<64x64xbf16, #tpu.memory_space<vmem>>, %arg5: memref<1x64xf32, #tpu.memory_space<vmem>>, %arg6: memref<9x64x64xbf16, #tpu.memory_space<vmem>>, %arg7: memref<1x64xf32, #tpu.memory_space<vmem>>, %arg8: memref<64x128xbf16, #tpu.memory_space<vmem>>, %arg9: memref<1x128xf32, #tpu.memory_space<vmem>>, %arg10: memref<64x128xbf16, #tpu.memory_space<vmem>>, %arg11: memref<1x64x128xf32, #tpu.memory_space<vmem>>) attributes {dimension_semantics = [#tpu.dimension_semantics<parallel>], iteration_bounds = array<i64: 2>, scalar_prefetch = 0 : i64, scratch_operands = 0 : i64, tpu.core_type = #tpu.core_type<tc>, window_params = [{transform_indices = @transform_0, window_bounds = array<i64: 1, 256, 64>}, {transform_indices = @transform_1, window_bounds = array<i64: 1, 64, 64>}, {pipeline_mode = #tpu.pipeline_mode<synchronous>, transform_indices = @transform_2, window_bounds = array<i64: 9, 64, 256>}, {pipeline_mode = #tpu.pipeline_mode<synchronous>, transform_indices = @transform_3, window_bounds = array<i64: 64, 64>}, {pipeline_mode = #tpu.pipeline_mode<synchronous>, transform_indices = @transform_4, window_bounds = array<i64: 1, 64>}, {pipeline_mode = #tpu.pipeline_mode<synchronous>, transform_indices = @transform_5, window_bounds = array<i64: 9, 64, 64>}, {pipeline_mode = #tpu.pipeline_mode<synchronous>, transform_indices = @transform_6, window_bounds = array<i64: 1, 64>}, {pipeline_mode = #tpu.pipeline_mode<synchronous>, transform_indices = @transform_7, window_bounds = array<i64: 64, 128>}, {pipeline_mode = #tpu.pipeline_mode<synchronous>, transform_indices = @transform_8, window_bounds = array<i64: 1, 128>}, {pipeline_mode = #tpu.pipeline_mode<synchronous>, transform_indices = @transform_9, window_bounds = array<i64: 64, 128>}, {transform_indices = @transform_10, window_bounds = array<i64: 1, 64, 128>}]} {
    %c0 = arith.constant 0 : index
    %c0_0 = arith.constant 0 : index
    %c0_1 = arith.constant 0 : index
    %0 = vector.load %arg1[%c0, %c0_0, %c0_1] : memref<1x256x64xbf16, #tpu.memory_space<vmem>>, vector<1x256x64xbf16>
    %1 = vector.shape_cast %0 : vector<1x256x64xbf16> to vector<256x64xbf16>
    %c0_2 = arith.constant 0 : index
    %c0_3 = arith.constant 0 : index
    %2 = vector.load %arg4[%c0_2, %c0_3] : memref<64x64xbf16, #tpu.memory_space<vmem>>, vector<64x64xbf16>
    %cst = arith.constant dense<0.000000e+00> : vector<256x64xf32>
    %3 = tpu.matmul %1, %2, %cst {dimension_numbers = #tpu.dot_dimension_numbers<[1], [0], [0], [1], [0, 0, 1, 1], [], []>} : vector<256x64xbf16>, vector<64x64xbf16>, vector<256x64xf32> -> vector<256x64xf32>
    %c0_4 = arith.constant 0 : index
    %c0_5 = arith.constant 0 : index
    %4 = vector.load %arg5[%c0_4, %c0_5] : memref<1x64xf32, #tpu.memory_space<vmem>>, vector<1x64xf32>
    %5 = vector.broadcast %4 : vector<1x64xf32> to vector<256x64xf32>
    %6 = arith.addf %3, %5 : vector<256x64xf32>
    %cst_6 = arith.constant 0.000000e+00 : f32
    %7 = vector.broadcast %cst_6 : f32 to vector<256x64xf32>
    %8 = arith.maximumf %6, %7 : vector<256x64xf32>
    %9 = arith.truncf %8 : vector<256x64xf32> to vector<256x64xbf16>
    %cst_7 = arith.constant 0.000000e+00 : f32
    %10 = vector.broadcast %cst_7 : f32 to vector<64x64xf32>
    %c0_8 = arith.constant 0 : index
    %c0_9 = arith.constant 0 : index
    %c0_10 = arith.constant 0 : index
    %11 = vector.load %arg3[%c0_8, %c0_9, %c0_10] : memref<9x64x256xbf16, #tpu.memory_space<vmem>>, vector<1x64x256xbf16>
    %12 = vector.shape_cast %11 : vector<1x64x256xbf16> to vector<64x256xbf16>
    %cst_11 = arith.constant dense<0.000000e+00> : vector<64x64xf32>
    %13 = tpu.matmul %12, %9, %cst_11 {dimension_numbers = #tpu.dot_dimension_numbers<[1], [0], [0], [1], [0, 0, 1, 1], [], []>} : vector<64x256xbf16>, vector<256x64xbf16>, vector<64x64xf32> -> vector<64x64xf32>
    %14 = arith.truncf %13 : vector<64x64xf32> to vector<64x64xbf16>
    %c0_12 = arith.constant 0 : index
    %c0_13 = arith.constant 0 : index
    %c0_14 = arith.constant 0 : index
    %15 = vector.load %arg6[%c0_12, %c0_13, %c0_14] : memref<9x64x64xbf16, #tpu.memory_space<vmem>>, vector<1x64x64xbf16>
    %16 = vector.shape_cast %15 : vector<1x64x64xbf16> to vector<64x64xbf16>
    %cst_15 = arith.constant dense<0.000000e+00> : vector<64x64xf32>
    %17 = tpu.matmul %14, %16, %cst_15 {dimension_numbers = #tpu.dot_dimension_numbers<[1], [0], [0], [1], [0, 0, 1, 1], [], []>} : vector<64x64xbf16>, vector<64x64xbf16>, vector<64x64xf32> -> vector<64x64xf32>
    %18 = arith.addf %10, %17 : vector<64x64xf32>
    %c1 = arith.constant 1 : index
    %c0_16 = arith.constant 0 : index
    %c0_17 = arith.constant 0 : index
    %19 = vector.load %arg3[%c1, %c0_16, %c0_17] : memref<9x64x256xbf16, #tpu.memory_space<vmem>>, vector<1x64x256xbf16>
    %20 = vector.shape_cast %19 : vector<1x64x256xbf16> to vector<64x256xbf16>
    %cst_18 = arith.constant dense<0.000000e+00> : vector<64x64xf32>
    %21 = tpu.matmul %20, %9, %cst_18 {dimension_numbers = #tpu.dot_dimension_numbers<[1], [0], [0], [1], [0, 0, 1, 1], [], []>} : vector<64x256xbf16>, vector<256x64xbf16>, vector<64x64xf32> -> vector<64x64xf32>
    %22 = arith.truncf %21 : vector<64x64xf32> to vector<64x64xbf16>
    %c1_19 = arith.constant 1 : index
    %c0_20 = arith.constant 0 : index
    %c0_21 = arith.constant 0 : index
    %23 = vector.load %arg6[%c1_19, %c0_20, %c0_21] : memref<9x64x64xbf16, #tpu.memory_space<vmem>>, vector<1x64x64xbf16>
    %24 = vector.shape_cast %23 : vector<1x64x64xbf16> to vector<64x64xbf16>
    %cst_22 = arith.constant dense<0.000000e+00> : vector<64x64xf32>
    %25 = tpu.matmul %22, %24, %cst_22 {dimension_numbers = #tpu.dot_dimension_numbers<[1], [0], [0], [1], [0, 0, 1, 1], [], []>} : vector<64x64xbf16>, vector<64x64xbf16>, vector<64x64xf32> -> vector<64x64xf32>
    %26 = arith.addf %18, %25 : vector<64x64xf32>
    %c2 = arith.constant 2 : index
    %c0_23 = arith.constant 0 : index
    %c0_24 = arith.constant 0 : index
    %27 = vector.load %arg3[%c2, %c0_23, %c0_24] : memref<9x64x256xbf16, #tpu.memory_space<vmem>>, vector<1x64x256xbf16>
    %28 = vector.shape_cast %27 : vector<1x64x256xbf16> to vector<64x256xbf16>
    %cst_25 = arith.constant dense<0.000000e+00> : vector<64x64xf32>
    %29 = tpu.matmul %28, %9, %cst_25 {dimension_numbers = #tpu.dot_dimension_numbers<[1], [0], [0], [1], [0, 0, 1, 1], [], []>} : vector<64x256xbf16>, vector<256x64xbf16>, vector<64x64xf32> -> vector<64x64xf32>
    %30 = arith.truncf %29 : vector<64x64xf32> to vector<64x64xbf16>
    %c2_26 = arith.constant 2 : index
    %c0_27 = arith.constant 0 : index
    %c0_28 = arith.constant 0 : index
    %31 = vector.load %arg6[%c2_26, %c0_27, %c0_28] : memref<9x64x64xbf16, #tpu.memory_space<vmem>>, vector<1x64x64xbf16>
    %32 = vector.shape_cast %31 : vector<1x64x64xbf16> to vector<64x64xbf16>
    %cst_29 = arith.constant dense<0.000000e+00> : vector<64x64xf32>
    %33 = tpu.matmul %30, %32, %cst_29 {dimension_numbers = #tpu.dot_dimension_numbers<[1], [0], [0], [1], [0, 0, 1, 1], [], []>} : vector<64x64xbf16>, vector<64x64xbf16>, vector<64x64xf32> -> vector<64x64xf32>
    %34 = arith.addf %26, %33 : vector<64x64xf32>
    %c3 = arith.constant 3 : index
    %c0_30 = arith.constant 0 : index
    %c0_31 = arith.constant 0 : index
    %35 = vector.load %arg3[%c3, %c0_30, %c0_31] : memref<9x64x256xbf16, #tpu.memory_space<vmem>>, vector<1x64x256xbf16>
    %36 = vector.shape_cast %35 : vector<1x64x256xbf16> to vector<64x256xbf16>
    %cst_32 = arith.constant dense<0.000000e+00> : vector<64x64xf32>
    %37 = tpu.matmul %36, %9, %cst_32 {dimension_numbers = #tpu.dot_dimension_numbers<[1], [0], [0], [1], [0, 0, 1, 1], [], []>} : vector<64x256xbf16>, vector<256x64xbf16>, vector<64x64xf32> -> vector<64x64xf32>
    %38 = arith.truncf %37 : vector<64x64xf32> to vector<64x64xbf16>
    %c3_33 = arith.constant 3 : index
    %c0_34 = arith.constant 0 : index
    %c0_35 = arith.constant 0 : index
    %39 = vector.load %arg6[%c3_33, %c0_34, %c0_35] : memref<9x64x64xbf16, #tpu.memory_space<vmem>>, vector<1x64x64xbf16>
    %40 = vector.shape_cast %39 : vector<1x64x64xbf16> to vector<64x64xbf16>
    %cst_36 = arith.constant dense<0.000000e+00> : vector<64x64xf32>
    %41 = tpu.matmul %38, %40, %cst_36 {dimension_numbers = #tpu.dot_dimension_numbers<[1], [0], [0], [1], [0, 0, 1, 1], [], []>} : vector<64x64xbf16>, vector<64x64xbf16>, vector<64x64xf32> -> vector<64x64xf32>
    %42 = arith.addf %34, %41 : vector<64x64xf32>
    %c4 = arith.constant 4 : index
    %c0_37 = arith.constant 0 : index
    %c0_38 = arith.constant 0 : index
    %43 = vector.load %arg3[%c4, %c0_37, %c0_38] : memref<9x64x256xbf16, #tpu.memory_space<vmem>>, vector<1x64x256xbf16>
    %44 = vector.shape_cast %43 : vector<1x64x256xbf16> to vector<64x256xbf16>
    %cst_39 = arith.constant dense<0.000000e+00> : vector<64x64xf32>
    %45 = tpu.matmul %44, %9, %cst_39 {dimension_numbers = #tpu.dot_dimension_numbers<[1], [0], [0], [1], [0, 0, 1, 1], [], []>} : vector<64x256xbf16>, vector<256x64xbf16>, vector<64x64xf32> -> vector<64x64xf32>
    %46 = arith.truncf %45 : vector<64x64xf32> to vector<64x64xbf16>
    %c4_40 = arith.constant 4 : index
    %c0_41 = arith.constant 0 : index
    %c0_42 = arith.constant 0 : index
    %47 = vector.load %arg6[%c4_40, %c0_41, %c0_42] : memref<9x64x64xbf16, #tpu.memory_space<vmem>>, vector<1x64x64xbf16>
    %48 = vector.shape_cast %47 : vector<1x64x64xbf16> to vector<64x64xbf16>
    %cst_43 = arith.constant dense<0.000000e+00> : vector<64x64xf32>
    %49 = tpu.matmul %46, %48, %cst_43 {dimension_numbers = #tpu.dot_dimension_numbers<[1], [0], [0], [1], [0, 0, 1, 1], [], []>} : vector<64x64xbf16>, vector<64x64xbf16>, vector<64x64xf32> -> vector<64x64xf32>
    %50 = arith.addf %42, %49 : vector<64x64xf32>
    %c5 = arith.constant 5 : index
    %c0_44 = arith.constant 0 : index
    %c0_45 = arith.constant 0 : index
    %51 = vector.load %arg3[%c5, %c0_44, %c0_45] : memref<9x64x256xbf16, #tpu.memory_space<vmem>>, vector<1x64x256xbf16>
    %52 = vector.shape_cast %51 : vector<1x64x256xbf16> to vector<64x256xbf16>
    %cst_46 = arith.constant dense<0.000000e+00> : vector<64x64xf32>
    %53 = tpu.matmul %52, %9, %cst_46 {dimension_numbers = #tpu.dot_dimension_numbers<[1], [0], [0], [1], [0, 0, 1, 1], [], []>} : vector<64x256xbf16>, vector<256x64xbf16>, vector<64x64xf32> -> vector<64x64xf32>
    %54 = arith.truncf %53 : vector<64x64xf32> to vector<64x64xbf16>
    %c5_47 = arith.constant 5 : index
    %c0_48 = arith.constant 0 : index
    %c0_49 = arith.constant 0 : index
    %55 = vector.load %arg6[%c5_47, %c0_48, %c0_49] : memref<9x64x64xbf16, #tpu.memory_space<vmem>>, vector<1x64x64xbf16>
    %56 = vector.shape_cast %55 : vector<1x64x64xbf16> to vector<64x64xbf16>
    %cst_50 = arith.constant dense<0.000000e+00> : vector<64x64xf32>
    %57 = tpu.matmul %54, %56, %cst_50 {dimension_numbers = #tpu.dot_dimension_numbers<[1], [0], [0], [1], [0, 0, 1, 1], [], []>} : vector<64x64xbf16>, vector<64x64xbf16>, vector<64x64xf32> -> vector<64x64xf32>
    %58 = arith.addf %50, %57 : vector<64x64xf32>
    %c6 = arith.constant 6 : index
    %c0_51 = arith.constant 0 : index
    %c0_52 = arith.constant 0 : index
    %59 = vector.load %arg3[%c6, %c0_51, %c0_52] : memref<9x64x256xbf16, #tpu.memory_space<vmem>>, vector<1x64x256xbf16>
    %60 = vector.shape_cast %59 : vector<1x64x256xbf16> to vector<64x256xbf16>
    %cst_53 = arith.constant dense<0.000000e+00> : vector<64x64xf32>
    %61 = tpu.matmul %60, %9, %cst_53 {dimension_numbers = #tpu.dot_dimension_numbers<[1], [0], [0], [1], [0, 0, 1, 1], [], []>} : vector<64x256xbf16>, vector<256x64xbf16>, vector<64x64xf32> -> vector<64x64xf32>
    %62 = arith.truncf %61 : vector<64x64xf32> to vector<64x64xbf16>
    %c6_54 = arith.constant 6 : index
    %c0_55 = arith.constant 0 : index
    %c0_56 = arith.constant 0 : index
    %63 = vector.load %arg6[%c6_54, %c0_55, %c0_56] : memref<9x64x64xbf16, #tpu.memory_space<vmem>>, vector<1x64x64xbf16>
    %64 = vector.shape_cast %63 : vector<1x64x64xbf16> to vector<64x64xbf16>
    %cst_57 = arith.constant dense<0.000000e+00> : vector<64x64xf32>
    %65 = tpu.matmul %62, %64, %cst_57 {dimension_numbers = #tpu.dot_dimension_numbers<[1], [0], [0], [1], [0, 0, 1, 1], [], []>} : vector<64x64xbf16>, vector<64x64xbf16>, vector<64x64xf32> -> vector<64x64xf32>
    %66 = arith.addf %58, %65 : vector<64x64xf32>
    %c7 = arith.constant 7 : index
    %c0_58 = arith.constant 0 : index
    %c0_59 = arith.constant 0 : index
    %67 = vector.load %arg3[%c7, %c0_58, %c0_59] : memref<9x64x256xbf16, #tpu.memory_space<vmem>>, vector<1x64x256xbf16>
    %68 = vector.shape_cast %67 : vector<1x64x256xbf16> to vector<64x256xbf16>
    %cst_60 = arith.constant dense<0.000000e+00> : vector<64x64xf32>
    %69 = tpu.matmul %68, %9, %cst_60 {dimension_numbers = #tpu.dot_dimension_numbers<[1], [0], [0], [1], [0, 0, 1, 1], [], []>} : vector<64x256xbf16>, vector<256x64xbf16>, vector<64x64xf32> -> vector<64x64xf32>
    %70 = arith.truncf %69 : vector<64x64xf32> to vector<64x64xbf16>
    %c7_61 = arith.constant 7 : index
    %c0_62 = arith.constant 0 : index
    %c0_63 = arith.constant 0 : index
    %71 = vector.load %arg6[%c7_61, %c0_62, %c0_63] : memref<9x64x64xbf16, #tpu.memory_space<vmem>>, vector<1x64x64xbf16>
    %72 = vector.shape_cast %71 : vector<1x64x64xbf16> to vector<64x64xbf16>
    %cst_64 = arith.constant dense<0.000000e+00> : vector<64x64xf32>
    %73 = tpu.matmul %70, %72, %cst_64 {dimension_numbers = #tpu.dot_dimension_numbers<[1], [0], [0], [1], [0, 0, 1, 1], [], []>} : vector<64x64xbf16>, vector<64x64xbf16>, vector<64x64xf32> -> vector<64x64xf32>
    %74 = arith.addf %66, %73 : vector<64x64xf32>
    %c8 = arith.constant 8 : index
    %c0_65 = arith.constant 0 : index
    %c0_66 = arith.constant 0 : index
    %75 = vector.load %arg3[%c8, %c0_65, %c0_66] : memref<9x64x256xbf16, #tpu.memory_space<vmem>>, vector<1x64x256xbf16>
    %76 = vector.shape_cast %75 : vector<1x64x256xbf16> to vector<64x256xbf16>
    %cst_67 = arith.constant dense<0.000000e+00> : vector<64x64xf32>
    %77 = tpu.matmul %76, %9, %cst_67 {dimension_numbers = #tpu.dot_dimension_numbers<[1], [0], [0], [1], [0, 0, 1, 1], [], []>} : vector<64x256xbf16>, vector<256x64xbf16>, vector<64x64xf32> -> vector<64x64xf32>
    %78 = arith.truncf %77 : vector<64x64xf32> to vector<64x64xbf16>
    %c8_68 = arith.constant 8 : index
    %c0_69 = arith.constant 0 : index
    %c0_70 = arith.constant 0 : index
    %79 = vector.load %arg6[%c8_68, %c0_69, %c0_70] : memref<9x64x64xbf16, #tpu.memory_space<vmem>>, vector<1x64x64xbf16>
    %80 = vector.shape_cast %79 : vector<1x64x64xbf16> to vector<64x64xbf16>
    %cst_71 = arith.constant dense<0.000000e+00> : vector<64x64xf32>
    %81 = tpu.matmul %78, %80, %cst_71 {dimension_numbers = #tpu.dot_dimension_numbers<[1], [0], [0], [1], [0, 0, 1, 1], [], []>} : vector<64x64xbf16>, vector<64x64xbf16>, vector<64x64xf32> -> vector<64x64xf32>
    %82 = arith.addf %74, %81 : vector<64x64xf32>
    %c0_72 = arith.constant 0 : index
    %c0_73 = arith.constant 0 : index
    %83 = vector.load %arg7[%c0_72, %c0_73] : memref<1x64xf32, #tpu.memory_space<vmem>>, vector<1x64xf32>
    %84 = vector.broadcast %83 : vector<1x64xf32> to vector<64x64xf32>
    %85 = arith.addf %82, %84 : vector<64x64xf32>
    %cst_74 = arith.constant 0.000000e+00 : f32
    %86 = vector.broadcast %cst_74 : f32 to vector<64x64xf32>
    %87 = arith.maximumf %85, %86 : vector<64x64xf32>
    %88 = arith.truncf %87 : vector<64x64xf32> to vector<64x64xbf16>
    %c0_75 = arith.constant 0 : index
    %c0_76 = arith.constant 0 : index
    %89 = vector.load %arg8[%c0_75, %c0_76] : memref<64x128xbf16, #tpu.memory_space<vmem>>, vector<64x128xbf16>
    %cst_77 = arith.constant dense<0.000000e+00> : vector<64x128xf32>
    %90 = tpu.matmul %88, %89, %cst_77 {dimension_numbers = #tpu.dot_dimension_numbers<[1], [0], [0], [1], [0, 0, 1, 1], [], []>} : vector<64x64xbf16>, vector<64x128xbf16>, vector<64x128xf32> -> vector<64x128xf32>
    %c0_78 = arith.constant 0 : index
    %c0_79 = arith.constant 0 : index
    %91 = vector.load %arg9[%c0_78, %c0_79] : memref<1x128xf32, #tpu.memory_space<vmem>>, vector<1x128xf32>
    %92 = vector.broadcast %91 : vector<1x128xf32> to vector<64x128xf32>
    %93 = arith.addf %90, %92 : vector<64x128xf32>
    %c0_80 = arith.constant 0 : index
    %c0_81 = arith.constant 0 : index
    %c0_82 = arith.constant 0 : index
    %94 = vector.load %arg2[%c0_80, %c0_81, %c0_82] : memref<1x64x64xbf16, #tpu.memory_space<vmem>>, vector<1x64x64xbf16>
    %95 = vector.shape_cast %94 : vector<1x64x64xbf16> to vector<64x64xbf16>
    %c0_83 = arith.constant 0 : index
    %c0_84 = arith.constant 0 : index
    %96 = vector.load %arg10[%c0_83, %c0_84] : memref<64x128xbf16, #tpu.memory_space<vmem>>, vector<64x128xbf16>
    %cst_85 = arith.constant dense<0.000000e+00> : vector<64x128xf32>
    %97 = tpu.matmul %95, %96, %cst_85 {dimension_numbers = #tpu.dot_dimension_numbers<[1], [0], [0], [1], [0, 0, 1, 1], [], []>} : vector<64x64xbf16>, vector<64x128xbf16>, vector<64x128xf32> -> vector<64x128xf32>
    %98 = arith.addf %93, %97 : vector<64x128xf32>
    %cst_86 = arith.constant 0.000000e+00 : f32
    %99 = vector.broadcast %cst_86 : f32 to vector<64x128xf32>
    %100 = arith.maximumf %98, %99 : vector<64x128xf32>
    %c0_87 = arith.constant 0 : index
    %c0_88 = arith.constant 0 : index
    %c0_89 = arith.constant 0 : index
    %101 = vector.load %arg11[%c0_87, %c0_88, %c0_89] : memref<1x64x128xf32, #tpu.memory_space<vmem>>, vector<1x64x128xf32>
    %102 = vector.shape_cast %101 : vector<1x64x128xf32> to vector<64x128xf32>
    %103 = vector.shape_cast %100 : vector<64x128xf32> to vector<1x64x128xf32>
    tpu.vector_store %arg11[%c0_87, %c0_88, %c0_89], %103 {strides = array<i32>} : memref<1x64x128xf32, #tpu.memory_space<vmem>>, vector<1x64x128xf32>,
    return
  }
  func.func @transform_0(%arg0: i32) -> (i32, i32, i32) {
    %c0_i32 = arith.constant 0 : i32
    %c0_i32_0 = arith.constant 0 : i32
    %c0_i32_1 = arith.constant 0 : i32
    return %arg0, %c0_i32, %c0_i32_0 : i32, i32, i32
  }
  func.func @transform_1(%arg0: i32) -> (i32, i32, i32) {
    %c0_i32 = arith.constant 0 : i32
    %c0_i32_0 = arith.constant 0 : i32
    %c0_i32_1 = arith.constant 0 : i32
    return %arg0, %c0_i32, %c0_i32_0 : i32, i32, i32
  }
  func.func @transform_2(%arg0: i32) -> (i32, i32, i32) {
    %c0_i32 = arith.constant 0 : i32
    %c0_i32_0 = arith.constant 0 : i32
    %c0_i32_1 = arith.constant 0 : i32
    %c0_i32_2 = arith.constant 0 : i32
    return %c0_i32, %c0_i32_0, %c0_i32_1 : i32, i32, i32
  }
  func.func @transform_3(%arg0: i32) -> (i32, i32) {
    %c0_i32 = arith.constant 0 : i32
    %c0_i32_0 = arith.constant 0 : i32
    %c0_i32_1 = arith.constant 0 : i32
    return %c0_i32, %c0_i32_0 : i32, i32
  }
  func.func @transform_4(%arg0: i32) -> (i32, i32) {
    %c0_i32 = arith.constant 0 : i32
    %c0_i32_0 = arith.constant 0 : i32
    %c0_i32_1 = arith.constant 0 : i32
    return %c0_i32, %c0_i32_0 : i32, i32
  }
  func.func @transform_5(%arg0: i32) -> (i32, i32, i32) {
    %c0_i32 = arith.constant 0 : i32
    %c0_i32_0 = arith.constant 0 : i32
    %c0_i32_1 = arith.constant 0 : i32
    %c0_i32_2 = arith.constant 0 : i32
    return %c0_i32, %c0_i32_0, %c0_i32_1 : i32, i32, i32
  }
  func.func @transform_6(%arg0: i32) -> (i32, i32) {
    %c0_i32 = arith.constant 0 : i32
    %c0_i32_0 = arith.constant 0 : i32
    %c0_i32_1 = arith.constant 0 : i32
    return %c0_i32, %c0_i32_0 : i32, i32
  }
  func.func @transform_7(%arg0: i32) -> (i32, i32) {
    %c0_i32 = arith.constant 0 : i32
    %c0_i32_0 = arith.constant 0 : i32
    %c0_i32_1 = arith.constant 0 : i32
    return %c0_i32, %c0_i32_0 : i32, i32
  }
  func.func @transform_8(%arg0: i32) -> (i32, i32) {
    %c0_i32 = arith.constant 0 : i32
    %c0_i32_0 = arith.constant 0 : i32
    %c0_i32_1 = arith.constant 0 : i32
    return %c0_i32, %c0_i32_0 : i32, i32
  }
  func.func @transform_9(%arg0: i32) -> (i32, i32) {
    %c0_i32 = arith.constant 0 : i32
    %c0_i32_0 = arith.constant 0 : i32
    %c0_i32_1 = arith.constant 0 : i32
    return %c0_i32, %c0_i32_0 : i32, i32
  }
  func.func @transform_10(%arg0: i32) -> (i32, i32, i32) {
    %c0_i32 = arith.constant 0 : i32
    %c0_i32_0 = arith.constant 0 : i32
    %c0_i32_1 = arith.constant 0 : i32
    return %arg0, %c0_i32, %c0_i32_0 : i32, i32, i32
  }
}

</mosaic_0001>

<llo_original>
// kernel: bottleneck_forward.1
$region0: #{bottleneck_forward.1}
  #allocation0 [shape = 'u32[]', space=smem, size = 0x4, offset = 0x4, fixed_abs, tag = 'smem constant byte address 0x4 - core index']
  #allocation1 [shape = 'u32[144,128]{1,0:T(1,128)}', space=vmem, size = 0x12000, scoped, tag = 'internal scratch']
  %s0 = inlined_call_operand.vmem [shape: bf16[2,256,64], index: 0, kind: input, shape index: {}]
  %s1 = inlined_call_operand.vmem [shape: bf16[2,64,64], index: 1, kind: input, shape index: {}]
  %s2 = inlined_call_operand.vmem [shape: bf16[9,64,256], index: 2, kind: input, shape index: {}]
  %s3 = inlined_call_operand.vmem [shape: bf16[64,64], index: 3, kind: input, shape index: {}]
  %s4 = inlined_call_operand.vmem [shape: f32[1,64], index: 4, kind: input, shape index: {}]
  %s5 = inlined_call_operand.vmem [shape: bf16[9,64,64], index: 5, kind: input, shape index: {}]
  %s6 = inlined_call_operand.vmem [shape: f32[1,64], index: 6, kind: input, shape index: {}]
  %s7 = inlined_call_operand.vmem [shape: bf16[64,128], index: 7, kind: input, shape index: {}]
  %s8 = inlined_call_operand.vmem [shape: f32[1,128], index: 8, kind: input, shape index: {}]
  %s9 = inlined_call_operand.vmem [shape: bf16[64,128], index: 9, kind: input, shape index: {}]
  %s10 = inlined_call_operand.hbm [shape: f32[2,64,128], index: 10, kind: output, shape index: {}]
  %s11 = sld [smem:[#allocation0]]
  $region73: #{bottleneck_forward.1} parent=0
    _
  %s13 = ssub.s32 1, %s11
  %s14 = scalar_select 0, %s13, %s11
  $region1: #{bottleneck_forward.1} parent=0
    #allocation2 [shape = 'u8[65536]{0}', space=vmem, size = 0x10000, scoped, tag = 'output window, operand 0']
    #allocation3 [shape = 's32[2]{0}', space=sflag, size = 0x8, scoped, tag = 'scoped memory for bottleneck_forward.1']
    %15 = vsyncpa [#allocation3], 0
    %s16 = scalar_lea.sflag [#allocation3], 1
    %17 = vsyncpa %s16, 0
    loop: start=0, step=1, limit=4
    $region2: #{bottleneck_forward.1} parent=1 // loop_pre_header
      _
    $region3: #{bottleneck_forward.1} parent=1 // loop_header
      %s19 = sphi 0, %s23
      %p20 = scmp.ge.s32.totalorder %s19, 4
      %s29 = sphi 0, %s31
      %s32 = sphi 0, %s29
      %s33 = sphi 0, %s32
      %s49 = sphi 0, %s33
      %s55 = sphi 0, %s57
      %s58 = sphi 0, %s55
      %s59 = sphi 0, %s58
      %s75 = sphi 0, %s59
      %s79 = sphi 0, %s79
      %s81 = sphi 0, %s79
      %s82 = sphi 0, %s81
      %s96 = sphi 0, %s82
      %s100 = sphi 0, %s100
      %s102 = sphi 0, %s100
      %s103 = sphi 0, %s102
      %s117 = sphi 0, %s103
      %s121 = sphi 0, %s121
      %s123 = sphi 0, %s121
      %s124 = sphi 0, %s123
      %s138 = sphi 0, %s124
      %s142 = sphi 0, %s142
      %s144 = sphi 0, %s142
      %s145 = sphi 0, %s144
      %s159 = sphi 0, %s145
      %s163 = sphi 0, %s163
      %s165 = sphi 0, %s163
      %s166 = sphi 0, %s165
      %s180 = sphi 0, %s166
      %s184 = sphi 0, %s184
      %s186 = sphi 0, %s184
      %s187 = sphi 0, %s186
      %s201 = sphi 0, %s187
      %s205 = sphi 0, %s205
      %s207 = sphi 0, %s205
      %s208 = sphi 0, %s207
      %s222 = sphi 0, %s208
      %s226 = sphi 0, %s226
      %s228 = sphi 0, %s226
      %s229 = sphi 0, %s228
      %s243 = sphi 0, %s229
      %s249 = sphi 0, %s251
      %s252 = sphi 0, %s249
      %s253 = sphi 0, %s252
      %s269 = sphi 0, %s253
    $region4: #{bottleneck_forward.1} parent=1 // loop_header_branch
      %22 = sbr.rel (%p20) target = $region8
    $region5: #{bottleneck_forward.1} parent=1 // loop_body
      %s24 = ssub.s32 %s19, 1
      %s25 = ssub.s32 %s19, 2
      %s26 = sadd.s32 %s19, 1
      %s27 = ssub.s32 %s19, %s26
      %p28 = scmp.eq.s32.totalorder %s27, 0
      %s30 = sadd.s32 %s29, 1
      %s31 = scalar_select %p28, %s29, %s30
      %p34 = pneg %p28
      %p35 = scmp.eq.s32.totalorder %s19, 1
      %p36 = por %p34, %p35
      %p37 = scmp.ne.s32.totalorder %s29, %s32
      %p38 = scmp.eq.s32.totalorder %s19, 0
      %p39 = por %p37, %p38
      %p40 = scmp.ne.s32.totalorder %s29, %s32
      %p41 = scmp.eq.s32.totalorder %s24, 1
      %p42 = por %p40, %p41
      %p43 = scmp.ne.s32.totalorder %s32, %s33
      %p44 = scmp.eq.s32.totalorder %s24, 0
      %p45 = por %p43, %p44
      %p46 = scmp.ne.s32.totalorder %s32, %s33
      %p47 = scmp.eq.s32.totalorder %s25, 1
      %p48 = por %p46, %p47
      %p50 = scmp.ne.s32.totalorder %s33, %s49
      %p51 = scmp.eq.s32.totalorder %s25, 0
      %p52 = por %p50, %p51
      %s53 = ssub.s32 %s19, %s26
      %p54 = scmp.eq.s32.totalorder %s53, 0
      %s56 = sadd.s32 %s55, 1
      %s57 = scalar_select %p54, %s55, %s56
      %p60 = pneg %p54
      %p61 = scmp.eq.s32.totalorder %s19, 1
      %p62 = por %p60, %p61
      %p63 = scmp.ne.s32.totalorder %s55, %s58
      %p64 = scmp.eq.s32.totalorder %s19, 0
      %p65 = por %p63, %p64
      %p66 = scmp.ne.s32.totalorder %s55, %s58
      %p67 = scmp.eq.s32.totalorder %s24, 1
      %p68 = por %p66, %p67
      %p69 = scmp.ne.s32.totalorder %s58, %s59
      %p70 = scmp.eq.s32.totalorder %s24, 0
      %p71 = por %p69, %p70
      %p72 = scmp.ne.s32.totalorder %s58, %s59
      %p73 = scmp.eq.s32.totalorder %s25, 1
      %p74 = por %p72, %p73
      %p76 = scmp.ne.s32.totalorder %s59, %s75
      %p77 = scmp.eq.s32.totalorder %s25, 0
      %p78 = por %p76, %p77
      %s80 = sadd.s32 %s79, 1
      %p83 = scmp.eq.s32.totalorder %s19, 1
      %p84 = scmp.ne.s32.totalorder %s79, %s81
      %p85 = scmp.eq.s32.totalorder %s19, 0
      %p86 = por %p84, %p85
      %p87 = scmp.ne.s32.totalorder %s79, %s81
      %p88 = scmp.eq.s32.totalorder %s24, 1
      %p89 = por %p87, %p88
      %p90 = scmp.ne.s32.totalorder %s81, %s82
      %p91 = scmp.eq.s32.totalorder %s24, 0
      %p92 = por %p90, %p91
      %p93 = scmp.ne.s32.totalorder %s81, %s82
      %p94 = scmp.eq.s32.totalorder %s25, 1
      %p95 = por %p93, %p94
      %p97 = scmp.ne.s32.totalorder %s82, %s96
      %p98 = scmp.eq.s32.totalorder %s25, 0
      %p99 = por %p97, %p98
      %s101 = sadd.s32 %s100, 1
      %p104 = scmp.eq.s32.totalorder %s19, 1
      %p105 = scmp.ne.s32.totalorder %s100, %s102
      %p106 = scmp.eq.s32.totalorder %s19, 0
      %p107 = por %p105, %p106
      %p108 = scmp.ne.s32.totalorder %s100, %s102
      %p109 = scmp.eq.s32.totalorder %s24, 1
      %p110 = por %p108, %p109
      %p111 = scmp.ne.s32.totalorder %s102, %s103
      %p112 = scmp.eq.s32.totalorder %s24, 0
      %p113 = por %p111, %p112
      %p114 = scmp.ne.s32.totalorder %s102, %s103
      %p115 = scmp.eq.s32.totalorder %s25, 1
      %p116 = por %p114, %p115
      %p118 = scmp.ne.s32.totalorder %s103, %s117
      %p119 = scmp.eq.s32.totalorder %s25, 0
      %p120 = por %p118, %p119
      %s122 = sadd.s32 %s121, 1
      %p125 = scmp.eq.s32.totalorder %s19, 1
      %p126 = scmp.ne.s32.totalorder %s121, %s123
      %p127 = scmp.eq.s32.totalorder %s19, 0
      %p128 = por %p126, %p127
      %p129 = scmp.ne.s32.totalorder %s121, %s123
      %p130 = scmp.eq.s32.totalorder %s24, 1
      %p131 = por %p129, %p130
      %p132 = scmp.ne.s32.totalorder %s123, %s124
      %p133 = scmp.eq.s32.totalorder %s24, 0
      %p134 = por %p132, %p133
      %p135 = scmp.ne.s32.totalorder %s123, %s124
      %p136 = scmp.eq.s32.totalorder %s25, 1
      %p137 = por %p135, %p136
      %p139 = scmp.ne.s32.totalorder %s124, %s138
      %p140 = scmp.eq.s32.totalorder %s25, 0
      %p141 = por %p139, %p140
      %s143 = sadd.s32 %s142, 1
      %p146 = scmp.eq.s32.totalorder %s19, 1
      %p147 = scmp.ne.s32.totalorder %s142, %s144
      %p148 = scmp.eq.s32.totalorder %s19, 0
      %p149 = por %p147, %p148
      %p150 = scmp.ne.s32.totalorder %s142, %s144
      %p151 = scmp.eq.s32.totalorder %s24, 1
      %p152 = por %p150, %p151
      %p153 = scmp.ne.s32.totalorder %s144, %s145
      %p154 = scmp.eq.s32.totalorder %s24, 0
      %p155 = por %p153, %p154
      %p156 = scmp.ne.s32.totalorder %s144, %s145
      %p157 = scmp.eq.s32.totalorder %s25, 1
      %p158 = por %p156, %p157
      %p160 = scmp.ne.s32.totalorder %s145, %s159
      %p161 = scmp.eq.s32.totalorder %s25, 0
      %p162 = por %p160, %p161
      %s164 = sadd.s32 %s163, 1
      %p167 = scmp.eq.s32.totalorder %s19, 1
      %p168 = scmp.ne.s32.totalorder %s163, %s165
      %p169 = scmp.eq.s32.totalorder %s19, 0
      %p170 = por %p168, %p169
      %p171 = scmp.ne.s32.totalorder %s163, %s165
      %p172 = scmp.eq.s32.totalorder %s24, 1
      %p173 = por %p171, %p172
      %p174 = scmp.ne.s32.totalorder %s165, %s166
      %p175 = scmp.eq.s32.totalorder %s24, 0
      %p176 = por %p174, %p175
      %p177 = scmp.ne.s32.totalorder %s165, %s166
      %p178 = scmp.eq.s32.totalorder %s25, 1
      %p179 = por %p177, %p178
      %p181 = scmp.ne.s32.totalorder %s166, %s180
      %p182 = scmp.eq.s32.totalorder %s25, 0
      %p183 = por %p181, %p182
      %s185 = sadd.s32 %s184, 1
      %p188 = scmp.eq.s32.totalorder %s19, 1
      %p189 = scmp.ne.s32.totalorder %s184, %s186
      %p190 = scmp.eq.s32.totalorder %s19, 0
      %p191 = por %p189, %p190
      %p192 = scmp.ne.s32.totalorder %s184, %s186
      %p193 = scmp.eq.s32.totalorder %s24, 1
      %p194 = por %p192, %p193
      %p195 = scmp.ne.s32.totalorder %s186, %s187
      %p196 = scmp.eq.s32.totalorder %s24, 0
      %p197 = por %p195, %p196
      %p198 = scmp.ne.s32.totalorder %s186, %s187
      %p199 = scmp.eq.s32.totalorder %s25, 1
      %p200 = por %p198, %p199
      %p202 = scmp.ne.s32.totalorder %s187, %s201
      %p203 = scmp.eq.s32.totalorder %s25, 0
      %p204 = por %p202, %p203
      %s206 = sadd.s32 %s205, 1
      %p209 = scmp.eq.s32.totalorder %s19, 1
      %p210 = scmp.ne.s32.totalorder %s205, %s207
      %p211 = scmp.eq.s32.totalorder %s19, 0
      %p212 = por %p210, %p211
      %p213 = scmp.ne.s32.totalorder %s205, %s207
      %p214 = scmp.eq.s32.totalorder %s24, 1
      %p215 = por %p213, %p214
      %p216 = scmp.ne.s32.totalorder %s207, %s208
      %p217 = scmp.eq.s32.totalorder %s24, 0
      %p218 = por %p216, %p217
      %p219 = scmp.ne.s32.totalorder %s207, %s208
      %p220 = scmp.eq.s32.totalorder %s25, 1
      %p221 = por %p219, %p220
      %p223 = scmp.ne.s32.totalorder %s208, %s222
      %p224 = scmp.eq.s32.totalorder %s25, 0
      %p225 = por %p223, %p224
      %s227 = sadd.s32 %s226, 1
      %p230 = scmp.eq.s32.totalorder %s19, 1
      %p231 = scmp.ne.s32.totalorder %s226, %s228
      %p232 = scmp.eq.s32.totalorder %s19, 0
      %p233 = por %p231, %p232
      %p234 = scmp.ne.s32.totalorder %s226, %s228
      %p235 = scmp.eq.s32.totalorder %s24, 1
      %p236 = por %p234, %p235
      %p237 = scmp.ne.s32.totalorder %s228, %s229
      %p238 = scmp.eq.s32.totalorder %s24, 0
      %p239 = por %p237, %p238
      %p240 = scmp.ne.s32.totalorder %s228, %s229
      %p241 = scmp.eq.s32.totalorder %s25, 1
      %p242 = por %p240, %p241
      %p244 = scmp.ne.s32.totalorder %s229, %s243
      %p245 = scmp.eq.s32.totalorder %s25, 0
      %p246 = por %p244, %p245
      %s247 = ssub.s32 %s19, %s26
      %p248 = scmp.eq.s32.totalorder %s247, 0
      %s250 = sadd.s32 %s249, 1
      %s251 = scalar_select %p248, %s249, %s250
      %p254 = pneg %p248
      %p255 = scmp.eq.s32.totalorder %s19, 1
      %p256 = por %p254, %p255
      %p257 = scmp.ne.s32.totalorder %s249, %s252
      %p258 = scmp.eq.s32.totalorder %s19, 0
      %p259 = por %p257, %p258
      %p260 = scmp.ne.s32.totalorder %s249, %s252
      %p261 = scmp.eq.s32.totalorder %s24, 1
      %p262 = por %p260, %p261
      %p263 = scmp.ne.s32.totalorder %s252, %s253
      %p264 = scmp.eq.s32.totalorder %s24, 0
      %p265 = por %p263, %p264
      %p266 = scmp.ne.s32.totalorder %s252, %s253
      %p267 = scmp.eq.s32.totalorder %s25, 1
      %p268 = por %p266, %p267
      %p270 = scmp.ne.s32.totalorder %s253, %s269
      %p271 = scmp.eq.s32.totalorder %s25, 0
      %p272 = por %p270, %p271
      %p273 = scmp.le.s32.totalorder 1, %s19
      %p274 = scmp.lt.s32.totalorder %s19, 3
      %p275 = pnand %p273, %p274
      %p276 = pneg %p275
      // Predicated region
      $region9: #{bottleneck_forward.1} parent=5 // pred_check
        _
      $region10: #{bottleneck_forward.1} parent=5 // pred_check_branch
        %278 = sbr.rel (%p275) target = $region12
      $region11: #{bottleneck_forward.1} parent=5 // pred_region
        %s279 = ssub.s32 %s19, 1
        // Predicated region
        $region13: #{bottleneck_forward.1} parent=11 // pred_check
          %p280 = pneg %p92
        $region14: #{bottleneck_forward.1} parent=11 // pred_check_branch
          %282 = sbr.rel (%p280) target = $region16
        $region15: #{bottleneck_forward.1} parent=11 // pred_region
          _
        $region16: #{bottleneck_forward.1} parent=11 // pred_fallthru
          _
        // Predicated region
        $region17: #{bottleneck_forward.1} parent=11 // pred_check
          %p283 = pneg %p113
        $region18: #{bottleneck_forward.1} parent=11 // pred_check_branch
          %285 = sbr.rel (%p283) target = $region20
        $region19: #{bottleneck_forward.1} parent=11 // pred_region
          _
        $region20: #{bottleneck_forward.1} parent=11 // pred_fallthru
          _
        // Predicated region
        $region21: #{bottleneck_forward.1} parent=11 // pred_check
          %p286 = pneg %p134
        $region22: #{bottleneck_forward.1} parent=11 // pred_check_branch
          %288 = sbr.rel (%p286) target = $region24
        $region23: #{bottleneck_forward.1} parent=11 // pred_region
          _
        $region24: #{bottleneck_forward.1} parent=11 // pred_fallthru
          _
        // Predicated region
        $region25: #{bottleneck_forward.1} parent=11 // pred_check
          %p289 = pneg %p155
        $region26: #{bottleneck_forward.1} parent=11 // pred_check_branch
          %291 = sbr.rel (%p289) target = $region28
        $region27: #{bottleneck_forward.1} parent=11 // pred_region
          _
        $region28: #{bottleneck_forward.1} parent=11 // pred_fallthru
          _
        // Predicated region
        $region29: #{bottleneck_forward.1} parent=11 // pred_check
          %p292 = pneg %p176
        $region30: #{bottleneck_forward.1} parent=11 // pred_check_branch
          %294 = sbr.rel (%p292) target = $region32
        $region31: #{bottleneck_forward.1} parent=11 // pred_region
          _
        $region32: #{bottleneck_forward.1} parent=11 // pred_fallthru
          _
        // Predicated region
        $region33: #{bottleneck_forward.1} parent=11 // pred_check
          %p295 = pneg %p197
        $region34: #{bottleneck_forward.1} parent=11 // pred_check_branch
          %297 = sbr.rel (%p295) target = $region36
        $region35: #{bottleneck_forward.1} parent=11 // pred_region
          _
        $region36: #{bottleneck_forward.1} parent=11 // pred_fallthru
          _
        // Predicated region
        $region37: #{bottleneck_forward.1} parent=11 // pred_check
          %p298 = pneg %p218
        $region38: #{bottleneck_forward.1} parent=11 // pred_check_branch
          %300 = sbr.rel (%p298) target = $region40
        $region39: #{bottleneck_forward.1} parent=11 // pred_region
          _
        $region40: #{bottleneck_forward.1} parent=11 // pred_fallthru
          _
        // Predicated region
        $region41: #{bottleneck_forward.1} parent=11 // pred_check
          %p301 = pneg %p239
        $region42: #{bottleneck_forward.1} parent=11 // pred_check_branch
          %303 = sbr.rel (%p301) target = $region44
        $region43: #{bottleneck_forward.1} parent=11 // pred_region
          _
        $region44: #{bottleneck_forward.1} parent=11 // pred_fallthru
          _
      $region12: #{bottleneck_forward.1} parent=5 // pred_fallthru
        _
      %p304 = scmp.lt.s32.totalorder %s19, 2
      // Predicated region
      $region45: #{bottleneck_forward.1} parent=5 // pred_check
        %p305 = pneg %p304
      $region46: #{bottleneck_forward.1} parent=5 // pred_check_branch
        %307 = sbr.rel (%p305) target = $region48
      $region47: #{bottleneck_forward.1} parent=5 // pred_region
        // Predicated region
        $region49: #{bottleneck_forward.1} parent=47 // pred_check
          %p308 = pneg %p39
        $region50: #{bottleneck_forward.1} parent=47 // pred_check_branch
          %310 = sbr.rel (%p308) target = $region52
        $region51: #{bottleneck_forward.1} parent=47 // pred_region
          %p311 = scmp.lt.s32.totalorder %s19, 1
          %s312 = scalar_select %p311, %s19, 1
          %s313 = smul.addr %s312, 32
          %s314 = smul.addr %s313, 4
          %s315 = scalar_lea.vmem %s0, %s314
        $region52: #{bottleneck_forward.1} parent=47 // pred_fallthru
          _
        // Predicated region
        $region53: #{bottleneck_forward.1} parent=47 // pred_check
          %p316 = pneg %p65
        $region54: #{bottleneck_forward.1} parent=47 // pred_check_branch
          %318 = sbr.rel (%p316) target = $region56
        $region55: #{bottleneck_forward.1} parent=47 // pred_region
          %p319 = scmp.lt.s32.totalorder %s19, 1
          %s320 = scalar_select %p319, %s19, 1
          %s321 = smul.addr %s320, 8
          %s322 = smul.addr %s321, 4
          %s323 = scalar_lea.vmem %s1, %s322
        $region56: #{bottleneck_forward.1} parent=47 // pred_fallthru
          _
      $region48: #{bottleneck_forward.1} parent=5 // pred_fallthru
        _
      %p324 = scmp.le.s32.totalorder 1, %s19
      %p325 = scmp.lt.s32.totalorder %s19, 3
      %p326 = pnand %p324, %p325
      %p327 = pneg %p326
      // Predicated region
      $region57: #{bottleneck_forward.1} parent=5 // pred_check
        _
      $region58: #{bottleneck_forward.1} parent=5 // pred_check_branch
        %329 = sbr.rel (%p326) target = $region60
      $region59: #{bottleneck_forward.1} parent=5 // pred_region
        %s330 = ssub.s32 %s19, 1
        %p331 = scmp.lt.s32.totalorder %s24, 1
        %s332 = scalar_select %p331, %s24, 1
        %s333 = smul.addr %s332, 32
        %s334 = smul.addr %s333, 4
        %s335 = scalar_lea.vmem %s0, %s334
        %p336 = pneg %p45
        %p337 = pneg %p42
        %p338 = scmp.lt.s32.totalorder %s24, 1
        %s339 = scalar_select %p338, %s24, 1
        %s340 = smul.addr %s339, 8
        %s341 = smul.addr %s340, 4
        %s342 = scalar_lea.vmem %s1, %s341
        %p343 = pneg %p71
        %p344 = pneg %p68
        %p345 = pneg %p92
        %p346 = pneg %p89
        %p347 = pneg %p113
        %p348 = pneg %p110
        %p349 = pneg %p134
        %p350 = pneg %p131
        %p351 = pneg %p155
        %p352 = pneg %p152
        %p353 = pneg %p176
        %p354 = pneg %p173
        %p355 = pneg %p197
        %p356 = pneg %p194
        %p357 = pneg %p218
        %p358 = pneg %p215
        %p359 = pneg %p239
        %p360 = pneg %p236
        %p361 = pneg %p265
        %p362 = pneg %p262
        %s363 = sand.u32 %s252, 1
        %s364 = scalar_lea.sflag [#allocation3], %s363
        %s365 = sand.u32 %s252, 1
        %s366 = smul.addr %s365, 64
        %s367 = scalar_lea.vmem [#allocation2], %s366
        %p368 = scmp.lt.s32.totalorder %s24, 1
        %s369 = scalar_select %p368, %s24, 1
        %s370 = smul.addr %s369, 32
        %s371 = smul.addr %s370, 4
        %s372 = scalar_lea.vmem %s0, %s371
        %p373 = scmp.lt.s32.totalorder %s24, 1
        %s374 = scalar_select %p373, %s24, 1
        %s375 = smul.addr %s374, 8
        %s376 = smul.addr %s375, 4
        %s377 = scalar_lea.vmem %s1, %s376
        %v379 = vld [vmem:[%s372] sm:$0xf]
        %v380 = vld [vmem:[%s372 + $0x4] sm:$0xf]
        %v381 = vld [vmem:[%s372 + $0x8] sm:$0xf]
        %v382 = vld [vmem:[%s372 + $0xc] sm:$0xf]
        %v383 = vld [vmem:[%s372 + $0x10] sm:$0xf]
        %v384 = vld [vmem:[%s372 + $0x14] sm:$0xf]
        %v385 = vld [vmem:[%s372 + $0x18] sm:$0xf]
        %v386 = vld [vmem:[%s372 + $0x1c] sm:$0xf]
        %v387 = vld [vmem:[%s372 + $0x20] sm:$0xf]
        %v388 = vld [vmem:[%s372 + $0x24] sm:$0xf]
        %v389 = vld [vmem:[%s372 + $0x28] sm:$0xf]
        %v390 = vld [vmem:[%s372 + $0x2c] sm:$0xf]
        %v391 = vld [vmem:[%s372 + $0x30] sm:$0xf]
        %v392 = vld [vmem:[%s372 + $0x34] sm:$0xf]
        %v393 = vld [vmem:[%s372 + $0x38] sm:$0xf]
        %v394 = vld [vmem:[%s372 + $0x3c] sm:$0xf]
        %v395 = vld [vmem:[%s372 + $0x40] sm:$0xf]
        %v396 = vld [vmem:[%s372 + $0x44] sm:$0xf]
        %v397 = vld [vmem:[%s372 + $0x48] sm:$0xf]
        %v398 = vld [vmem:[%s372 + $0x4c] sm:$0xf]
        %v399 = vld [vmem:[%s372 + $0x50] sm:$0xf]
        %v400 = vld [vmem:[%s372 + $0x54] sm:$0xf]
        %v401 = vld [vmem:[%s372 + $0x58] sm:$0xf]
        %v402 = vld [vmem:[%s372 + $0x5c] sm:$0xf]
        %v403 = vld [vmem:[%s372 + $0x60] sm:$0xf]
        %v404 = vld [vmem:[%s372 + $0x64] sm:$0xf]
        %v405 = vld [vmem:[%s372 + $0x68] sm:$0xf]
        %v406 = vld [vmem:[%s372 + $0x6c] sm:$0xf]
        %v407 = vld [vmem:[%s372 + $0x70] sm:$0xf]
        %v408 = vld [vmem:[%s372 + $0x74] sm:$0xf]
        %v409 = vld [vmem:[%s372 + $0x78] sm:$0xf]
        %v410 = vld [vmem:[%s372 + $0x7c] sm:$0xf]
        %v411 = vld [vmem:[%s3] sm:$0xf]
        %v412 = vld [vmem:[%s3 + $0x4] sm:$0xf]
        %v413 = vld [vmem:[%s3 + $0x8] sm:$0xf]
        %v414 = vld [vmem:[%s3 + $0xc] sm:$0xf]
        %v415 = vld [vmem:[%s3 + $0x10] sm:$0xf]
        %v416 = vld [vmem:[%s3 + $0x14] sm:$0xf]
        %v417 = vld [vmem:[%s3 + $0x18] sm:$0xf]
        %v418 = vld [vmem:[%s3 + $0x1c] sm:$0xf]
        %v419 = vld [vmem:[%s4] sm:$0x1]
        %v421 = vlaneseq
        %v422 = vshrl.u32 %v421, 7
        %v423 = vsub.s32 0, %v422
        %v424 = vrot.slane %v419, %v423
        %v458 = vunpack.c.l.b16 %v379
        %v459 = vunpack.c.l.b16 %v380
        %v460 = vunpack.c.l.b16 %v381
        %v461 = vunpack.c.l.b16 %v382
        %v462 = vunpack.c.l.b16 %v383
        %v463 = vunpack.c.l.b16 %v384
        %v464 = vunpack.c.l.b16 %v385
        %v465 = vunpack.c.l.b16 %v386
        %v466 = vunpack.c.l.b16 %v387
        %v467 = vunpack.c.l.b16 %v388
        %v468 = vunpack.c.l.b16 %v389
        %v469 = vunpack.c.l.b16 %v390
        %v470 = vunpack.c.l.b16 %v391
        %v471 = vunpack.c.l.b16 %v392
        %v472 = vunpack.c.l.b16 %v393
        %v473 = vunpack.c.l.b16 %v394
        %v474 = vunpack.c.l.b16 %v395
        %v475 = vunpack.c.l.b16 %v396
        %v476 = vunpack.c.l.b16 %v397
        %v477 = vunpack.c.l.b16 %v398
        %v478 = vunpack.c.l.b16 %v399
        %v479 = vunpack.c.l.b16 %v400
        %v480 = vunpack.c.l.b16 %v401
        %v481 = vunpack.c.l.b16 %v402
        %v482 = vunpack.c.l.b16 %v403
        %v483 = vunpack.c.l.b16 %v404
        %v484 = vunpack.c.l.b16 %v405
        %v485 = vunpack.c.l.b16 %v406
        %v486 = vunpack.c.l.b16 %v407
        %v487 = vunpack.c.l.b16 %v408
        %v488 = vunpack.c.l.b16 %v409
        %v489 = vunpack.c.l.b16 %v410
        %v490 = vpack.c.b16 %v459, %v458
        %v491 = vpack.c.b16 %v461, %v460
        %v492 = vpack.c.b16 %v463, %v462
        %v493 = vpack.c.b16 %v465, %v464
        %v494 = vpack.c.b16 %v467, %v466
        %v495 = vpack.c.b16 %v469, %v468
        %v496 = vpack.c.b16 %v471, %v470
        %v497 = vpack.c.b16 %v473, %v472
        %v498 = vpack.c.b16 %v475, %v474
        %v499 = vpack.c.b16 %v477, %v476
        %v500 = vpack.c.b16 %v479, %v478
        %v501 = vpack.c.b16 %v481, %v480
        %v502 = vpack.c.b16 %v483, %v482
        %v503 = vpack.c.b16 %v485, %v484
        %v504 = vpack.c.b16 %v487, %v486
        %v505 = vpack.c.b16 %v489, %v488
        %v514 = vunpack.c.l.b16 %v411
        %v515 = vunpack.c.l.b16 %v412
        %v516 = vunpack.c.l.b16 %v413
        %v517 = vunpack.c.l.b16 %v414
        %v518 = vunpack.c.l.b16 %v415
        %v519 = vunpack.c.l.b16 %v416
        %v520 = vunpack.c.l.b16 %v417
        %v521 = vunpack.c.l.b16 %v418
        %v522 = vpack.c.b16 %v515, %v514
        %v523 = vpack.c.b16 %v517, %v516
        %v524 = vpack.c.b16 %v519, %v518
        %v525 = vpack.c.b16 %v521, %v520
        %vm530 = vcmask 523264
        %v532 = vsel %vm530, %v490, 0
        %v535 = vsel %vm530, %v491, 0
        %v538 = vsel %vm530, %v492, 0
        %v541 = vsel %vm530, %v493, 0
        %v544 = vsel %vm530, %v494, 0
        %v547 = vsel %vm530, %v495, 0
        %v550 = vsel %vm530, %v496, 0
        %v553 = vsel %vm530, %v497, 0
        %v556 = vsel %vm530, %v498, 0
        %v559 = vsel %vm530, %v499, 0
        %v562 = vsel %vm530, %v500, 0
        %v565 = vsel %vm530, %v501, 0
        %v568 = vsel %vm530, %v502, 0
        %v571 = vsel %vm530, %v503, 0
        %v574 = vsel %vm530, %v504, 0
        %v577 = vsel %vm530, %v505, 0
        %579 = vmatprep.subr.bf16.mxu0 0
        %580 = vmatpush1.bf16.msra.mxu0 %v522
        %581 = vmatprep.subr.bf16.mxu0 0
        %582 = vmatpush1.bf16.msra.mxu0 %v523
        %583 = vmatprep.subr.bf16.mxu0 0
        %584 = vmatpush1.bf16.msra.mxu0 %v524
        %585 = vmatprep.subr.bf16.mxu0 0
        %586 = vmatpush1.bf16.msra.mxu0 %v525
        %587 = vmatprep.subr.bf16.mxu0 0
        %588 = vmatpush1.bf16.msra.mxu0 0
        %589 = vmatprep.subr.bf16.mxu0 0
        %590 = vmatpush1.bf16.msra.mxu0 0
        %591 = vmatprep.subr.bf16.mxu0 0
        %592 = vmatpush1.bf16.msra.mxu0 0
        %593 = vmatprep.subr.bf16.mxu0 0
        %594 = vmatpush1.bf16.msra.mxu0 0
        %595 = vmatprep.subr.bf16.mxu0 0
        %596 = vmatpush1.bf16.msra.mxu0 0
        %597 = vmatprep.subr.bf16.mxu0 0
        %598 = vmatpush1.bf16.msra.mxu0 0
        %599 = vmatprep.subr.bf16.mxu0 0
        %600 = vmatpush1.bf16.msra.mxu0 0
        %601 = vmatprep.subr.bf16.mxu0 0
        %602 = vmatpush1.bf16.msra.mxu0 0
        %603 = vmatprep.subr.bf16.mxu0 0
        %604 = vmatpush1.bf16.msra.mxu0 0
        %605 = vmatprep.subr.bf16.mxu0 0
        %606 = vmatpush1.bf16.msra.mxu0 0
        %607 = vmatprep.subr.bf16.mxu0 0
        %608 = vmatpush1.bf16.msra.mxu0 0
        %609 = vmatprep.subr.bf16.mxu0 0
        %610 = vmatpush1.bf16.msra.mxu0 0
        %611 = vmatprep.mubr.bf16.mxu0 0
        %612 = vmatmul.mubr.bf16.gmra.mrb[0].mxu0 %v532
        %v613 = vpop.f32.mrb[0].mxu0
        %v614 = vadd.f32 %v424, %v613
        %v615 = vpop.f32.mrb[0].mxu0
        %v616 = vpop.f32.mrb[0].mxu0
        %v617 = vadd.f32 %v424, %v616
        %v618 = vpop.f32.mrb[0].mxu0
        %619 = vmatprep.mubr.bf16.mxu0 0
        %620 = vmatmul.mubr.bf16.gmra.mrb[0].mxu0 %v535
        %v621 = vpop.f32.mrb[0].mxu0
        %v622 = vadd.f32 %v424, %v621
        %v623 = vpop.f32.mrb[0].mxu0
        %v624 = vpop.f32.mrb[0].mxu0
        %v625 = vadd.f32 %v424, %v624
        %v626 = vpop.f32.mrb[0].mxu0
        %627 = vmatprep.mubr.bf16.mxu0 0
        %628 = vmatmul.mubr.bf16.gmra.mrb[0].mxu0 %v538
        %v629 = vpop.f32.mrb[0].mxu0
        %v630 = vadd.f32 %v424, %v629
        %v631 = vpop.f32.mrb[0].mxu0
        %v632 = vpop.f32.mrb[0].mxu0
        %v633 = vadd.f32 %v424, %v632
        %v634 = vpop.f32.mrb[0].mxu0
        %635 = vmatprep.mubr.bf16.mxu0 0
        %636 = vmatmul.mubr.bf16.gmra.mrb[0].mxu0 %v541
        %v637 = vpop.f32.mrb[0].mxu0
        %v638 = vadd.f32 %v424, %v637
        %v639 = vpop.f32.mrb[0].mxu0
        %v640 = vpop.f32.mrb[0].mxu0
        %v641 = vadd.f32 %v424, %v640
        %v642 = vpop.f32.mrb[0].mxu0
        %643 = vmatprep.mubr.bf16.mxu0 0
        %644 = vmatmul.mubr.bf16.gmra.mrb[0].mxu0 %v544
        %v645 = vpop.f32.mrb[0].mxu0
        %v646 = vadd.f32 %v424, %v645
        %v647 = vpop.f32.mrb[0].mxu0
        %v648 = vpop.f32.mrb[0].mxu0
        %v649 = vadd.f32 %v424, %v648
        %v650 = vpop.f32.mrb[0].mxu0
        %651 = vmatprep.mubr.bf16.mxu0 0
        %652 = vmatmul.mubr.bf16.gmra.mrb[0].mxu0 %v547
        %v653 = vpop.f32.mrb[0].mxu0
        %v654 = vadd.f32 %v424, %v653
        %v655 = vpop.f32.mrb[0].mxu0
        %v656 = vpop.f32.mrb[0].mxu0
        %v657 = vadd.f32 %v424, %v656
        %v658 = vpop.f32.mrb[0].mxu0
        %659 = vmatprep.mubr.bf16.mxu0 0
        %660 = vmatmul.mubr.bf16.gmra.mrb[0].mxu0 %v550
        %v661 = vpop.f32.mrb[0].mxu0
        %v662 = vadd.f32 %v424, %v661
        %v663 = vpop.f32.mrb[0].mxu0
        %v664 = vpop.f32.mrb[0].mxu0
        %v665 = vadd.f32 %v424, %v664
        %v666 = vpop.f32.mrb[0].mxu0
        %667 = vmatprep.mubr.bf16.mxu0 0
        %668 = vmatmul.mubr.bf16.gmra.mrb[0].mxu0 %v553
        %v669 = vpop.f32.mrb[0].mxu0
        %v670 = vadd.f32 %v424, %v669
        %v671 = vpop.f32.mrb[0].mxu0
        %v672 = vpop.f32.mrb[0].mxu0
        %v673 = vadd.f32 %v424, %v672
        %v674 = vpop.f32.mrb[0].mxu0
        %675 = vmatprep.mubr.bf16.mxu0 0
        %676 = vmatmul.mubr.bf16.gmra.mrb[0].mxu0 %v556
        %v677 = vpop.f32.mrb[0].mxu0
        %v678 = vadd.f32 %v424, %v677
        %v679 = vpop.f32.mrb[0].mxu0
        %v680 = vpop.f32.mrb[0].mxu0
        %v681 = vadd.f32 %v424, %v680
        %v682 = vpop.f32.mrb[0].mxu0
        %683 = vmatprep.mubr.bf16.mxu0 0
        %684 = vmatmul.mubr.bf16.gmra.mrb[0].mxu0 %v559
        %v685 = vpop.f32.mrb[0].mxu0
        %v686 = vadd.f32 %v424, %v685
        %v687 = vpop.f32.mrb[0].mxu0
        %v688 = vpop.f32.mrb[0].mxu0
        %v689 = vadd.f32 %v424, %v688
        %v690 = vpop.f32.mrb[0].mxu0
        %691 = vmatprep.mubr.bf16.mxu0 0
        %692 = vmatmul.mubr.bf16.gmra.mrb[0].mxu0 %v562
        %v693 = vpop.f32.mrb[0].mxu0
        %v694 = vadd.f32 %v424, %v693
        %v695 = vpop.f32.mrb[0].mxu0
        %v696 = vpop.f32.mrb[0].mxu0
        %v697 = vadd.f32 %v424, %v696
        %v698 = vpop.f32.mrb[0].mxu0
        %699 = vmatprep.mubr.bf16.mxu0 0
        %700 = vmatmul.mubr.bf16.gmra.mrb[0].mxu0 %v565
        %v701 = vpop.f32.mrb[0].mxu0
        %v702 = vadd.f32 %v424, %v701
        %v703 = vpop.f32.mrb[0].mxu0
        %v704 = vpop.f32.mrb[0].mxu0
        %v705 = vadd.f32 %v424, %v704
        %v706 = vpop.f32.mrb[0].mxu0
        %707 = vmatprep.mubr.bf16.mxu0 0
        %708 = vmatmul.mubr.bf16.gmra.mrb[0].mxu0 %v568
        %v709 = vpop.f32.mrb[0].mxu0
        %v710 = vadd.f32 %v424, %v709
        %v711 = vpop.f32.mrb[0].mxu0
        %v712 = vpop.f32.mrb[0].mxu0
        %v713 = vadd.f32 %v424, %v712
        %v714 = vpop.f32.mrb[0].mxu0
        %715 = vmatprep.mubr.bf16.mxu0 0
        %716 = vmatmul.mubr.bf16.gmra.mrb[0].mxu0 %v571
        %v717 = vpop.f32.mrb[0].mxu0
        %v718 = vadd.f32 %v424, %v717
        %v719 = vpop.f32.mrb[0].mxu0
        %v720 = vpop.f32.mrb[0].mxu0
        %v721 = vadd.f32 %v424, %v720
        %v722 = vpop.f32.mrb[0].mxu0
        %723 = vmatprep.mubr.bf16.mxu0 0
        %724 = vmatmul.mubr.bf16.gmra.mrb[0].mxu0 %v574
        %v725 = vpop.f32.mrb[0].mxu0
        %v726 = vadd.f32 %v424, %v725
        %v727 = vpop.f32.mrb[0].mxu0
        %v728 = vpop.f32.mrb[0].mxu0
        %v729 = vadd.f32 %v424, %v728
        %v730 = vpop.f32.mrb[0].mxu0
        %731 = vmatprep.mubr.bf16.mxu0 0
        %732 = vmatmul.mubr.bf16.gmra.mrb[0].mxu0 %v577
        %v733 = vpop.f32.mrb[0].mxu0
        %v734 = vadd.f32 %v424, %v733
        %v735 = vpop.f32.mrb[0].mxu0
        %v736 = vpop.f32.mrb[0].mxu0
        %v737 = vadd.f32 %v424, %v736
        %v738 = vpop.f32.mrb[0].mxu0
        %739 = vdwg.mxu0
        %v740 = vmax.f32 %v614, 0.0
        %v741 = vmax.f32 %v617, 0.0
        %v742 = vmax.f32 %v622, 0.0
        %v743 = vmax.f32 %v625, 0.0
        %v744 = vmax.f32 %v630, 0.0
        %v745 = vmax.f32 %v633, 0.0
        %v746 = vmax.f32 %v638, 0.0
        %v747 = vmax.f32 %v641, 0.0
        %v748 = vmax.f32 %v646, 0.0
        %v749 = vmax.f32 %v649, 0.0
        %v750 = vmax.f32 %v654, 0.0
        %v751 = vmax.f32 %v657, 0.0
        %v752 = vmax.f32 %v662, 0.0
        %v753 = vmax.f32 %v665, 0.0
        %v754 = vmax.f32 %v670, 0.0
        %v755 = vmax.f32 %v673, 0.0
        %v756 = vmax.f32 %v678, 0.0
        %v757 = vmax.f32 %v681, 0.0
        %v758 = vmax.f32 %v686, 0.0
        %v759 = vmax.f32 %v689, 0.0
        %v760 = vmax.f32 %v694, 0.0
        %v761 = vmax.f32 %v697, 0.0
        %v762 = vmax.f32 %v702, 0.0
        %v763 = vmax.f32 %v705, 0.0
        %v764 = vmax.f32 %v710, 0.0
        %v765 = vmax.f32 %v713, 0.0
        %v766 = vmax.f32 %v718, 0.0
        %v767 = vmax.f32 %v721, 0.0
        %v768 = vmax.f32 %v726, 0.0
        %v769 = vmax.f32 %v729, 0.0
        %v770 = vmax.f32 %v734, 0.0
        %v771 = vmax.f32 %v737, 0.0
        %v772 = vpack.c.bf16 %v741, %v740
        %v773 = vpack.c.bf16 %v743, %v742
        %v774 = vpack.c.bf16 %v745, %v744
        %v775 = vpack.c.bf16 %v747, %v746
        %v776 = vpack.c.bf16 %v749, %v748
        %v777 = vpack.c.bf16 %v751, %v750
        %v778 = vpack.c.bf16 %v753, %v752
        %v779 = vpack.c.bf16 %v755, %v754
        %v780 = vpack.c.bf16 %v757, %v756
        %v781 = vpack.c.bf16 %v759, %v758
        %v782 = vpack.c.bf16 %v761, %v760
        %v783 = vpack.c.bf16 %v763, %v762
        %v784 = vpack.c.bf16 %v765, %v764
        %v785 = vpack.c.bf16 %v767, %v766
        %v786 = vpack.c.bf16 %v769, %v768
        %v787 = vpack.c.bf16 %v771, %v770
        %v788 = vld [vmem:[%s2] sm:$0xff]
        %v789 = vld [vmem:[%s2 + $0x8] sm:$0xff]
        %v790 = vld [vmem:[%s2 + $0x10] sm:$0xff]
        %v791 = vld [vmem:[%s2 + $0x18] sm:$0xff]
        %v792 = vld [vmem:[%s2 + $0x20] sm:$0xff]
        %v793 = vld [vmem:[%s2 + $0x28] sm:$0xff]
        %v794 = vld [vmem:[%s2 + $0x30] sm:$0xff]
        %v795 = vld [vmem:[%s2 + $0x38] sm:$0xff]
        %v804 = vunpack.c.l.b16 %v788
        %v805 = vunpack.c.h.b16 %v788
        %v806 = vunpack.c.l.b16 %v789
        %v807 = vunpack.c.h.b16 %v789
        %v808 = vunpack.c.l.b16 %v790
        %v809 = vunpack.c.h.b16 %v790
        %v810 = vunpack.c.l.b16 %v791
        %v811 = vunpack.c.h.b16 %v791
        %v812 = vunpack.c.l.b16 %v792
        %v813 = vunpack.c.h.b16 %v792
        %v814 = vunpack.c.l.b16 %v793
        %v815 = vunpack.c.h.b16 %v793
        %v816 = vunpack.c.l.b16 %v794
        %v817 = vunpack.c.h.b16 %v794
        %v818 = vunpack.c.l.b16 %v795
        %v819 = vunpack.c.h.b16 %v795
        %v820 = vpack.c.b16 %v806, %v804
        %v821 = vpack.c.b16 %v807, %v805
        %v822 = vpack.c.b16 %v810, %v808
        %v823 = vpack.c.b16 %v811, %v809
        %v824 = vpack.c.b16 %v814, %v812
        %v825 = vpack.c.b16 %v815, %v813
        %v826 = vpack.c.b16 %v818, %v816
        %v827 = vpack.c.b16 %v819, %v817
        %836 = vmatprep.subr.bf16.mxu0 0
        %837 = vmatpush1.bf16.msra.mxu0 %v772
        %838 = vmatprep.subr.bf16.mxu0 0
        %839 = vmatpush1.bf16.msra.mxu0 %v773
        %840 = vmatprep.subr.bf16.mxu0 0
        %841 = vmatpush1.bf16.msra.mxu0 %v774
        %842 = vmatprep.subr.bf16.mxu0 0
        %843 = vmatpush1.bf16.msra.mxu0 %v775
        %844 = vmatprep.subr.bf16.mxu0 0
        %845 = vmatpush1.bf16.msra.mxu0 %v776
        %846 = vmatprep.subr.bf16.mxu0 0
        %847 = vmatpush1.bf16.msra.mxu0 %v777
        %848 = vmatprep.subr.bf16.mxu0 0
        %849 = vmatpush1.bf16.msra.mxu0 %v778
        %850 = vmatprep.subr.bf16.mxu0 0
        %851 = vmatpush1.bf16.msra.mxu0 %v779
        %852 = vmatprep.subr.bf16.mxu0 0
        %853 = vmatpush1.bf16.msra.mxu0 %v780
        %854 = vmatprep.subr.bf16.mxu0 0
        %855 = vmatpush1.bf16.msra.mxu0 %v781
        %856 = vmatprep.subr.bf16.mxu0 0
        %857 = vmatpush1.bf16.msra.mxu0 %v782
        %858 = vmatprep.subr.bf16.mxu0 0
        %859 = vmatpush1.bf16.msra.mxu0 %v783
        %860 = vmatprep.subr.bf16.mxu0 0
        %861 = vmatpush1.bf16.msra.mxu0 %v784
        %862 = vmatprep.subr.bf16.mxu0 0
        %863 = vmatpush1.bf16.msra.mxu0 %v785
        %864 = vmatprep.subr.bf16.mxu0 0
        %865 = vmatpush1.bf16.msra.mxu0 %v786
        %866 = vmatprep.subr.bf16.mxu0 0
        %867 = vmatpush1.bf16.msra.mxu0 %v787
        %868 = vmatprep.mubr.bf16.mxu0 %v821
        %869 = vmatmul.mubr.bf16.gmra.mrb[0].mxu0 %v820
        %v870 = vpop.f32.mrb[0].mxu0
        %v871 = vadd.f32 0.0, %v870
        %v872 = vpop.f32.mrb[0].mxu0
        %v873 = vpop.f32.mrb[0].mxu0
        %v874 = vadd.f32 0.0, %v873
        %v875 = vpop.f32.mrb[0].mxu0
        %876 = vmatprep.mubr.bf16.mxu0 %v823
        %877 = vmatmul.mubr.bf16.gmra.mrb[0].mxu0 %v822
        %v878 = vpop.f32.mrb[0].mxu0
        %v879 = vadd.f32 0.0, %v878
        %v880 = vpop.f32.mrb[0].mxu0
        %v881 = vpop.f32.mrb[0].mxu0
        %v882 = vadd.f32 0.0, %v881
        %v883 = vpop.f32.mrb[0].mxu0
        %884 = vmatprep.mubr.bf16.mxu0 %v825
        %885 = vmatmul.mubr.bf16.gmra.mrb[0].mxu0 %v824
        %v886 = vpop.f32.mrb[0].mxu0
        %v887 = vadd.f32 0.0, %v886
        %v888 = vpop.f32.mrb[0].mxu0
        %v889 = vpop.f32.mrb[0].mxu0
        %v890 = vadd.f32 0.0, %v889
        %v891 = vpop.f32.mrb[0].mxu0
        %892 = vmatprep.mubr.bf16.mxu0 %v827
        %893 = vmatmul.mubr.bf16.gmra.mrb[0].mxu0 %v826
        %v894 = vpop.f32.mrb[0].mxu0
        %v895 = vadd.f32 0.0, %v894
        %v896 = vpop.f32.mrb[0].mxu0
        %v897 = vpop.f32.mrb[0].mxu0
        %v898 = vadd.f32 0.0, %v897
        %v899 = vpop.f32.mrb[0].mxu0
        %900 = vdwg.mxu0
        %v901 = vpack.c.bf16 %v874, %v871
        %v902 = vpack.c.bf16 %v882, %v879
        %v903 = vpack.c.bf16 %v890, %v887
        %v904 = vpack.c.bf16 %v898, %v895
        %v905 = vld [vmem:[%s5] sm:$0xf]
        %v906 = vld [vmem:[%s5 + $0x4] sm:$0xf]
        %v907 = vld [vmem:[%s5 + $0x8] sm:$0xf]
        %v908 = vld [vmem:[%s5 + $0xc] sm:$0xf]
        %v909 = vld [vmem:[%s5 + $0x10] sm:$0xf]
        %v910 = vld [vmem:[%s5 + $0x14] sm:$0xf]
        %v911 = vld [vmem:[%s5 + $0x18] sm:$0xf]
        %v912 = vld [vmem:[%s5 + $0x1c] sm:$0xf]
        %s913 = scalar_lea.vmem %s2, 64
        %v914 = vld [vmem:[%s913] sm:$0xff]
        %v915 = vld [vmem:[%s913 + $0x8] sm:$0xff]
        %v916 = vld [vmem:[%s913 + $0x10] sm:$0xff]
        %v917 = vld [vmem:[%s913 + $0x18] sm:$0xff]
        %v918 = vld [vmem:[%s913 + $0x20] sm:$0xff]
        %v919 = vld [vmem:[%s913 + $0x28] sm:$0xff]
        %v920 = vld [vmem:[%s913 + $0x30] sm:$0xff]
        %v921 = vld [vmem:[%s913 + $0x38] sm:$0xff]
        %v930 = vunpack.c.l.b16 %v914
        %v931 = vunpack.c.h.b16 %v914
        %v932 = vunpack.c.l.b16 %v915
        %v933 = vunpack.c.h.b16 %v915
        %v934 = vunpack.c.l.b16 %v916
        %v935 = vunpack.c.h.b16 %v916
        %v936 = vunpack.c.l.b16 %v917
        %v937 = vunpack.c.h.b16 %v917
        %v938 = vunpack.c.l.b16 %v918
        %v939 = vunpack.c.h.b16 %v918
        %v940 = vunpack.c.l.b16 %v919
        %v941 = vunpack.c.h.b16 %v919
        %v942 = vunpack.c.l.b16 %v920
        %v943 = vunpack.c.h.b16 %v920
        %v944 = vunpack.c.l.b16 %v921
        %v945 = vunpack.c.h.b16 %v921
        %v946 = vpack.c.b16 %v932, %v930
        %v947 = vpack.c.b16 %v933, %v931
        %v948 = vpack.c.b16 %v936, %v934
        %v949 = vpack.c.b16 %v937, %v935
        %v950 = vpack.c.b16 %v940, %v938
        %v951 = vpack.c.b16 %v941, %v939
        %v952 = vpack.c.b16 %v944, %v942
        %v953 = vpack.c.b16 %v945, %v943
        %962 = vmatprep.subr.bf16.mxu0 0
        %963 = vmatpush1.bf16.msra.mxu0 %v772
        %964 = vmatprep.subr.bf16.mxu0 0
        %965 = vmatpush1.bf16.msra.mxu0 %v773
        %966 = vmatprep.subr.bf16.mxu0 0
        %967 = vmatpush1.bf16.msra.mxu0 %v774
        %968 = vmatprep.subr.bf16.mxu0 0
        %969 = vmatpush1.bf16.msra.mxu0 %v775
        %970 = vmatprep.subr.bf16.mxu0 0
        %971 = vmatpush1.bf16.msra.mxu0 %v776
        %972 = vmatprep.subr.bf16.mxu0 0
        %973 = vmatpush1.bf16.msra.mxu0 %v777
        %974 = vmatprep.subr.bf16.mxu0 0
        %975 = vmatpush1.bf16.msra.mxu0 %v778
        %976 = vmatprep.subr.bf16.mxu0 0
        %977 = vmatpush1.bf16.msra.mxu0 %v779
        %978 = vmatprep.subr.bf16.mxu0 0
        %979 = vmatpush1.bf16.msra.mxu0 %v780
        %980 = vmatprep.subr.bf16.mxu0 0
        %981 = vmatpush1.bf16.msra.mxu0 %v781
        %982 = vmatprep.subr.bf16.mxu0 0
        %983 = vmatpush1.bf16.msra.mxu0 %v782
        %984 = vmatprep.subr.bf16.mxu0 0
        %985 = vmatpush1.bf16.msra.mxu0 %v783
        %986 = vmatprep.subr.bf16.mxu0 0
        %987 = vmatpush1.bf16.msra.mxu0 %v784
        %988 = vmatprep.subr.bf16.mxu0 0
        %989 = vmatpush1.bf16.msra.mxu0 %v785
        %990 = vmatprep.subr.bf16.mxu0 0
        %991 = vmatpush1.bf16.msra.mxu0 %v786
        %992 = vmatprep.subr.bf16.mxu0 0
        %993 = vmatpush1.bf16.msra.mxu0 %v787
        %994 = vmatprep.mubr.bf16.mxu0 %v947
        %995 = vmatmul.mubr.bf16.gmra.mrb[0].mxu0 %v946
        %v996 = vpop.f32.mrb[0].mxu0
        %v997 = vadd.f32 0.0, %v996
        %v998 = vpop.f32.mrb[0].mxu0
        %v999 = vpop.f32.mrb[0].mxu0
        %v1000 = vadd.f32 0.0, %v999
        %v1001 = vpop.f32.mrb[0].mxu0
        %1002 = vmatprep.mubr.bf16.mxu0 %v949
        %1003 = vmatmul.mubr.bf16.gmra.mrb[0].mxu0 %v948
        %v1004 = vpop.f32.mrb[0].mxu0
        %v1005 = vadd.f32 0.0, %v1004
        %v1006 = vpop.f32.mrb[0].mxu0
        %v1007 = vpop.f32.mrb[0].mxu0
        %v1008 = vadd.f32 0.0, %v1007
        %v1009 = vpop.f32.mrb[0].mxu0
        %1010 = vmatprep.mubr.bf16.mxu0 %v951
        %1011 = vmatmul.mubr.bf16.gmra.mrb[0].mxu0 %v950
        %v1012 = vpop.f32.mrb[0].mxu0
        %v1013 = vadd.f32 0.0, %v1012
        %v1014 = vpop.f32.mrb[0].mxu0
        %v1015 = vpop.f32.mrb[0].mxu0
        %v1016 = vadd.f32 0.0, %v1015
        %v1017 = vpop.f32.mrb[0].mxu0
        %1018 = vmatprep.mubr.bf16.mxu0 %v953
        %1019 = vmatmul.mubr.bf16.gmra.mrb[0].mxu0 %v952
        %v1020 = vpop.f32.mrb[0].mxu0
        %v1021 = vadd.f32 0.0, %v1020
        %v1022 = vpop.f32.mrb[0].mxu0
        %v1023 = vpop.f32.mrb[0].mxu0
        %v1024 = vadd.f32 0.0, %v1023
        %v1025 = vpop.f32.mrb[0].mxu0
        %1026 = vdwg.mxu0
        %v1027 = vpack.c.bf16 %v1000, %v997
        %v1028 = vpack.c.bf16 %v1008, %v1005
        %v1029 = vpack.c.bf16 %v1016, %v1013
        %v1030 = vpack.c.bf16 %v1024, %v1021
        %s1031 = scalar_lea.vmem %s5, 32
        %v1032 = vld [vmem:[%s1031] sm:$0xf]
        %v1033 = vld [vmem:[%s1031 + $0x4] sm:$0xf]
        %v1034 = vld [vmem:[%s1031 + $0x8] sm:$0xf]
        %v1035 = vld [vmem:[%s1031 + $0xc] sm:$0xf]
        %v1036 = vld [vmem:[%s1031 + $0x10] sm:$0xf]
        %v1037 = vld [vmem:[%s1031 + $0x14] sm:$0xf]
        %v1038 = vld [vmem:[%s1031 + $0x18] sm:$0xf]
        %v1039 = vld [vmem:[%s1031 + $0x1c] sm:$0xf]
        %v1048 = vunpack.c.l.b16 %v1032
        %v1049 = vunpack.c.l.b16 %v1033
        %v1050 = vunpack.c.l.b16 %v1034
        %v1051 = vunpack.c.l.b16 %v1035
        %v1052 = vunpack.c.l.b16 %v1036
        %v1053 = vunpack.c.l.b16 %v1037
        %v1054 = vunpack.c.l.b16 %v1038
        %v1055 = vunpack.c.l.b16 %v1039
        %v1056 = vpack.c.b16 %v1049, %v1048
        %v1057 = vpack.c.b16 %v1051, %v1050
        %v1058 = vpack.c.b16 %v1053, %v1052
        %v1059 = vpack.c.b16 %v1055, %v1054
        %v1065 = vsel %vm530, %v1027, 0
        %v1068 = vsel %vm530, %v1028, 0
        %v1071 = vsel %vm530, %v1029, 0
        %v1074 = vsel %vm530, %v1030, 0
        %1076 = vmatprep.subr.bf16.mxu0 0
        %1077 = vmatpush1.bf16.msra.mxu0 %v1056
        %1078 = vmatprep.subr.bf16.mxu0 0
        %1079 = vmatpush1.bf16.msra.mxu0 %v1057
        %1080 = vmatprep.subr.bf16.mxu0 0
        %1081 = vmatpush1.bf16.msra.mxu0 %v1058
        %1082 = vmatprep.subr.bf16.mxu0 0
        %1083 = vmatpush1.bf16.msra.mxu0 %v1059
        %1084 = vmatprep.subr.bf16.mxu0 0
        %1085 = vmatpush1.bf16.msra.mxu0 0
        %1086 = vmatprep.subr.bf16.mxu0 0
        %1087 = vmatpush1.bf16.msra.mxu0 0
        %1088 = vmatprep.subr.bf16.mxu0 0
        %1089 = vmatpush1.bf16.msra.mxu0 0
        %1090 = vmatprep.subr.bf16.mxu0 0
        %1091 = vmatpush1.bf16.msra.mxu0 0
        %1092 = vmatprep.subr.bf16.mxu0 0
        %1093 = vmatpush1.bf16.msra.mxu0 0
        %1094 = vmatprep.subr.bf16.mxu0 0
        %1095 = vmatpush1.bf16.msra.mxu0 0
        %1096 = vmatprep.subr.bf16.mxu0 0
        %1097 = vmatpush1.bf16.msra.mxu0 0
        %1098 = vmatprep.subr.bf16.mxu0 0
        %1099 = vmatpush1.bf16.msra.mxu0 0
        %1100 = vmatprep.subr.bf16.mxu0 0
        %1101 = vmatpush1.bf16.msra.mxu0 0
        %1102 = vmatprep.subr.bf16.mxu0 0
        %1103 = vmatpush1.bf16.msra.mxu0 0
        %1104 = vmatprep.subr.bf16.mxu0 0
        %1105 = vmatpush1.bf16.msra.mxu0 0
        %1106 = vmatprep.subr.bf16.mxu0 0
        %1107 = vmatpush1.bf16.msra.mxu0 0
        %1108 = vmatprep.mubr.bf16.mxu0 0
        %1109 = vmatmul.mubr.bf16.gmra.mrb[0].mxu0 %v1065
        %v1110 = vpop.f32.mrb[0].mxu0
        %v1111 = vadd.f32 0.0, %v1110
        %v1112 = vpop.f32.mrb[0].mxu0
        %v1113 = vpop.f32.mrb[0].mxu0
        %v1114 = vadd.f32 0.0, %v1113
        %v1115 = vpop.f32.mrb[0].mxu0
        %1116 = vmatprep.mubr.bf16.mxu0 0
        %1117 = vmatmul.mubr.bf16.gmra.mrb[0].mxu0 %v1068
        %v1118 = vpop.f32.mrb[0].mxu0
        %v1119 = vadd.f32 0.0, %v1118
        %v1120 = vpop.f32.mrb[0].mxu0
        %v1121 = vpop.f32.mrb[0].mxu0
        %v1122 = vadd.f32 0.0, %v1121
        %v1123 = vpop.f32.mrb[0].mxu0
        %1124 = vmatprep.mubr.bf16.mxu0 0
        %1125 = vmatmul.mubr.bf16.gmra.mrb[0].mxu0 %v1071
        %v1126 = vpop.f32.mrb[0].mxu0
        %v1127 = vadd.f32 0.0, %v1126
        %v1128 = vpop.f32.mrb[0].mxu0
        %v1129 = vpop.f32.mrb[0].mxu0
        %v1130 = vadd.f32 0.0, %v1129
        %v1131 = vpop.f32.mrb[0].mxu0
        %1132 = vmatprep.mubr.bf16.mxu0 0
        %1133 = vmatmul.mubr.bf16.gmra.mrb[0].mxu0 %v1074
        %v1134 = vpop.f32.mrb[0].mxu0
        %v1135 = vadd.f32 0.0, %v1134
        %v1136 = vpop.f32.mrb[0].mxu0
        %v1137 = vpop.f32.mrb[0].mxu0
        %v1138 = vadd.f32 0.0, %v1137
        %v1139 = vpop.f32.mrb[0].mxu0
        %1140 = vdwg.mxu0
        %v1149 = vunpack.c.l.b16 %v905
        %v1150 = vunpack.c.l.b16 %v906
        %v1151 = vunpack.c.l.b16 %v907
        %v1152 = vunpack.c.l.b16 %v908
        %v1153 = vunpack.c.l.b16 %v909
        %v1154 = vunpack.c.l.b16 %v910
        %v1155 = vunpack.c.l.b16 %v911
        %v1156 = vunpack.c.l.b16 %v912
        %v1157 = vpack.c.b16 %v1150, %v1149
        %v1158 = vpack.c.b16 %v1152, %v1151
        %v1159 = vpack.c.b16 %v1154, %v1153
        %v1160 = vpack.c.b16 %v1156, %v1155
        %v1166 = vsel %vm530, %v901, 0
        %v1169 = vsel %vm530, %v902, 0
        %v1172 = vsel %vm530, %v903, 0
        %v1175 = vsel %vm530, %v904, 0
        %1177 = vmatprep.subr.bf16.mxu0 0
        %1178 = vmatpush1.bf16.msra.mxu0 %v1157
        %1179 = vmatprep.subr.bf16.mxu0 0
        %1180 = vmatpush1.bf16.msra.mxu0 %v1158
        %1181 = vmatprep.subr.bf16.mxu0 0
        %1182 = vmatpush1.bf16.msra.mxu0 %v1159
        %1183 = vmatprep.subr.bf16.mxu0 0
        %1184 = vmatpush1.bf16.msra.mxu0 %v1160
        %1185 = vmatprep.subr.bf16.mxu0 0
        %1186 = vmatpush1.bf16.msra.mxu0 0
        %1187 = vmatprep.subr.bf16.mxu0 0
        %1188 = vmatpush1.bf16.msra.mxu0 0
        %1189 = vmatprep.subr.bf16.mxu0 0
        %1190 = vmatpush1.bf16.msra.mxu0 0
        %1191 = vmatprep.subr.bf16.mxu0 0
        %1192 = vmatpush1.bf16.msra.mxu0 0
        %1193 = vmatprep.subr.bf16.mxu0 0
        %1194 = vmatpush1.bf16.msra.mxu0 0
        %1195 = vmatprep.subr.bf16.mxu0 0
        %1196 = vmatpush1.bf16.msra.mxu0 0
        %1197 = vmatprep.subr.bf16.mxu0 0
        %1198 = vmatpush1.bf16.msra.mxu0 0
        %1199 = vmatprep.subr.bf16.mxu0 0
        %1200 = vmatpush1.bf16.msra.mxu0 0
        %1201 = vmatprep.subr.bf16.mxu0 0
        %1202 = vmatpush1.bf16.msra.mxu0 0
        %1203 = vmatprep.subr.bf16.mxu0 0
        %1204 = vmatpush1.bf16.msra.mxu0 0
        %1205 = vmatprep.subr.bf16.mxu0 0
        %1206 = vmatpush1.bf16.msra.mxu0 0
        %1207 = vmatprep.subr.bf16.mxu0 0
        %1208 = vmatpush1.bf16.msra.mxu0 0
        %1209 = vmatprep.mubr.bf16.mxu0 0
        %1210 = vmatmul.mubr.bf16.gmra.mrb[0].mxu0 %v1166
        %v1211 = vpop.f32.mrb[0].mxu0
        %v1212 = vadd.f32 %v1111, %v1211
        %v1213 = vpop.f32.mrb[0].mxu0
        %v1214 = vpop.f32.mrb[0].mxu0
        %v1215 = vadd.f32 %v1114, %v1214
        %v1216 = vpop.f32.mrb[0].mxu0
        %1217 = vmatprep.mubr.bf16.mxu0 0
        %1218 = vmatmul.mubr.bf16.gmra.mrb[0].mxu0 %v1169
        %v1219 = vpop.f32.mrb[0].mxu0
        %v1220 = vadd.f32 %v1119, %v1219
        %v1221 = vpop.f32.mrb[0].mxu0
        %v1222 = vpop.f32.mrb[0].mxu0
        %v1223 = vadd.f32 %v1122, %v1222
        %v1224 = vpop.f32.mrb[0].mxu0
        %1225 = vmatprep.mubr.bf16.mxu0 0
        %1226 = vmatmul.mubr.bf16.gmra.mrb[0].mxu0 %v1172
        %v1227 = vpop.f32.mrb[0].mxu0
        %v1228 = vadd.f32 %v1127, %v1227
        %v1229 = vpop.f32.mrb[0].mxu0
        %v1230 = vpop.f32.mrb[0].mxu0
        %v1231 = vadd.f32 %v1130, %v1230
        %v1232 = vpop.f32.mrb[0].mxu0
        %1233 = vmatprep.mubr.bf16.mxu0 0
        %1234 = vmatmul.mubr.bf16.gmra.mrb[0].mxu0 %v1175
        %v1235 = vpop.f32.mrb[0].mxu0
        %v1236 = vadd.f32 %v1135, %v1235
        %v1237 = vpop.f32.mrb[0].mxu0
        %v1238 = vpop.f32.mrb[0].mxu0
        %v1239 = vadd.f32 %v1138, %v1238
        %v1240 = vpop.f32.mrb[0].mxu0
        %1241 = vdwg.mxu0
        %s1242 = scalar_lea.vmem %s2, 128
        %v1243 = vld [vmem:[%s1242] sm:$0xff]
        %v1244 = vld [vmem:[%s1242 + $0x8] sm:$0xff]
        %v1245 = vld [vmem:[%s1242 + $0x10] sm:$0xff]
        %v1246 = vld [vmem:[%s1242 + $0x18] sm:$0xff]
        %v1247 = vld [vmem:[%s1242 + $0x20] sm:$0xff]
        %v1248 = vld [vmem:[%s1242 + $0x28] sm:$0xff]
        %v1249 = vld [vmem:[%s1242 + $0x30] sm:$0xff]
        %v1250 = vld [vmem:[%s1242 + $0x38] sm:$0xff]
        %v1259 = vunpack.c.l.b16 %v1243
        %v1260 = vunpack.c.h.b16 %v1243
        %v1261 = vunpack.c.l.b16 %v1244
        %v1262 = vunpack.c.h.b16 %v1244
        %v1263 = vunpack.c.l.b16 %v1245
        %v1264 = vunpack.c.h.b16 %v1245
        %v1265 = vunpack.c.l.b16 %v1246
        %v1266 = vunpack.c.h.b16 %v1246
        %v1267 = vunpack.c.l.b16 %v1247
        %v1268 = vunpack.c.h.b16 %v1247
        %v1269 = vunpack.c.l.b16 %v1248
        %v1270 = vunpack.c.h.b16 %v1248
        %v1271 = vunpack.c.l.b16 %v1249
        %v1272 = vunpack.c.h.b16 %v1249
        %v1273 = vunpack.c.l.b16 %v1250
        %v1274 = vunpack.c.h.b16 %v1250
        %v1275 = vpack.c.b16 %v1261, %v1259
        %v1276 = vpack.c.b16 %v1262, %v1260
        %v1277 = vpack.c.b16 %v1265, %v1263
        %v1278 = vpack.c.b16 %v1266, %v1264
        %v1279 = vpack.c.b16 %v1269, %v1267
        %v1280 = vpack.c.b16 %v1270, %v1268
        %v1281 = vpack.c.b16 %v1273, %v1271
        %v1282 = vpack.c.b16 %v1274, %v1272
        %1291 = vmatprep.subr.bf16.mxu0 0
        %1292 = vmatpush1.bf16.msra.mxu0 %v772
        %1293 = vmatprep.subr.bf16.mxu0 0
        %1294 = vmatpush1.bf16.msra.mxu0 %v773
        %1295 = vmatprep.subr.bf16.mxu0 0
        %1296 = vmatpush1.bf16.msra.mxu0 %v774
        %1297 = vmatprep.subr.bf16.mxu0 0
        %1298 = vmatpush1.bf16.msra.mxu0 %v775
        %1299 = vmatprep.subr.bf16.mxu0 0
        %1300 = vmatpush1.bf16.msra.mxu0 %v776
        %1301 = vmatprep.subr.bf16.mxu0 0
        %1302 = vmatpush1.bf16.msra.mxu0 %v777
        %1303 = vmatprep.subr.bf16.mxu0 0
        %1304 = vmatpush1.bf16.msra.mxu0 %v778
        %1305 = vmatprep.subr.bf16.mxu0 0
        %1306 = vmatpush1.bf16.msra.mxu0 %v779
        %1307 = vmatprep.subr.bf16.mxu0 0
        %1308 = vmatpush1.bf16.msra.mxu0 %v780
        %1309 = vmatprep.subr.bf16.mxu0 0
        %1310 = vmatpush1.bf16.msra.mxu0 %v781
        %1311 = vmatprep.subr.bf16.mxu0 0
        %1312 = vmatpush1.bf16.msra.mxu0 %v782
        %1313 = vmatprep.subr.bf16.mxu0 0
        %1314 = vmatpush1.bf16.msra.mxu0 %v783
        %1315 = vmatprep.subr.bf16.mxu0 0
        %1316 = vmatpush1.bf16.msra.mxu0 %v784
        %1317 = vmatprep.subr.bf16.mxu0 0
        %1318 = vmatpush1.bf16.msra.mxu0 %v785
        %1319 = vmatprep.subr.bf16.mxu0 0
        %1320 = vmatpush1.bf16.msra.mxu0 %v786
        %1321 = vmatprep.subr.bf16.mxu0 0
        %1322 = vmatpush1.bf16.msra.mxu0 %v787
        %1323 = vmatprep.mubr.bf16.mxu0 %v1276
        %1324 = vmatmul.mubr.bf16.gmra.mrb[0].mxu0 %v1275
        %v1325 = vpop.f32.mrb[0].mxu0
        %v1326 = vadd.f32 0.0, %v1325
        %v1327 = vpop.f32.mrb[0].mxu0
        %v1328 = vpop.f32.mrb[0].mxu0
        %v1329 = vadd.f32 0.0, %v1328
        %v1330 = vpop.f32.mrb[0].mxu0
        %1331 = vmatprep.mubr.bf16.mxu0 %v1278
        %1332 = vmatmul.mubr.bf16.gmra.mrb[0].mxu0 %v1277
        %v1333 = vpop.f32.mrb[0].mxu0
        %v1334 = vadd.f32 0.0, %v1333
        %v1335 = vpop.f32.mrb[0].mxu0
        %v1336 = vpop.f32.mrb[0].mxu0
        %v1337 = vadd.f32 0.0, %v1336
        %v1338 = vpop.f32.mrb[0].mxu0
        %1339 = vmatprep.mubr.bf16.mxu0 %v1280
        %1340 = vmatmul.mubr.bf16.gmra.mrb[0].mxu0 %v1279
        %v1341 = vpop.f32.mrb[0].mxu0
        %v1342 = vadd.f32 0.0, %v1341
        %v1343 = vpop.f32.mrb[0].mxu0
        %v1344 = vpop.f32.mrb[0].mxu0
        %v1345 = vadd.f32 0.0, %v1344
        %v1346 = vpop.f32.mrb[0].mxu0
        %1347 = vmatprep.mubr.bf16.mxu0 %v1282
        %1348 = vmatmul.mubr.bf16.gmra.mrb[0].mxu0 %v1281
        %v1349 = vpop.f32.mrb[0].mxu0
        %v1350 = vadd.f32 0.0, %v1349
        %v1351 = vpop.f32.mrb[0].mxu0
        %v1352 = vpop.f32.mrb[0].mxu0
        %v1353 = vadd.f32 0.0, %v1352
        %v1354 = vpop.f32.mrb[0].mxu0
        %1355 = vdwg.mxu0
        %v1356 = vpack.c.bf16 %v1329, %v1326
        %v1357 = vpack.c.bf16 %v1337, %v1334
        %v1358 = vpack.c.bf16 %v1345, %v1342
        %v1359 = vpack.c.bf16 %v1353, %v1350
        %s1360 = scalar_lea.vmem %s5, 64
        %v1361 = vld [vmem:[%s1360] sm:$0xf]
        %v1362 = vld [vmem:[%s1360 + $0x4] sm:$0xf]
        %v1363 = vld [vmem:[%s1360 + $0x8] sm:$0xf]
        %v1364 = vld [vmem:[%s1360 + $0xc] sm:$0xf]
        %v1365 = vld [vmem:[%s1360 + $0x10] sm:$0xf]
        %v1366 = vld [vmem:[%s1360 + $0x14] sm:$0xf]
        %v1367 = vld [vmem:[%s1360 + $0x18] sm:$0xf]
        %v1368 = vld [vmem:[%s1360 + $0x1c] sm:$0xf]
        %v1377 = vunpack.c.l.b16 %v1361
        %v1378 = vunpack.c.l.b16 %v1362
        %v1379 = vunpack.c.l.b16 %v1363
        %v1380 = vunpack.c.l.b16 %v1364
        %v1381 = vunpack.c.l.b16 %v1365
        %v1382 = vunpack.c.l.b16 %v1366
        %v1383 = vunpack.c.l.b16 %v1367
        %v1384 = vunpack.c.l.b16 %v1368
        %v1385 = vpack.c.b16 %v1378, %v1377
        %v1386 = vpack.c.b16 %v1380, %v1379
        %v1387 = vpack.c.b16 %v1382, %v1381
        %v1388 = vpack.c.b16 %v1384, %v1383
        %v1394 = vsel %vm530, %v1356, 0
        %v1397 = vsel %vm530, %v1357, 0
        %v1400 = vsel %vm530, %v1358, 0
        %v1403 = vsel %vm530, %v1359, 0
        %1405 = vmatprep.subr.bf16.mxu0 0
        %1406 = vmatpush1.bf16.msra.mxu0 %v1385
        %1407 = vmatprep.subr.bf16.mxu0 0
        %1408 = vmatpush1.bf16.msra.mxu0 %v1386
        %1409 = vmatprep.subr.bf16.mxu0 0
        %1410 = vmatpush1.bf16.msra.mxu0 %v1387
        %1411 = vmatprep.subr.bf16.mxu0 0
        %1412 = vmatpush1.bf16.msra.mxu0 %v1388
        %1413 = vmatprep.subr.bf16.mxu0 0
        %1414 = vmatpush1.bf16.msra.mxu0 0
        %1415 = vmatprep.subr.bf16.mxu0 0
        %1416 = vmatpush1.bf16.msra.mxu0 0
        %1417 = vmatprep.subr.bf16.mxu0 0
        %1418 = vmatpush1.bf16.msra.mxu0 0
        %1419 = vmatprep.subr.bf16.mxu0 0
        %1420 = vmatpush1.bf16.msra.mxu0 0
        %1421 = vmatprep.subr.bf16.mxu0 0
        %1422 = vmatpush1.bf16.msra.mxu0 0
        %1423 = vmatprep.subr.bf16.mxu0 0
        %1424 = vmatpush1.bf16.msra.mxu0 0
        %1425 = vmatprep.subr.bf16.mxu0 0
        %1426 = vmatpush1.bf16.msra.mxu0 0
        %1427 = vmatprep.subr.bf16.mxu0 0
        %1428 = vmatpush1.bf16.msra.mxu0 0
        %1429 = vmatprep.subr.bf16.mxu0 0
        %1430 = vmatpush1.bf16.msra.mxu0 0
        %1431 = vmatprep.subr.bf16.mxu0 0
        %1432 = vmatpush1.bf16.msra.mxu0 0
        %1433 = vmatprep.subr.bf16.mxu0 0
        %1434 = vmatpush1.bf16.msra.mxu0 0
        %1435 = vmatprep.subr.bf16.mxu0 0
        %1436 = vmatpush1.bf16.msra.mxu0 0
        %1437 = vmatprep.mubr.bf16.mxu0 0
        %1438 = vmatmul.mubr.bf16.gmra.mrb[0].mxu0 %v1394
        %v1439 = vpop.f32.mrb[0].mxu0
        %v1440 = vadd.f32 0.0, %v1439
        %v1441 = vpop.f32.mrb[0].mxu0
        %v1442 = vpop.f32.mrb[0].mxu0
        %v1443 = vadd.f32 0.0, %v1442
        %v1444 = vpop.f32.mrb[0].mxu0
        %1445 = vmatprep.mubr.bf16.mxu0 0
        %1446 = vmatmul.mubr.bf16.gmra.mrb[0].mxu0 %v1397
        %v1447 = vpop.f32.mrb[0].mxu0
        %v1448 = vadd.f32 0.0, %v1447
        %v1449 = vpop.f32.mrb[0].mxu0
        %v1450 = vpop.f32.mrb[0].mxu0
        %v1451 = vadd.f32 0.0, %v1450
        %v1452 = vpop.f32.mrb[0].mxu0
        %1453 = vmatprep.mubr.bf16.mxu0 0
        %1454 = vmatmul.mubr.bf16.gmra.mrb[0].mxu0 %v1400
        %v1455 = vpop.f32.mrb[0].mxu0
        %v1456 = vadd.f32 0.0, %v1455
        %v1457 = vpop.f32.mrb[0].mxu0
        %v1458 = vpop.f32.mrb[0].mxu0
        %v1459 = vadd.f32 0.0, %v1458
        %v1460 = vpop.f32.mrb[0].mxu0
        %1461 = vmatprep.mubr.bf16.mxu0 0
        %1462 = vmatmul.mubr.bf16.gmra.mrb[0].mxu0 %v1403
        %v1463 = vpop.f32.mrb[0].mxu0
        %v1464 = vadd.f32 0.0, %v1463
        %v1465 = vpop.f32.mrb[0].mxu0
        %v1466 = vpop.f32.mrb[0].mxu0
        %v1467 = vadd.f32 0.0, %v1466
        %v1468 = vpop.f32.mrb[0].mxu0
        %1469 = vdwg.mxu0
        %v1470 = vadd.f32 %v1212, %v1440
        %v1471 = vadd.f32 %v1215, %v1443
        %v1472 = vadd.f32 %v1220, %v1448
        %v1473 = vadd.f32 %v1223, %v1451
        %v1474 = vadd.f32 %v1228, %v1456
        %v1475 = vadd.f32 %v1231, %v1459
        %v1476 = vadd.f32 %v1236, %v1464
        %v1477 = vadd.f32 %v1239, %v1467
        %s1478 = scalar_lea.vmem %s2, 192
        %v1479 = vld [vmem:[%s1478] sm:$0xff]
        %v1480 = vld [vmem:[%s1478 + $0x8] sm:$0xff]
        %v1481 = vld [vmem:[%s1478 + $0x10] sm:$0xff]
        %v1482 = vld [vmem:[%s1478 + $0x18] sm:$0xff]
        %v1483 = vld [vmem:[%s1478 + $0x20] sm:$0xff]
        %v1484 = vld [vmem:[%s1478 + $0x28] sm:$0xff]
        %v1485 = vld [vmem:[%s1478 + $0x30] sm:$0xff]
        %v1486 = vld [vmem:[%s1478 + $0x38] sm:$0xff]
        %v1495 = vunpack.c.l.b16 %v1479
        %v1496 = vunpack.c.h.b16 %v1479
        %v1497 = vunpack.c.l.b16 %v1480
        %v1498 = vunpack.c.h.b16 %v1480
        %v1499 = vunpack.c.l.b16 %v1481
        %v1500 = vunpack.c.h.b16 %v1481
        %v1501 = vunpack.c.l.b16 %v1482
        %v1502 = vunpack.c.h.b16 %v1482
        %v1503 = vunpack.c.l.b16 %v1483
        %v1504 = vunpack.c.h.b16 %v1483
        %v1505 = vunpack.c.l.b16 %v1484
        %v1506 = vunpack.c.h.b16 %v1484
        %v1507 = vunpack.c.l.b16 %v1485
        %v1508 = vunpack.c.h.b16 %v1485
        %v1509 = vunpack.c.l.b16 %v1486
        %v1510 = vunpack.c.h.b16 %v1486
        %v1511 = vpack.c.b16 %v1497, %v1495
        %v1512 = vpack.c.b16 %v1498, %v1496
        %v1513 = vpack.c.b16 %v1501, %v1499
        %v1514 = vpack.c.b16 %v1502, %v1500
        %v1515 = vpack.c.b16 %v1505, %v1503
        %v1516 = vpack.c.b16 %v1506, %v1504
        %v1517 = vpack.c.b16 %v1509, %v1507
        %v1518 = vpack.c.b16 %v1510, %v1508
        %1527 = vmatprep.subr.bf16.mxu0 0
        %1528 = vmatpush1.bf16.msra.mxu0 %v772
        %1529 = vmatprep.subr.bf16.mxu0 0
        %1530 = vmatpush1.bf16.msra.mxu0 %v773
        %1531 = vmatprep.subr.bf16.mxu0 0
        %1532 = vmatpush1.bf16.msra.mxu0 %v774
        %1533 = vmatprep.subr.bf16.mxu0 0
        %1534 = vmatpush1.bf16.msra.mxu0 %v775
        %1535 = vmatprep.subr.bf16.mxu0 0
        %1536 = vmatpush1.bf16.msra.mxu0 %v776
        %1537 = vmatprep.subr.bf16.mxu0 0
        %1538 = vmatpush1.bf16.msra.mxu0 %v777
        %1539 = vmatprep.subr.bf16.mxu0 0
        %1540 = vmatpush1.bf16.msra.mxu0 %v778
        %1541 = vmatprep.subr.bf16.mxu0 0
        %1542 = vmatpush1.bf16.msra.mxu0 %v779
        %1543 = vmatprep.subr.bf16.mxu0 0
        %1544 = vmatpush1.bf16.msra.mxu0 %v780
        %1545 = vmatprep.subr.bf16.mxu0 0
        %1546 = vmatpush1.bf16.msra.mxu0 %v781
        %1547 = vmatprep.subr.bf16.mxu0 0
        %1548 = vmatpush1.bf16.msra.mxu0 %v782
        %1549 = vmatprep.subr.bf16.mxu0 0
        %1550 = vmatpush1.bf16.msra.mxu0 %v783
        %1551 = vmatprep.subr.bf16.mxu0 0
        %1552 = vmatpush1.bf16.msra.mxu0 %v784
        %1553 = vmatprep.subr.bf16.mxu0 0
        %1554 = vmatpush1.bf16.msra.mxu0 %v785
        %1555 = vmatprep.subr.bf16.mxu0 0
        %1556 = vmatpush1.bf16.msra.mxu0 %v786
        %1557 = vmatprep.subr.bf16.mxu0 0
        %1558 = vmatpush1.bf16.msra.mxu0 %v787
        %1559 = vmatprep.mubr.bf16.mxu0 %v1512
        %1560 = vmatmul.mubr.bf16.gmra.mrb[0].mxu0 %v1511
        %v1561 = vpop.f32.mrb[0].mxu0
        %v1562 = vadd.f32 0.0, %v1561
        %v1563 = vpop.f32.mrb[0].mxu0
        %v1564 = vpop.f32.mrb[0].mxu0
        %v1565 = vadd.f32 0.0, %v1564
        %v1566 = vpop.f32.mrb[0].mxu0
        %1567 = vmatprep.mubr.bf16.mxu0 %v1514
        %1568 = vmatmul.mubr.bf16.gmra.mrb[0].mxu0 %v1513
        %v1569 = vpop.f32.mrb[0].mxu0
        %v1570 = vadd.f32 0.0, %v1569
        %v1571 = vpop.f32.mrb[0].mxu0
        %v1572 = vpop.f32.mrb[0].mxu0
        %v1573 = vadd.f32 0.0, %v1572
        %v1574 = vpop.f32.mrb[0].mxu0
        %1575 = vmatprep.mubr.bf16.mxu0 %v1516
        %1576 = vmatmul.mubr.bf16.gmra.mrb[0].mxu0 %v1515
        %v1577 = vpop.f32.mrb[0].mxu0
        %v1578 = vadd.f32 0.0, %v1577
        %v1579 = vpop.f32.mrb[0].mxu0
        %v1580 = vpop.f32.mrb[0].mxu0
        %v1581 = vadd.f32 0.0, %v1580
        %v1582 = vpop.f32.mrb[0].mxu0
        %1583 = vmatprep.mubr.bf16.mxu0 %v1518
        %1584 = vmatmul.mubr.bf16.gmra.mrb[0].mxu0 %v1517
        %v1585 = vpop.f32.mrb[0].mxu0
        %v1586 = vadd.f32 0.0, %v1585
        %v1587 = vpop.f32.mrb[0].mxu0
        %v1588 = vpop.f32.mrb[0].mxu0
        %v1589 = vadd.f32 0.0, %v1588
        %v1590 = vpop.f32.mrb[0].mxu0
        %1591 = vdwg.mxu0
        %v1592 = vpack.c.bf16 %v1565, %v1562
        %v1593 = vpack.c.bf16 %v1573, %v1570
        %v1594 = vpack.c.bf16 %v1581, %v1578
        %v1595 = vpack.c.bf16 %v1589, %v1586
        %s1596 = scalar_lea.vmem %s5, 96
        %v1597 = vld [vmem:[%s1596] sm:$0xf]
        %v1598 = vld [vmem:[%s1596 + $0x4] sm:$0xf]
        %v1599 = vld [vmem:[%s1596 + $0x8] sm:$0xf]
        %v1600 = vld [vmem:[%s1596 + $0xc] sm:$0xf]
        %v1601 = vld [vmem:[%s1596 + $0x10] sm:$0xf]
        %v1602 = vld [vmem:[%s1596 + $0x14] sm:$0xf]
        %v1603 = vld [vmem:[%s1596 + $0x18] sm:$0xf]
        %v1604 = vld [vmem:[%s1596 + $0x1c] sm:$0xf]
        %v1613 = vunpack.c.l.b16 %v1597
        %v1614 = vunpack.c.l.b16 %v1598
        %v1615 = vunpack.c.l.b16 %v1599
        %v1616 = vunpack.c.l.b16 %v1600
        %v1617 = vunpack.c.l.b16 %v1601
        %v1618 = vunpack.c.l.b16 %v1602
        %v1619 = vunpack.c.l.b16 %v1603
        %v1620 = vunpack.c.l.b16 %v1604
        %v1621 = vpack.c.b16 %v1614, %v1613
        %v1622 = vpack.c.b16 %v1616, %v1615
        %v1623 = vpack.c.b16 %v1618, %v1617
        %v1624 = vpack.c.b16 %v1620, %v1619
        %v1630 = vsel %vm530, %v1592, 0
        %v1633 = vsel %vm530, %v1593, 0
        %v1636 = vsel %vm530, %v1594, 0
        %v1639 = vsel %vm530, %v1595, 0
        %1641 = vmatprep.subr.bf16.mxu0 0
        %1642 = vmatpush1.bf16.msra.mxu0 %v1621
        %1643 = vmatprep.subr.bf16.mxu0 0
        %1644 = vmatpush1.bf16.msra.mxu0 %v1622
        %1645 = vmatprep.subr.bf16.mxu0 0
        %1646 = vmatpush1.bf16.msra.mxu0 %v1623
        %1647 = vmatprep.subr.bf16.mxu0 0
        %1648 = vmatpush1.bf16.msra.mxu0 %v1624
        %1649 = vmatprep.subr.bf16.mxu0 0
        %1650 = vmatpush1.bf16.msra.mxu0 0
        %1651 = vmatprep.subr.bf16.mxu0 0
        %1652 = vmatpush1.bf16.msra.mxu0 0
        %1653 = vmatprep.subr.bf16.mxu0 0
        %1654 = vmatpush1.bf16.msra.mxu0 0
        %1655 = vmatprep.subr.bf16.mxu0 0
        %1656 = vmatpush1.bf16.msra.mxu0 0
        %1657 = vmatprep.subr.bf16.mxu0 0
        %1658 = vmatpush1.bf16.msra.mxu0 0
        %1659 = vmatprep.subr.bf16.mxu0 0
        %1660 = vmatpush1.bf16.msra.mxu0 0
        %1661 = vmatprep.subr.bf16.mxu0 0
        %1662 = vmatpush1.bf16.msra.mxu0 0
        %1663 = vmatprep.subr.bf16.mxu0 0
        %1664 = vmatpush1.bf16.msra.mxu0 0
        %1665 = vmatprep.subr.bf16.mxu0 0
        %1666 = vmatpush1.bf16.msra.mxu0 0
        %1667 = vmatprep.subr.bf16.mxu0 0
        %1668 = vmatpush1.bf16.msra.mxu0 0
        %1669 = vmatprep.subr.bf16.mxu0 0
        %1670 = vmatpush1.bf16.msra.mxu0 0
        %1671 = vmatprep.subr.bf16.mxu0 0
        %1672 = vmatpush1.bf16.msra.mxu0 0
        %1673 = vmatprep.mubr.bf16.mxu0 0
        %1674 = vmatmul.mubr.bf16.gmra.mrb[0].mxu0 %v1630
        %v1675 = vpop.f32.mrb[0].mxu0
        %v1676 = vadd.f32 0.0, %v1675
        %v1677 = vpop.f32.mrb[0].mxu0
        %v1678 = vpop.f32.mrb[0].mxu0
        %v1679 = vadd.f32 0.0, %v1678
        %v1680 = vpop.f32.mrb[0].mxu0
        %1681 = vmatprep.mubr.bf16.mxu0 0
        %1682 = vmatmul.mubr.bf16.gmra.mrb[0].mxu0 %v1633
        %v1683 = vpop.f32.mrb[0].mxu0
        %v1684 = vadd.f32 0.0, %v1683
        %v1685 = vpop.f32.mrb[0].mxu0
        %v1686 = vpop.f32.mrb[0].mxu0
        %v1687 = vadd.f32 0.0, %v1686
        %v1688 = vpop.f32.mrb[0].mxu0
        %1689 = vmatprep.mubr.bf16.mxu0 0
        %1690 = vmatmul.mubr.bf16.gmra.mrb[0].mxu0 %v1636
        %v1691 = vpop.f32.mrb[0].mxu0
        %v1692 = vadd.f32 0.0, %v1691
        %v1693 = vpop.f32.mrb[0].mxu0
        %v1694 = vpop.f32.mrb[0].mxu0
        %v1695 = vadd.f32 0.0, %v1694
        %v1696 = vpop.f32.mrb[0].mxu0
        %1697 = vmatprep.mubr.bf16.mxu0 0
        %1698 = vmatmul.mubr.bf16.gmra.mrb[0].mxu0 %v1639
        %v1699 = vpop.f32.mrb[0].mxu0
        %v1700 = vadd.f32 0.0, %v1699
        %v1701 = vpop.f32.mrb[0].mxu0
        %v1702 = vpop.f32.mrb[0].mxu0
        %v1703 = vadd.f32 0.0, %v1702
        %v1704 = vpop.f32.mrb[0].mxu0
        %1705 = vdwg.mxu0
        %v1706 = vadd.f32 %v1470, %v1676
        %v1707 = vadd.f32 %v1471, %v1679
        %v1708 = vadd.f32 %v1472, %v1684
        %v1709 = vadd.f32 %v1473, %v1687
        %v1710 = vadd.f32 %v1474, %v1692
        %v1711 = vadd.f32 %v1475, %v1695
        %v1712 = vadd.f32 %v1476, %v1700
        %v1713 = vadd.f32 %v1477, %v1703
        %s1714 = scalar_lea.vmem %s2, 256
        %v1715 = vld [vmem:[%s1714] sm:$0xff]
        %v1716 = vld [vmem:[%s1714 + $0x8] sm:$0xff]
        %v1717 = vld [vmem:[%s1714 + $0x10] sm:$0xff]
        %v1718 = vld [vmem:[%s1714 + $0x18] sm:$0xff]
        %v1719 = vld [vmem:[%s1714 + $0x20] sm:$0xff]
        %v1720 = vld [vmem:[%s1714 + $0x28] sm:$0xff]
        %v1721 = vld [vmem:[%s1714 + $0x30] sm:$0xff]
        %v1722 = vld [vmem:[%s1714 + $0x38] sm:$0xff]
        %v1731 = vunpack.c.l.b16 %v1715
        %v1732 = vunpack.c.h.b16 %v1715
        %v1733 = vunpack.c.l.b16 %v1716
        %v1734 = vunpack.c.h.b16 %v1716
        %v1735 = vunpack.c.l.b16 %v1717
        %v1736 = vunpack.c.h.b16 %v1717
        %v1737 = vunpack.c.l.b16 %v1718
        %v1738 = vunpack.c.h.b16 %v1718
        %v1739 = vunpack.c.l.b16 %v1719
        %v1740 = vunpack.c.h.b16 %v1719
        %v1741 = vunpack.c.l.b16 %v1720
        %v1742 = vunpack.c.h.b16 %v1720
        %v1743 = vunpack.c.l.b16 %v1721
        %v1744 = vunpack.c.h.b16 %v1721
        %v1745 = vunpack.c.l.b16 %v1722
        %v1746 = vunpack.c.h.b16 %v1722
        %v1747 = vpack.c.b16 %v1733, %v1731
        %v1748 = vpack.c.b16 %v1734, %v1732
        %v1749 = vpack.c.b16 %v1737, %v1735
        %v1750 = vpack.c.b16 %v1738, %v1736
        %v1751 = vpack.c.b16 %v1741, %v1739
        %v1752 = vpack.c.b16 %v1742, %v1740
        %v1753 = vpack.c.b16 %v1745, %v1743
        %v1754 = vpack.c.b16 %v1746, %v1744
        %1763 = vmatprep.subr.bf16.mxu0 0
        %1764 = vmatpush1.bf16.msra.mxu0 %v772
        %1765 = vmatprep.subr.bf16.mxu0 0
        %1766 = vmatpush1.bf16.msra.mxu0 %v773
        %1767 = vmatprep.subr.bf16.mxu0 0
        %1768 = vmatpush1.bf16.msra.mxu0 %v774
        %1769 = vmatprep.subr.bf16.mxu0 0
        %1770 = vmatpush1.bf16.msra.mxu0 %v775
        %1771 = vmatprep.subr.bf16.mxu0 0
        %1772 = vmatpush1.bf16.msra.mxu0 %v776
        %1773 = vmatprep.subr.bf16.mxu0 0
        %1774 = vmatpush1.bf16.msra.mxu0 %v777
        %1775 = vmatprep.subr.bf16.mxu0 0
        %1776 = vmatpush1.bf16.msra.mxu0 %v778
        %1777 = vmatprep.subr.bf16.mxu0 0
        %1778 = vmatpush1.bf16.msra.mxu0 %v779
        %1779 = vmatprep.subr.bf16.mxu0 0
        %1780 = vmatpush1.bf16.msra.mxu0 %v780
        %1781 = vmatprep.subr.bf16.mxu0 0
        %1782 = vmatpush1.bf16.msra.mxu0 %v781
        %1783 = vmatprep.subr.bf16.mxu0 0
        %1784 = vmatpush1.bf16.msra.mxu0 %v782
        %1785 = vmatprep.subr.bf16.mxu0 0
        %1786 = vmatpush1.bf16.msra.mxu0 %v783
        %1787 = vmatprep.subr.bf16.mxu0 0
        %1788 = vmatpush1.bf16.msra.mxu0 %v784
        %1789 = vmatprep.subr.bf16.mxu0 0
        %1790 = vmatpush1.bf16.msra.mxu0 %v785
        %1791 = vmatprep.subr.bf16.mxu0 0
        %1792 = vmatpush1.bf16.msra.mxu0 %v786
        %1793 = vmatprep.subr.bf16.mxu0 0
        %1794 = vmatpush1.bf16.msra.mxu0 %v787
        %1795 = vmatprep.mubr.bf16.mxu0 %v1748
        %1796 = vmatmul.mubr.bf16.gmra.mrb[0].mxu0 %v1747
        %v1797 = vpop.f32.mrb[0].mxu0
        %v1798 = vadd.f32 0.0, %v1797
        %v1799 = vpop.f32.mrb[0].mxu0
        %v1800 = vpop.f32.mrb[0].mxu0
        %v1801 = vadd.f32 0.0, %v1800
        %v1802 = vpop.f32.mrb[0].mxu0
        %1803 = vmatprep.mubr.bf16.mxu0 %v1750
        %1804 = vmatmul.mubr.bf16.gmra.mrb[0].mxu0 %v1749
        %v1805 = vpop.f32.mrb[0].mxu0
        %v1806 = vadd.f32 0.0, %v1805
        %v1807 = vpop.f32.mrb[0].mxu0
        %v1808 = vpop.f32.mrb[0].mxu0
        %v1809 = vadd.f32 0.0, %v1808
        %v1810 = vpop.f32.mrb[0].mxu0
        %1811 = vmatprep.mubr.bf16.mxu0 %v1752
        %1812 = vmatmul.mubr.bf16.gmra.mrb[0].mxu0 %v1751
        %v1813 = vpop.f32.mrb[0].mxu0
        %v1814 = vadd.f32 0.0, %v1813
        %v1815 = vpop.f32.mrb[0].mxu0
        %v1816 = vpop.f32.mrb[0].mxu0
        %v1817 = vadd.f32 0.0, %v1816
        %v1818 = vpop.f32.mrb[0].mxu0
        %1819 = vmatprep.mubr.bf16.mxu0 %v1754
        %1820 = vmatmul.mubr.bf16.gmra.mrb[0].mxu0 %v1753
        %v1821 = vpop.f32.mrb[0].mxu0
        %v1822 = vadd.f32 0.0, %v1821
        %v1823 = vpop.f32.mrb[0].mxu0
        %v1824 = vpop.f32.mrb[0].mxu0
        %v1825 = vadd.f32 0.0, %v1824
        %v1826 = vpop.f32.mrb[0].mxu0
        %1827 = vdwg.mxu0
        %v1828 = vpack.c.bf16 %v1801, %v1798
        %v1829 = vpack.c.bf16 %v1809, %v1806
        %v1830 = vpack.c.bf16 %v1817, %v1814
        %v1831 = vpack.c.bf16 %v1825, %v1822
        %s1832 = scalar_lea.vmem %s5, 128
        %v1833 = vld [vmem:[%s1832] sm:$0xf]
        %v1834 = vld [vmem:[%s1832 + $0x4] sm:$0xf]
        %v1835 = vld [vmem:[%s1832 + $0x8] sm:$0xf]
        %v1836 = vld [vmem:[%s1832 + $0xc] sm:$0xf]
        %v1837 = vld [vmem:[%s1832 + $0x10] sm:$0xf]
        %v1838 = vld [vmem:[%s1832 + $0x14] sm:$0xf]
        %v1839 = vld [vmem:[%s1832 + $0x18] sm:$0xf]
        %v1840 = vld [vmem:[%s1832 + $0x1c] sm:$0xf]
        %v1849 = vunpack.c.l.b16 %v1833
        %v1850 = vunpack.c.l.b16 %v1834
        %v1851 = vunpack.c.l.b16 %v1835
        %v1852 = vunpack.c.l.b16 %v1836
        %v1853 = vunpack.c.l.b16 %v1837
        %v1854 = vunpack.c.l.b16 %v1838
        %v1855 = vunpack.c.l.b16 %v1839
        %v1856 = vunpack.c.l.b16 %v1840
        %v1857 = vpack.c.b16 %v1850, %v1849
        %v1858 = vpack.c.b16 %v1852, %v1851
        %v1859 = vpack.c.b16 %v1854, %v1853
        %v1860 = vpack.c.b16 %v1856, %v1855
        %v1866 = vsel %vm530, %v1828, 0
        %v1869 = vsel %vm530, %v1829, 0
        %v1872 = vsel %vm530, %v1830, 0
        %v1875 = vsel %vm530, %v1831, 0
        %1877 = vmatprep.subr.bf16.mxu0 0
        %1878 = vmatpush1.bf16.msra.mxu0 %v1857
        %1879 = vmatprep.subr.bf16.mxu0 0
        %1880 = vmatpush1.bf16.msra.mxu0 %v1858
        %1881 = vmatprep.subr.bf16.mxu0 0
        %1882 = vmatpush1.bf16.msra.mxu0 %v1859
        %1883 = vmatprep.subr.bf16.mxu0 0
        %1884 = vmatpush1.bf16.msra.mxu0 %v1860
        %1885 = vmatprep.subr.bf16.mxu0 0
        %1886 = vmatpush1.bf16.msra.mxu0 0
        %1887 = vmatprep.subr.bf16.mxu0 0
        %1888 = vmatpush1.bf16.msra.mxu0 0
        %1889 = vmatprep.subr.bf16.mxu0 0
        %1890 = vmatpush1.bf16.msra.mxu0 0
        %1891 = vmatprep.subr.bf16.mxu0 0
        %1892 = vmatpush1.bf16.msra.mxu0 0
        %1893 = vmatprep.subr.bf16.mxu0 0
        %1894 = vmatpush1.bf16.msra.mxu0 0
        %1895 = vmatprep.subr.bf16.mxu0 0
        %1896 = vmatpush1.bf16.msra.mxu0 0
        %1897 = vmatprep.subr.bf16.mxu0 0
        %1898 = vmatpush1.bf16.msra.mxu0 0
        %1899 = vmatprep.subr.bf16.mxu0 0
        %1900 = vmatpush1.bf16.msra.mxu0 0
        %1901 = vmatprep.subr.bf16.mxu0 0
        %1902 = vmatpush1.bf16.msra.mxu0 0
        %1903 = vmatprep.subr.bf16.mxu0 0
        %1904 = vmatpush1.bf16.msra.mxu0 0
        %1905 = vmatprep.subr.bf16.mxu0 0
        %1906 = vmatpush1.bf16.msra.mxu0 0
        %1907 = vmatprep.subr.bf16.mxu0 0
        %1908 = vmatpush1.bf16.msra.mxu0 0
        %1909 = vmatprep.mubr.bf16.mxu0 0
        %1910 = vmatmul.mubr.bf16.gmra.mrb[0].mxu0 %v1866
        %v1911 = vpop.f32.mrb[0].mxu0
        %v1912 = vadd.f32 0.0, %v1911
        %v1913 = vpop.f32.mrb[0].mxu0
        %v1914 = vpop.f32.mrb[0].mxu0
        %v1915 = vadd.f32 0.0, %v1914
        %v1916 = vpop.f32.mrb[0].mxu0
        %1917 = vmatprep.mubr.bf16.mxu0 0
        %1918 = vmatmul.mubr.bf16.gmra.mrb[0].mxu0 %v1869
        %v1919 = vpop.f32.mrb[0].mxu0
        %v1920 = vadd.f32 0.0, %v1919
        %v1921 = vpop.f32.mrb[0].mxu0
        %v1922 = vpop.f32.mrb[0].mxu0
        %v1923 = vadd.f32 0.0, %v1922
        %v1924 = vpop.f32.mrb[0].mxu0
        %1925 = vmatprep.mubr.bf16.mxu0 0
        %1926 = vmatmul.mubr.bf16.gmra.mrb[0].mxu0 %v1872
        %v1927 = vpop.f32.mrb[0].mxu0
        %v1928 = vadd.f32 0.0, %v1927
        %v1929 = vpop.f32.mrb[0].mxu0
        %v1930 = vpop.f32.mrb[0].mxu0
        %v1931 = vadd.f32 0.0, %v1930
        %v1932 = vpop.f32.mrb[0].mxu0
        %1933 = vmatprep.mubr.bf16.mxu0 0
        %1934 = vmatmul.mubr.bf16.gmra.mrb[0].mxu0 %v1875
        %v1935 = vpop.f32.mrb[0].mxu0
        %v1936 = vadd.f32 0.0, %v1935
        %v1937 = vpop.f32.mrb[0].mxu0
        %v1938 = vpop.f32.mrb[0].mxu0
        %v1939 = vadd.f32 0.0, %v1938
        %v1940 = vpop.f32.mrb[0].mxu0
        %1941 = vdwg.mxu0
        %v1942 = vadd.f32 %v1706, %v1912
        %v1943 = vadd.f32 %v1707, %v1915
        %v1944 = vadd.f32 %v1708, %v1920
        %v1945 = vadd.f32 %v1709, %v1923
        %v1946 = vadd.f32 %v1710, %v1928
        %v1947 = vadd.f32 %v1711, %v1931
        %v1948 = vadd.f32 %v1712, %v1936
        %v1949 = vadd.f32 %v1713, %v1939
        %s1950 = scalar_lea.vmem %s2, 320
        %v1951 = vld [vmem:[%s1950] sm:$0xff]
        %v1952 = vld [vmem:[%s1950 + $0x8] sm:$0xff]
        %v1953 = vld [vmem:[%s1950 + $0x10] sm:$0xff]
        %v1954 = vld [vmem:[%s1950 + $0x18] sm:$0xff]
        %v1955 = vld [vmem:[%s1950 + $0x20] sm:$0xff]
        %v1956 = vld [vmem:[%s1950 + $0x28] sm:$0xff]
        %v1957 = vld [vmem:[%s1950 + $0x30] sm:$0xff]
        %v1958 = vld [vmem:[%s1950 + $0x38] sm:$0xff]
        %v1967 = vunpack.c.l.b16 %v1951
        %v1968 = vunpack.c.h.b16 %v1951
        %v1969 = vunpack.c.l.b16 %v1952
        %v1970 = vunpack.c.h.b16 %v1952
        %v1971 = vunpack.c.l.b16 %v1953
        %v1972 = vunpack.c.h.b16 %v1953
        %v1973 = vunpack.c.l.b16 %v1954
        %v1974 = vunpack.c.h.b16 %v1954
        %v1975 = vunpack.c.l.b16 %v1955
        %v1976 = vunpack.c.h.b16 %v1955
        %v1977 = vunpack.c.l.b16 %v1956
        %v1978 = vunpack.c.h.b16 %v1956
        %v1979 = vunpack.c.l.b16 %v1957
        %v1980 = vunpack.c.h.b16 %v1957
        %v1981 = vunpack.c.l.b16 %v1958
        %v1982 = vunpack.c.h.b16 %v1958
        %v1983 = vpack.c.b16 %v1969, %v1967
        %v1984 = vpack.c.b16 %v1970, %v1968
        %v1985 = vpack.c.b16 %v1973, %v1971
        %v1986 = vpack.c.b16 %v1974, %v1972
        %v1987 = vpack.c.b16 %v1977, %v1975
        %v1988 = vpack.c.b16 %v1978, %v1976
        %v1989 = vpack.c.b16 %v1981, %v1979
        %v1990 = vpack.c.b16 %v1982, %v1980
        %1999 = vmatprep.subr.bf16.mxu0 0
        %2000 = vmatpush1.bf16.msra.mxu0 %v772
        %2001 = vmatprep.subr.bf16.mxu0 0
        %2002 = vmatpush1.bf16.msra.mxu0 %v773
        %2003 = vmatprep.subr.bf16.mxu0 0
        %2004 = vmatpush1.bf16.msra.mxu0 %v774
        %2005 = vmatprep.subr.bf16.mxu0 0
        %2006 = vmatpush1.bf16.msra.mxu0 %v775
        %2007 = vmatprep.subr.bf16.mxu0 0
        %2008 = vmatpush1.bf16.msra.mxu0 %v776
        %2009 = vmatprep.subr.bf16.mxu0 0
        %2010 = vmatpush1.bf16.msra.mxu0 %v777
        %2011 = vmatprep.subr.bf16.mxu0 0
        %2012 = vmatpush1.bf16.msra.mxu0 %v778
        %2013 = vmatprep.subr.bf16.mxu0 0
        %2014 = vmatpush1.bf16.msra.mxu0 %v779
        %2015 = vmatprep.subr.bf16.mxu0 0
        %2016 = vmatpush1.bf16.msra.mxu0 %v780
        %2017 = vmatprep.subr.bf16.mxu0 0
        %2018 = vmatpush1.bf16.msra.mxu0 %v781
        %2019 = vmatprep.subr.bf16.mxu0 0
        %2020 = vmatpush1.bf16.msra.mxu0 %v782
        %2021 = vmatprep.subr.bf16.mxu0 0
        %2022 = vmatpush1.bf16.msra.mxu0 %v783
        %2023 = vmatprep.subr.bf16.mxu0 0
        %2024 = vmatpush1.bf16.msra.mxu0 %v784
        %2025 = vmatprep.subr.bf16.mxu0 0
        %2026 = vmatpush1.bf16.msra.mxu0 %v785
        %2027 = vmatprep.subr.bf16.mxu0 0
        %2028 = vmatpush1.bf16.msra.mxu0 %v786
        %2029 = vmatprep.subr.bf16.mxu0 0
        %2030 = vmatpush1.bf16.msra.mxu0 %v787
        %2031 = vmatprep.mubr.bf16.mxu0 %v1984
        %2032 = vmatmul.mubr.bf16.gmra.mrb[0].mxu0 %v1983
        %v2033 = vpop.f32.mrb[0].mxu0
        %v2034 = vadd.f32 0.0, %v2033
        %v2035 = vpop.f32.mrb[0].mxu0
        %v2036 = vpop.f32.mrb[0].mxu0
        %v2037 = vadd.f32 0.0, %v2036
        %v2038 = vpop.f32.mrb[0].mxu0
        %2039 = vmatprep.mubr.bf16.mxu0 %v1986
        %2040 = vmatmul.mubr.bf16.gmra.mrb[0].mxu0 %v1985
        %v2041 = vpop.f32.mrb[0].mxu0
        %v2042 = vadd.f32 0.0, %v2041
        %v2043 = vpop.f32.mrb[0].mxu0
        %v2044 = vpop.f32.mrb[0].mxu0
        %v2045 = vadd.f32 0.0, %v2044
        %v2046 = vpop.f32.mrb[0].mxu0
        %2047 = vmatprep.mubr.bf16.mxu0 %v1988
        %2048 = vmatmul.mubr.bf16.gmra.mrb[0].mxu0 %v1987
        %v2049 = vpop.f32.mrb[0].mxu0
        %v2050 = vadd.f32 0.0, %v2049
        %v2051 = vpop.f32.mrb[0].mxu0
        %v2052 = vpop.f32.mrb[0].mxu0
        %v2053 = vadd.f32 0.0, %v2052
        %v2054 = vpop.f32.mrb[0].mxu0
        %2055 = vmatprep.mubr.bf16.mxu0 %v1990
        %2056 = vmatmul.mubr.bf16.gmra.mrb[0].mxu0 %v1989
        %v2057 = vpop.f32.mrb[0].mxu0
        %v2058 = vadd.f32 0.0, %v2057
        %v2059 = vpop.f32.mrb[0].mxu0
        %v2060 = vpop.f32.mrb[0].mxu0
        %v2061 = vadd.f32 0.0, %v2060
        %v2062 = vpop.f32.mrb[0].mxu0
        %2063 = vdwg.mxu0
        %v2064 = vpack.c.bf16 %v2037, %v2034
        %v2065 = vpack.c.bf16 %v2045, %v2042
        %v2066 = vpack.c.bf16 %v2053, %v2050
        %v2067 = vpack.c.bf16 %v2061, %v2058
        %s2068 = scalar_lea.vmem %s5, 160
        %v2069 = vld [vmem:[%s2068] sm:$0xf]
        %v2070 = vld [vmem:[%s2068 + $0x4] sm:$0xf]
        %v2071 = vld [vmem:[%s2068 + $0x8] sm:$0xf]
        %v2072 = vld [vmem:[%s2068 + $0xc] sm:$0xf]
        %v2073 = vld [vmem:[%s2068 + $0x10] sm:$0xf]
        %v2074 = vld [vmem:[%s2068 + $0x14] sm:$0xf]
        %v2075 = vld [vmem:[%s2068 + $0x18] sm:$0xf]
        %v2076 = vld [vmem:[%s2068 + $0x1c] sm:$0xf]
        %v2085 = vunpack.c.l.b16 %v2069
        %v2086 = vunpack.c.l.b16 %v2070
        %v2087 = vunpack.c.l.b16 %v2071
        %v2088 = vunpack.c.l.b16 %v2072
        %v2089 = vunpack.c.l.b16 %v2073
        %v2090 = vunpack.c.l.b16 %v2074
        %v2091 = vunpack.c.l.b16 %v2075
        %v2092 = vunpack.c.l.b16 %v2076
        %v2093 = vpack.c.b16 %v2086, %v2085
        %v2094 = vpack.c.b16 %v2088, %v2087
        %v2095 = vpack.c.b16 %v2090, %v2089
        %v2096 = vpack.c.b16 %v2092, %v2091
        %v2102 = vsel %vm530, %v2064, 0
        %v2105 = vsel %vm530, %v2065, 0
        %v2108 = vsel %vm530, %v2066, 0
        %v2111 = vsel %vm530, %v2067, 0
        %2113 = vmatprep.subr.bf16.mxu0 0
        %2114 = vmatpush1.bf16.msra.mxu0 %v2093
        %2115 = vmatprep.subr.bf16.mxu0 0
        %2116 = vmatpush1.bf16.msra.mxu0 %v2094
        %2117 = vmatprep.subr.bf16.mxu0 0
        %2118 = vmatpush1.bf16.msra.mxu0 %v2095
        %2119 = vmatprep.subr.bf16.mxu0 0
        %2120 = vmatpush1.bf16.msra.mxu0 %v2096
        %2121 = vmatprep.subr.bf16.mxu0 0
        %2122 = vmatpush1.bf16.msra.mxu0 0
        %2123 = vmatprep.subr.bf16.mxu0 0
        %2124 = vmatpush1.bf16.msra.mxu0 0
        %2125 = vmatprep.subr.bf16.mxu0 0
        %2126 = vmatpush1.bf16.msra.mxu0 0
        %2127 = vmatprep.subr.bf16.mxu0 0
        %2128 = vmatpush1.bf16.msra.mxu0 0
        %2129 = vmatprep.subr.bf16.mxu0 0
        %2130 = vmatpush1.bf16.msra.mxu0 0
        %2131 = vmatprep.subr.bf16.mxu0 0
        %2132 = vmatpush1.bf16.msra.mxu0 0
        %2133 = vmatprep.subr.bf16.mxu0 0
        %2134 = vmatpush1.bf16.msra.mxu0 0
        %2135 = vmatprep.subr.bf16.mxu0 0
        %2136 = vmatpush1.bf16.msra.mxu0 0
        %2137 = vmatprep.subr.bf16.mxu0 0
        %2138 = vmatpush1.bf16.msra.mxu0 0
        %2139 = vmatprep.subr.bf16.mxu0 0
        %2140 = vmatpush1.bf16.msra.mxu0 0
        %2141 = vmatprep.subr.bf16.mxu0 0
        %2142 = vmatpush1.bf16.msra.mxu0 0
        %2143 = vmatprep.subr.bf16.mxu0 0
        %2144 = vmatpush1.bf16.msra.mxu0 0
        %2145 = vmatprep.mubr.bf16.mxu0 0
        %2146 = vmatmul.mubr.bf16.gmra.mrb[0].mxu0 %v2102
        %v2147 = vpop.f32.mrb[0].mxu0
        %v2148 = vadd.f32 0.0, %v2147
        %v2149 = vpop.f32.mrb[0].mxu0
        %v2150 = vpop.f32.mrb[0].mxu0
        %v2151 = vadd.f32 0.0, %v2150
        %v2152 = vpop.f32.mrb[0].mxu0
        %2153 = vmatprep.mubr.bf16.mxu0 0
        %2154 = vmatmul.mubr.bf16.gmra.mrb[0].mxu0 %v2105
        %v2155 = vpop.f32.mrb[0].mxu0
        %v2156 = vadd.f32 0.0, %v2155
        %v2157 = vpop.f32.mrb[0].mxu0
        %v2158 = vpop.f32.mrb[0].mxu0
        %v2159 = vadd.f32 0.0, %v2158
        %v2160 = vpop.f32.mrb[0].mxu0
        %2161 = vmatprep.mubr.bf16.mxu0 0
        %2162 = vmatmul.mubr.bf16.gmra.mrb[0].mxu0 %v2108
        %v2163 = vpop.f32.mrb[0].mxu0
        %v2164 = vadd.f32 0.0, %v2163
        %v2165 = vpop.f32.mrb[0].mxu0
        %v2166 = vpop.f32.mrb[0].mxu0
        %v2167 = vadd.f32 0.0, %v2166
        %v2168 = vpop.f32.mrb[0].mxu0
        %2169 = vmatprep.mubr.bf16.mxu0 0
        %2170 = vmatmul.mubr.bf16.gmra.mrb[0].mxu0 %v2111
        %v2171 = vpop.f32.mrb[0].mxu0
        %v2172 = vadd.f32 0.0, %v2171
        %v2173 = vpop.f32.mrb[0].mxu0
        %v2174 = vpop.f32.mrb[0].mxu0
        %v2175 = vadd.f32 0.0, %v2174
        %v2176 = vpop.f32.mrb[0].mxu0
        %2177 = vdwg.mxu0
        %v2178 = vadd.f32 %v1942, %v2148
        %v2179 = vadd.f32 %v1943, %v2151
        %v2180 = vadd.f32 %v1944, %v2156
        %v2181 = vadd.f32 %v1945, %v2159
        %v2182 = vadd.f32 %v1946, %v2164
        %v2183 = vadd.f32 %v1947, %v2167
        %v2184 = vadd.f32 %v1948, %v2172
        %v2185 = vadd.f32 %v1949, %v2175
        %s2186 = scalar_lea.vmem %s2, 384
        %v2187 = vld [vmem:[%s2186] sm:$0xff]
        %v2188 = vld [vmem:[%s2186 + $0x8] sm:$0xff]
        %v2189 = vld [vmem:[%s2186 + $0x10] sm:$0xff]
        %v2190 = vld [vmem:[%s2186 + $0x18] sm:$0xff]
        %v2191 = vld [vmem:[%s2186 + $0x20] sm:$0xff]
        %v2192 = vld [vmem:[%s2186 + $0x28] sm:$0xff]
        %v2193 = vld [vmem:[%s2186 + $0x30] sm:$0xff]
        %v2194 = vld [vmem:[%s2186 + $0x38] sm:$0xff]
        %v2203 = vunpack.c.l.b16 %v2187
        %v2204 = vunpack.c.h.b16 %v2187
        %v2205 = vunpack.c.l.b16 %v2188
        %v2206 = vunpack.c.h.b16 %v2188
        %v2207 = vunpack.c.l.b16 %v2189
        %v2208 = vunpack.c.h.b16 %v2189
        %v2209 = vunpack.c.l.b16 %v2190
        %v2210 = vunpack.c.h.b16 %v2190
        %v2211 = vunpack.c.l.b16 %v2191
        %v2212 = vunpack.c.h.b16 %v2191
        %v2213 = vunpack.c.l.b16 %v2192
        %v2214 = vunpack.c.h.b16 %v2192
        %v2215 = vunpack.c.l.b16 %v2193
        %v2216 = vunpack.c.h.b16 %v2193
        %v2217 = vunpack.c.l.b16 %v2194
        %v2218 = vunpack.c.h.b16 %v2194
        %v2219 = vpack.c.b16 %v2205, %v2203
        %v2220 = vpack.c.b16 %v2206, %v2204
        %v2221 = vpack.c.b16 %v2209, %v2207
        %v2222 = vpack.c.b16 %v2210, %v2208
        %v2223 = vpack.c.b16 %v2213, %v2211
        %v2224 = vpack.c.b16 %v2214, %v2212
        %v2225 = vpack.c.b16 %v2217, %v2215
        %v2226 = vpack.c.b16 %v2218, %v2216
        %2235 = vmatprep.subr.bf16.mxu0 0
        %2236 = vmatpush1.bf16.msra.mxu0 %v772
        %2237 = vmatprep.subr.bf16.mxu0 0
        %2238 = vmatpush1.bf16.msra.mxu0 %v773
        %2239 = vmatprep.subr.bf16.mxu0 0
        %2240 = vmatpush1.bf16.msra.mxu0 %v774
        %2241 = vmatprep.subr.bf16.mxu0 0
        %2242 = vmatpush1.bf16.msra.mxu0 %v775
        %2243 = vmatprep.subr.bf16.mxu0 0
        %2244 = vmatpush1.bf16.msra.mxu0 %v776
        %2245 = vmatprep.subr.bf16.mxu0 0
        %2246 = vmatpush1.bf16.msra.mxu0 %v777
        %2247 = vmatprep.subr.bf16.mxu0 0
        %2248 = vmatpush1.bf16.msra.mxu0 %v778
        %2249 = vmatprep.subr.bf16.mxu0 0
        %2250 = vmatpush1.bf16.msra.mxu0 %v779
        %2251 = vmatprep.subr.bf16.mxu0 0
        %2252 = vmatpush1.bf16.msra.mxu0 %v780
        %2253 = vmatprep.subr.bf16.mxu0 0
        %2254 = vmatpush1.bf16.msra.mxu0 %v781
        %2255 = vmatprep.subr.bf16.mxu0 0
        %2256 = vmatpush1.bf16.msra.mxu0 %v782
        %2257 = vmatprep.subr.bf16.mxu0 0
        %2258 = vmatpush1.bf16.msra.mxu0 %v783
        %2259 = vmatprep.subr.bf16.mxu0 0
        %2260 = vmatpush1.bf16.msra.mxu0 %v784
        %2261 = vmatprep.subr.bf16.mxu0 0
        %2262 = vmatpush1.bf16.msra.mxu0 %v785
        %2263 = vmatprep.subr.bf16.mxu0 0
        %2264 = vmatpush1.bf16.msra.mxu0 %v786
        %2265 = vmatprep.subr.bf16.mxu0 0
        %2266 = vmatpush1.bf16.msra.mxu0 %v787
        %2267 = vmatprep.mubr.bf16.mxu0 %v2220
        %2268 = vmatmul.mubr.bf16.gmra.mrb[0].mxu0 %v2219
        %v2269 = vpop.f32.mrb[0].mxu0
        %v2270 = vadd.f32 0.0, %v2269
        %v2271 = vpop.f32.mrb[0].mxu0
        %v2272 = vpop.f32.mrb[0].mxu0
        %v2273 = vadd.f32 0.0, %v2272
        %v2274 = vpop.f32.mrb[0].mxu0
        %2275 = vmatprep.mubr.bf16.mxu0 %v2222
        %2276 = vmatmul.mubr.bf16.gmra.mrb[0].mxu0 %v2221
        %v2277 = vpop.f32.mrb[0].mxu0
        %v2278 = vadd.f32 0.0, %v2277
        %v2279 = vpop.f32.mrb[0].mxu0
        %v2280 = vpop.f32.mrb[0].mxu0
        %v2281 = vadd.f32 0.0, %v2280
        %v2282 = vpop.f32.mrb[0].mxu0
        %2283 = vmatprep.mubr.bf16.mxu0 %v2224
        %2284 = vmatmul.mubr.bf16.gmra.mrb[0].mxu0 %v2223
        %v2285 = vpop.f32.mrb[0].mxu0
        %v2286 = vadd.f32 0.0, %v2285
        %v2287 = vpop.f32.mrb[0].mxu0
        %v2288 = vpop.f32.mrb[0].mxu0
        %v2289 = vadd.f32 0.0, %v2288
        %v2290 = vpop.f32.mrb[0].mxu0
        %2291 = vmatprep.mubr.bf16.mxu0 %v2226
        %2292 = vmatmul.mubr.bf16.gmra.mrb[0].mxu0 %v2225
        %v2293 = vpop.f32.mrb[0].mxu0
        %v2294 = vadd.f32 0.0, %v2293
        %v2295 = vpop.f32.mrb[0].mxu0
        %v2296 = vpop.f32.mrb[0].mxu0
        %v2297 = vadd.f32 0.0, %v2296
        %v2298 = vpop.f32.mrb[0].mxu0
        %2299 = vdwg.mxu0
        %v2300 = vpack.c.bf16 %v2273, %v2270
        %v2301 = vpack.c.bf16 %v2281, %v2278
        %v2302 = vpack.c.bf16 %v2289, %v2286
        %v2303 = vpack.c.bf16 %v2297, %v2294
        %s2304 = scalar_lea.vmem %s5, 192
        %v2305 = vld [vmem:[%s2304] sm:$0xf]
        %v2306 = vld [vmem:[%s2304 + $0x4] sm:$0xf]
        %v2307 = vld [vmem:[%s2304 + $0x8] sm:$0xf]
        %v2308 = vld [vmem:[%s2304 + $0xc] sm:$0xf]
        %v2309 = vld [vmem:[%s2304 + $0x10] sm:$0xf]
        %v2310 = vld [vmem:[%s2304 + $0x14] sm:$0xf]
        %v2311 = vld [vmem:[%s2304 + $0x18] sm:$0xf]
        %v2312 = vld [vmem:[%s2304 + $0x1c] sm:$0xf]
        %v2321 = vunpack.c.l.b16 %v2305
        %v2322 = vunpack.c.l.b16 %v2306
        %v2323 = vunpack.c.l.b16 %v2307
        %v2324 = vunpack.c.l.b16 %v2308
        %v2325 = vunpack.c.l.b16 %v2309
        %v2326 = vunpack.c.l.b16 %v2310
        %v2327 = vunpack.c.l.b16 %v2311
        %v2328 = vunpack.c.l.b16 %v2312
        %v2329 = vpack.c.b16 %v2322, %v2321
        %v2330 = vpack.c.b16 %v2324, %v2323
        %v2331 = vpack.c.b16 %v2326, %v2325
        %v2332 = vpack.c.b16 %v2328, %v2327
        %v2338 = vsel %vm530, %v2300, 0
        %v2341 = vsel %vm530, %v2301, 0
        %v2344 = vsel %vm530, %v2302, 0
        %v2347 = vsel %vm530, %v2303, 0
        %2349 = vmatprep.subr.bf16.mxu0 0
        %2350 = vmatpush1.bf16.msra.mxu0 %v2329
        %2351 = vmatprep.subr.bf16.mxu0 0
        %2352 = vmatpush1.bf16.msra.mxu0 %v2330
        %2353 = vmatprep.subr.bf16.mxu0 0
        %2354 = vmatpush1.bf16.msra.mxu0 %v2331
        %2355 = vmatprep.subr.bf16.mxu0 0
        %2356 = vmatpush1.bf16.msra.mxu0 %v2332
        %2357 = vmatprep.subr.bf16.mxu0 0
        %2358 = vmatpush1.bf16.msra.mxu0 0
        %2359 = vmatprep.subr.bf16.mxu0 0
        %2360 = vmatpush1.bf16.msra.mxu0 0
        %2361 = vmatprep.subr.bf16.mxu0 0
        %2362 = vmatpush1.bf16.msra.mxu0 0
        %2363 = vmatprep.subr.bf16.mxu0 0
        %2364 = vmatpush1.bf16.msra.mxu0 0
        %2365 = vmatprep.subr.bf16.mxu0 0
        %2366 = vmatpush1.bf16.msra.mxu0 0
        %2367 = vmatprep.subr.bf16.mxu0 0
        %2368 = vmatpush1.bf16.msra.mxu0 0
        %2369 = vmatprep.subr.bf16.mxu0 0
        %2370 = vmatpush1.bf16.msra.mxu0 0
        %2371 = vmatprep.subr.bf16.mxu0 0
        %2372 = vmatpush1.bf16.msra.mxu0 0
        %2373 = vmatprep.subr.bf16.mxu0 0
        %2374 = vmatpush1.bf16.msra.mxu0 0
        %2375 = vmatprep.subr.bf16.mxu0 0
        %2376 = vmatpush1.bf16.msra.mxu0 0
        %2377 = vmatprep.subr.bf16.mxu0 0
        %2378 = vmatpush1.bf16.msra.mxu0 0
        %2379 = vmatprep.subr.bf16.mxu0 0
        %2380 = vmatpush1.bf16.msra.mxu0 0
        %2381 = vmatprep.mubr.bf16.mxu0 0
        %2382 = vmatmul.mubr.bf16.gmra.mrb[0].mxu0 %v2338
        %v2383 = vpop.f32.mrb[0].mxu0
        %v2384 = vadd.f32 0.0, %v2383
        %v2385 = vpop.f32.mrb[0].mxu0
        %v2386 = vpop.f32.mrb[0].mxu0
        %v2387 = vadd.f32 0.0, %v2386
        %v2388 = vpop.f32.mrb[0].mxu0
        %2389 = vmatprep.mubr.bf16.mxu0 0
        %2390 = vmatmul.mubr.bf16.gmra.mrb[0].mxu0 %v2341
        %v2391 = vpop.f32.mrb[0].mxu0
        %v2392 = vadd.f32 0.0, %v2391
        %v2393 = vpop.f32.mrb[0].mxu0
        %v2394 = vpop.f32.mrb[0].mxu0
        %v2395 = vadd.f32 0.0, %v2394
        %v2396 = vpop.f32.mrb[0].mxu0
        %2397 = vmatprep.mubr.bf16.mxu0 0
        %2398 = vmatmul.mubr.bf16.gmra.mrb[0].mxu0 %v2344
        %v2399 = vpop.f32.mrb[0].mxu0
        %v2400 = vadd.f32 0.0, %v2399
        %v2401 = vpop.f32.mrb[0].mxu0
        %v2402 = vpop.f32.mrb[0].mxu0
        %v2403 = vadd.f32 0.0, %v2402
        %v2404 = vpop.f32.mrb[0].mxu0
        %2405 = vmatprep.mubr.bf16.mxu0 0
        %2406 = vmatmul.mubr.bf16.gmra.mrb[0].mxu0 %v2347
        %v2407 = vpop.f32.mrb[0].mxu0
        %v2408 = vadd.f32 0.0, %v2407
        %v2409 = vpop.f32.mrb[0].mxu0
        %v2410 = vpop.f32.mrb[0].mxu0
        %v2411 = vadd.f32 0.0, %v2410
        %v2412 = vpop.f32.mrb[0].mxu0
        %2413 = vdwg.mxu0
        %v2414 = vadd.f32 %v2178, %v2384
        %v2415 = vadd.f32 %v2179, %v2387
        %v2416 = vadd.f32 %v2180, %v2392
        %v2417 = vadd.f32 %v2181, %v2395
        %v2418 = vadd.f32 %v2182, %v2400
        %v2419 = vadd.f32 %v2183, %v2403
        %v2420 = vadd.f32 %v2184, %v2408
        %v2421 = vadd.f32 %v2185, %v2411
        %s2422 = scalar_lea.vmem %s2, 448
        %v2423 = vld [vmem:[%s2422] sm:$0xff]
        %v2424 = vld [vmem:[%s2422 + $0x8] sm:$0xff]
        %v2425 = vld [vmem:[%s2422 + $0x10] sm:$0xff]
        %v2426 = vld [vmem:[%s2422 + $0x18] sm:$0xff]
        %v2427 = vld [vmem:[%s2422 + $0x20] sm:$0xff]
        %v2428 = vld [vmem:[%s2422 + $0x28] sm:$0xff]
        %v2429 = vld [vmem:[%s2422 + $0x30] sm:$0xff]
        %v2430 = vld [vmem:[%s2422 + $0x38] sm:$0xff]
        %v2439 = vunpack.c.l.b16 %v2423
        %v2440 = vunpack.c.h.b16 %v2423
        %v2441 = vunpack.c.l.b16 %v2424
        %v2442 = vunpack.c.h.b16 %v2424
        %v2443 = vunpack.c.l.b16 %v2425
        %v2444 = vunpack.c.h.b16 %v2425
        %v2445 = vunpack.c.l.b16 %v2426
        %v2446 = vunpack.c.h.b16 %v2426
        %v2447 = vunpack.c.l.b16 %v2427
        %v2448 = vunpack.c.h.b16 %v2427
        %v2449 = vunpack.c.l.b16 %v2428
        %v2450 = vunpack.c.h.b16 %v2428
        %v2451 = vunpack.c.l.b16 %v2429
        %v2452 = vunpack.c.h.b16 %v2429
        %v2453 = vunpack.c.l.b16 %v2430
        %v2454 = vunpack.c.h.b16 %v2430
        %v2455 = vpack.c.b16 %v2441, %v2439
        %v2456 = vpack.c.b16 %v2442, %v2440
        %v2457 = vpack.c.b16 %v2445, %v2443
        %v2458 = vpack.c.b16 %v2446, %v2444
        %v2459 = vpack.c.b16 %v2449, %v2447
        %v2460 = vpack.c.b16 %v2450, %v2448
        %v2461 = vpack.c.b16 %v2453, %v2451
        %v2462 = vpack.c.b16 %v2454, %v2452
        %2471 = vmatprep.subr.bf16.mxu0 0
        %2472 = vmatpush1.bf16.msra.mxu0 %v772
        %2473 = vmatprep.subr.bf16.mxu0 0
        %2474 = vmatpush1.bf16.msra.mxu0 %v773
        %2475 = vmatprep.subr.bf16.mxu0 0
        %2476 = vmatpush1.bf16.msra.mxu0 %v774
        %2477 = vmatprep.subr.bf16.mxu0 0
        %2478 = vmatpush1.bf16.msra.mxu0 %v775
        %2479 = vmatprep.subr.bf16.mxu0 0
        %2480 = vmatpush1.bf16.msra.mxu0 %v776
        %2481 = vmatprep.subr.bf16.mxu0 0
        %2482 = vmatpush1.bf16.msra.mxu0 %v777
        %2483 = vmatprep.subr.bf16.mxu0 0
        %2484 = vmatpush1.bf16.msra.mxu0 %v778
        %2485 = vmatprep.subr.bf16.mxu0 0
        %2486 = vmatpush1.bf16.msra.mxu0 %v779
        %2487 = vmatprep.subr.bf16.mxu0 0
        %2488 = vmatpush1.bf16.msra.mxu0 %v780
        %2489 = vmatprep.subr.bf16.mxu0 0
        %2490 = vmatpush1.bf16.msra.mxu0 %v781
        %2491 = vmatprep.subr.bf16.mxu0 0
        %2492 = vmatpush1.bf16.msra.mxu0 %v782
        %2493 = vmatprep.subr.bf16.mxu0 0
        %2494 = vmatpush1.bf16.msra.mxu0 %v783
        %2495 = vmatprep.subr.bf16.mxu0 0
        %2496 = vmatpush1.bf16.msra.mxu0 %v784
        %2497 = vmatprep.subr.bf16.mxu0 0
        %2498 = vmatpush1.bf16.msra.mxu0 %v785
        %2499 = vmatprep.subr.bf16.mxu0 0
        %2500 = vmatpush1.bf16.msra.mxu0 %v786
        %2501 = vmatprep.subr.bf16.mxu0 0
        %2502 = vmatpush1.bf16.msra.mxu0 %v787
        %2503 = vmatprep.mubr.bf16.mxu0 %v2456
        %2504 = vmatmul.mubr.bf16.gmra.mrb[0].mxu0 %v2455
        %v2505 = vpop.f32.mrb[0].mxu0
        %v2506 = vadd.f32 0.0, %v2505
        %v2507 = vpop.f32.mrb[0].mxu0
        %v2508 = vpop.f32.mrb[0].mxu0
        %v2509 = vadd.f32 0.0, %v2508
        %v2510 = vpop.f32.mrb[0].mxu0
        %2511 = vmatprep.mubr.bf16.mxu0 %v2458
        %2512 = vmatmul.mubr.bf16.gmra.mrb[0].mxu0 %v2457
        %v2513 = vpop.f32.mrb[0].mxu0
        %v2514 = vadd.f32 0.0, %v2513
        %v2515 = vpop.f32.mrb[0].mxu0
        %v2516 = vpop.f32.mrb[0].mxu0
        %v2517 = vadd.f32 0.0, %v2516
        %v2518 = vpop.f32.mrb[0].mxu0
        %2519 = vmatprep.mubr.bf16.mxu0 %v2460
        %2520 = vmatmul.mubr.bf16.gmra.mrb[0].mxu0 %v2459
        %v2521 = vpop.f32.mrb[0].mxu0
        %v2522 = vadd.f32 0.0, %v2521
        %v2523 = vpop.f32.mrb[0].mxu0
        %v2524 = vpop.f32.mrb[0].mxu0
        %v2525 = vadd.f32 0.0, %v2524
        %v2526 = vpop.f32.mrb[0].mxu0
        %2527 = vmatprep.mubr.bf16.mxu0 %v2462
        %2528 = vmatmul.mubr.bf16.gmra.mrb[0].mxu0 %v2461
        %v2529 = vpop.f32.mrb[0].mxu0
        %v2530 = vadd.f32 0.0, %v2529
        %v2531 = vpop.f32.mrb[0].mxu0
        %v2532 = vpop.f32.mrb[0].mxu0
        %v2533 = vadd.f32 0.0, %v2532
        %v2534 = vpop.f32.mrb[0].mxu0
        %2535 = vdwg.mxu0
        %v2536 = vpack.c.bf16 %v2509, %v2506
        %v2537 = vpack.c.bf16 %v2517, %v2514
        %v2538 = vpack.c.bf16 %v2525, %v2522
        %v2539 = vpack.c.bf16 %v2533, %v2530
        %s2540 = scalar_lea.vmem %s5, 224
        %v2541 = vld [vmem:[%s2540] sm:$0xf]
        %v2542 = vld [vmem:[%s2540 + $0x4] sm:$0xf]
        %v2543 = vld [vmem:[%s2540 + $0x8] sm:$0xf]
        %v2544 = vld [vmem:[%s2540 + $0xc] sm:$0xf]
        %v2545 = vld [vmem:[%s2540 + $0x10] sm:$0xf]
        %v2546 = vld [vmem:[%s2540 + $0x14] sm:$0xf]
        %v2547 = vld [vmem:[%s2540 + $0x18] sm:$0xf]
        %v2548 = vld [vmem:[%s2540 + $0x1c] sm:$0xf]
        %v2557 = vunpack.c.l.b16 %v2541
        %v2558 = vunpack.c.l.b16 %v2542
        %v2559 = vunpack.c.l.b16 %v2543
        %v2560 = vunpack.c.l.b16 %v2544
        %v2561 = vunpack.c.l.b16 %v2545
        %v2562 = vunpack.c.l.b16 %v2546
        %v2563 = vunpack.c.l.b16 %v2547
        %v2564 = vunpack.c.l.b16 %v2548
        %v2565 = vpack.c.b16 %v2558, %v2557
        %v2566 = vpack.c.b16 %v2560, %v2559
        %v2567 = vpack.c.b16 %v2562, %v2561
        %v2568 = vpack.c.b16 %v2564, %v2563
        %v2574 = vsel %vm530, %v2536, 0
        %v2577 = vsel %vm530, %v2537, 0
        %v2580 = vsel %vm530, %v2538, 0
        %v2583 = vsel %vm530, %v2539, 0
        %2585 = vmatprep.subr.bf16.mxu0 0
        %2586 = vmatpush1.bf16.msra.mxu0 %v2565
        %2587 = vmatprep.subr.bf16.mxu0 0
        %2588 = vmatpush1.bf16.msra.mxu0 %v2566
        %2589 = vmatprep.subr.bf16.mxu0 0
        %2590 = vmatpush1.bf16.msra.mxu0 %v2567
        %2591 = vmatprep.subr.bf16.mxu0 0
        %2592 = vmatpush1.bf16.msra.mxu0 %v2568
        %2593 = vmatprep.subr.bf16.mxu0 0
        %2594 = vmatpush1.bf16.msra.mxu0 0
        %2595 = vmatprep.subr.bf16.mxu0 0
        %2596 = vmatpush1.bf16.msra.mxu0 0
        %2597 = vmatprep.subr.bf16.mxu0 0
        %2598 = vmatpush1.bf16.msra.mxu0 0
        %2599 = vmatprep.subr.bf16.mxu0 0
        %2600 = vmatpush1.bf16.msra.mxu0 0
        %2601 = vmatprep.subr.bf16.mxu0 0
        %2602 = vmatpush1.bf16.msra.mxu0 0
        %2603 = vmatprep.subr.bf16.mxu0 0
        %2604 = vmatpush1.bf16.msra.mxu0 0
        %2605 = vmatprep.subr.bf16.mxu0 0
        %2606 = vmatpush1.bf16.msra.mxu0 0
        %2607 = vmatprep.subr.bf16.mxu0 0
        %2608 = vmatpush1.bf16.msra.mxu0 0
        %2609 = vmatprep.subr.bf16.mxu0 0
        %2610 = vmatpush1.bf16.msra.mxu0 0
        %2611 = vmatprep.subr.bf16.mxu0 0
        %2612 = vmatpush1.bf16.msra.mxu0 0
        %2613 = vmatprep.subr.bf16.mxu0 0
        %2614 = vmatpush1.bf16.msra.mxu0 0
        %2615 = vmatprep.subr.bf16.mxu0 0
        %2616 = vmatpush1.bf16.msra.mxu0 0
        %2617 = vmatprep.mubr.bf16.mxu0 0
        %2618 = vmatmul.mubr.bf16.gmra.mrb[0].mxu0 %v2574
        %v2619 = vpop.f32.mrb[0].mxu0
        %v2620 = vadd.f32 0.0, %v2619
        %v2621 = vpop.f32.mrb[0].mxu0
        %v2622 = vpop.f32.mrb[0].mxu0
        %v2623 = vadd.f32 0.0, %v2622
        %v2624 = vpop.f32.mrb[0].mxu0
        %2625 = vmatprep.mubr.bf16.mxu0 0
        %2626 = vmatmul.mubr.bf16.gmra.mrb[0].mxu0 %v2577
        %v2627 = vpop.f32.mrb[0].mxu0
        %v2628 = vadd.f32 0.0, %v2627
        %v2629 = vpop.f32.mrb[0].mxu0
        %v2630 = vpop.f32.mrb[0].mxu0
        %v2631 = vadd.f32 0.0, %v2630
        %v2632 = vpop.f32.mrb[0].mxu0
        %2633 = vmatprep.mubr.bf16.mxu0 0
        %2634 = vmatmul.mubr.bf16.gmra.mrb[0].mxu0 %v2580
        %v2635 = vpop.f32.mrb[0].mxu0
        %v2636 = vadd.f32 0.0, %v2635
        %v2637 = vpop.f32.mrb[0].mxu0
        %v2638 = vpop.f32.mrb[0].mxu0
        %v2639 = vadd.f32 0.0, %v2638
        %v2640 = vpop.f32.mrb[0].mxu0
        %2641 = vmatprep.mubr.bf16.mxu0 0
        %2642 = vmatmul.mubr.bf16.gmra.mrb[0].mxu0 %v2583
        %v2643 = vpop.f32.mrb[0].mxu0
        %v2644 = vadd.f32 0.0, %v2643
        %v2645 = vpop.f32.mrb[0].mxu0
        %v2646 = vpop.f32.mrb[0].mxu0
        %v2647 = vadd.f32 0.0, %v2646
        %v2648 = vpop.f32.mrb[0].mxu0
        %2649 = vdwg.mxu0
        %v2650 = vadd.f32 %v2414, %v2620
        %v2651 = vadd.f32 %v2415, %v2623
        %v2652 = vadd.f32 %v2416, %v2628
        %v2653 = vadd.f32 %v2417, %v2631
        %v2654 = vadd.f32 %v2418, %v2636
        %v2655 = vadd.f32 %v2419, %v2639
        %v2656 = vadd.f32 %v2420, %v2644
        %v2657 = vadd.f32 %v2421, %v2647
        %s2658 = scalar_lea.vmem %s2, 512
        %v2659 = vld [vmem:[%s2658] sm:$0xff]
        %v2660 = vld [vmem:[%s2658 + $0x8] sm:$0xff]
        %v2661 = vld [vmem:[%s2658 + $0x10] sm:$0xff]
        %v2662 = vld [vmem:[%s2658 + $0x18] sm:$0xff]
        %v2663 = vld [vmem:[%s2658 + $0x20] sm:$0xff]
        %v2664 = vld [vmem:[%s2658 + $0x28] sm:$0xff]
        %v2665 = vld [vmem:[%s2658 + $0x30] sm:$0xff]
        %v2666 = vld [vmem:[%s2658 + $0x38] sm:$0xff]
        %v2675 = vunpack.c.l.b16 %v2659
        %v2676 = vunpack.c.h.b16 %v2659
        %v2677 = vunpack.c.l.b16 %v2660
        %v2678 = vunpack.c.h.b16 %v2660
        %v2679 = vunpack.c.l.b16 %v2661
        %v2680 = vunpack.c.h.b16 %v2661
        %v2681 = vunpack.c.l.b16 %v2662
        %v2682 = vunpack.c.h.b16 %v2662
        %v2683 = vunpack.c.l.b16 %v2663
        %v2684 = vunpack.c.h.b16 %v2663
        %v2685 = vunpack.c.l.b16 %v2664
        %v2686 = vunpack.c.h.b16 %v2664
        %v2687 = vunpack.c.l.b16 %v2665
        %v2688 = vunpack.c.h.b16 %v2665
        %v2689 = vunpack.c.l.b16 %v2666
        %v2690 = vunpack.c.h.b16 %v2666
        %v2691 = vpack.c.b16 %v2677, %v2675
        %v2692 = vpack.c.b16 %v2678, %v2676
        %v2693 = vpack.c.b16 %v2681, %v2679
        %v2694 = vpack.c.b16 %v2682, %v2680
        %v2695 = vpack.c.b16 %v2685, %v2683
        %v2696 = vpack.c.b16 %v2686, %v2684
        %v2697 = vpack.c.b16 %v2689, %v2687
        %v2698 = vpack.c.b16 %v2690, %v2688
        %2707 = vmatprep.subr.bf16.mxu0 0
        %2708 = vmatpush1.bf16.msra.mxu0 %v772
        %2709 = vmatprep.subr.bf16.mxu0 0
        %2710 = vmatpush1.bf16.msra.mxu0 %v773
        %2711 = vmatprep.subr.bf16.mxu0 0
        %2712 = vmatpush1.bf16.msra.mxu0 %v774
        %2713 = vmatprep.subr.bf16.mxu0 0
        %2714 = vmatpush1.bf16.msra.mxu0 %v775
        %2715 = vmatprep.subr.bf16.mxu0 0
        %2716 = vmatpush1.bf16.msra.mxu0 %v776
        %2717 = vmatprep.subr.bf16.mxu0 0
        %2718 = vmatpush1.bf16.msra.mxu0 %v777
        %2719 = vmatprep.subr.bf16.mxu0 0
        %2720 = vmatpush1.bf16.msra.mxu0 %v778
        %2721 = vmatprep.subr.bf16.mxu0 0
        %2722 = vmatpush1.bf16.msra.mxu0 %v779
        %2723 = vmatprep.subr.bf16.mxu0 0
        %2724 = vmatpush1.bf16.msra.mxu0 %v780
        %2725 = vmatprep.subr.bf16.mxu0 0
        %2726 = vmatpush1.bf16.msra.mxu0 %v781
        %2727 = vmatprep.subr.bf16.mxu0 0
        %2728 = vmatpush1.bf16.msra.mxu0 %v782
        %2729 = vmatprep.subr.bf16.mxu0 0
        %2730 = vmatpush1.bf16.msra.mxu0 %v783
        %2731 = vmatprep.subr.bf16.mxu0 0
        %2732 = vmatpush1.bf16.msra.mxu0 %v784
        %2733 = vmatprep.subr.bf16.mxu0 0
        %2734 = vmatpush1.bf16.msra.mxu0 %v785
        %2735 = vmatprep.subr.bf16.mxu0 0
        %2736 = vmatpush1.bf16.msra.mxu0 %v786
        %2737 = vmatprep.subr.bf16.mxu0 0
        %2738 = vmatpush1.bf16.msra.mxu0 %v787
        %2739 = vmatprep.mubr.bf16.mxu0 %v2692
        %2740 = vmatmul.mubr.bf16.gmra.mrb[0].mxu0 %v2691
        %v2741 = vpop.f32.mrb[0].mxu0
        %v2742 = vadd.f32 0.0, %v2741
        %v2743 = vpop.f32.mrb[0].mxu0
        %v2744 = vpop.f32.mrb[0].mxu0
        %v2745 = vadd.f32 0.0, %v2744
        %v2746 = vpop.f32.mrb[0].mxu0
        %2747 = vmatprep.mubr.bf16.mxu0 %v2694
        %2748 = vmatmul.mubr.bf16.gmra.mrb[0].mxu0 %v2693
        %v2749 = vpop.f32.mrb[0].mxu0
        %v2750 = vadd.f32 0.0, %v2749
        %v2751 = vpop.f32.mrb[0].mxu0
        %v2752 = vpop.f32.mrb[0].mxu0
        %v2753 = vadd.f32 0.0, %v2752
        %v2754 = vpop.f32.mrb[0].mxu0
        %2755 = vmatprep.mubr.bf16.mxu0 %v2696
        %2756 = vmatmul.mubr.bf16.gmra.mrb[0].mxu0 %v2695
        %v2757 = vpop.f32.mrb[0].mxu0
        %v2758 = vadd.f32 0.0, %v2757
        %v2759 = vpop.f32.mrb[0].mxu0
        %v2760 = vpop.f32.mrb[0].mxu0
        %v2761 = vadd.f32 0.0, %v2760
        %v2762 = vpop.f32.mrb[0].mxu0
        %2763 = vmatprep.mubr.bf16.mxu0 %v2698
        %2764 = vmatmul.mubr.bf16.gmra.mrb[0].mxu0 %v2697
        %v2765 = vpop.f32.mrb[0].mxu0
        %v2766 = vadd.f32 0.0, %v2765
        %v2767 = vpop.f32.mrb[0].mxu0
        %v2768 = vpop.f32.mrb[0].mxu0
        %v2769 = vadd.f32 0.0, %v2768
        %v2770 = vpop.f32.mrb[0].mxu0
        %2771 = vdwg.mxu0
        %v2772 = vpack.c.bf16 %v2745, %v2742
        %v2773 = vpack.c.bf16 %v2753, %v2750
        %v2774 = vpack.c.bf16 %v2761, %v2758
        %v2775 = vpack.c.bf16 %v2769, %v2766
        %s2776 = scalar_lea.vmem %s5, 256
        %v2777 = vld [vmem:[%s2776] sm:$0xf]
        %v2778 = vld [vmem:[%s2776 + $0x4] sm:$0xf]
        %v2779 = vld [vmem:[%s2776 + $0x8] sm:$0xf]
        %v2780 = vld [vmem:[%s2776 + $0xc] sm:$0xf]
        %v2781 = vld [vmem:[%s2776 + $0x10] sm:$0xf]
        %v2782 = vld [vmem:[%s2776 + $0x14] sm:$0xf]
        %v2783 = vld [vmem:[%s2776 + $0x18] sm:$0xf]
        %v2784 = vld [vmem:[%s2776 + $0x1c] sm:$0xf]
        %v2793 = vunpack.c.l.b16 %v2777
        %v2794 = vunpack.c.l.b16 %v2778
        %v2795 = vunpack.c.l.b16 %v2779
        %v2796 = vunpack.c.l.b16 %v2780
        %v2797 = vunpack.c.l.b16 %v2781
        %v2798 = vunpack.c.l.b16 %v2782
        %v2799 = vunpack.c.l.b16 %v2783
        %v2800 = vunpack.c.l.b16 %v2784
        %v2801 = vpack.c.b16 %v2794, %v2793
        %v2802 = vpack.c.b16 %v2796, %v2795
        %v2803 = vpack.c.b16 %v2798, %v2797
        %v2804 = vpack.c.b16 %v2800, %v2799
        %v2810 = vsel %vm530, %v2772, 0
        %v2813 = vsel %vm530, %v2773, 0
        %v2816 = vsel %vm530, %v2774, 0
        %v2819 = vsel %vm530, %v2775, 0
        %2821 = vmatprep.subr.bf16.mxu0 0
        %2822 = vmatpush1.bf16.msra.mxu0 %v2801
        %2823 = vmatprep.subr.bf16.mxu0 0
        %2824 = vmatpush1.bf16.msra.mxu0 %v2802
        %2825 = vmatprep.subr.bf16.mxu0 0
        %2826 = vmatpush1.bf16.msra.mxu0 %v2803
        %2827 = vmatprep.subr.bf16.mxu0 0
        %2828 = vmatpush1.bf16.msra.mxu0 %v2804
        %2829 = vmatprep.subr.bf16.mxu0 0
        %2830 = vmatpush1.bf16.msra.mxu0 0
        %2831 = vmatprep.subr.bf16.mxu0 0
        %2832 = vmatpush1.bf16.msra.mxu0 0
        %2833 = vmatprep.subr.bf16.mxu0 0
        %2834 = vmatpush1.bf16.msra.mxu0 0
        %2835 = vmatprep.subr.bf16.mxu0 0
        %2836 = vmatpush1.bf16.msra.mxu0 0
        %2837 = vmatprep.subr.bf16.mxu0 0
        %2838 = vmatpush1.bf16.msra.mxu0 0
        %2839 = vmatprep.subr.bf16.mxu0 0
        %2840 = vmatpush1.bf16.msra.mxu0 0
        %2841 = vmatprep.subr.bf16.mxu0 0
        %2842 = vmatpush1.bf16.msra.mxu0 0
        %2843 = vmatprep.subr.bf16.mxu0 0
        %2844 = vmatpush1.bf16.msra.mxu0 0
        %2845 = vmatprep.subr.bf16.mxu0 0
        %2846 = vmatpush1.bf16.msra.mxu0 0
        %2847 = vmatprep.subr.bf16.mxu0 0
        %2848 = vmatpush1.bf16.msra.mxu0 0
        %2849 = vmatprep.subr.bf16.mxu0 0
        %2850 = vmatpush1.bf16.msra.mxu0 0
        %2851 = vmatprep.subr.bf16.mxu0 0
        %2852 = vmatpush1.bf16.msra.mxu0 0
        %2853 = vmatprep.mubr.bf16.mxu0 0
        %2854 = vmatmul.mubr.bf16.gmra.mrb[0].mxu0 %v2810
        %v2855 = vpop.f32.mrb[0].mxu0
        %v2856 = vadd.f32 0.0, %v2855
        %v2857 = vpop.f32.mrb[0].mxu0
        %v2858 = vpop.f32.mrb[0].mxu0
        %v2859 = vadd.f32 0.0, %v2858
        %v2860 = vpop.f32.mrb[0].mxu0
        %2861 = vmatprep.mubr.bf16.mxu0 0
        %2862 = vmatmul.mubr.bf16.gmra.mrb[0].mxu0 %v2813
        %v2863 = vpop.f32.mrb[0].mxu0
        %v2864 = vadd.f32 0.0, %v2863
        %v2865 = vpop.f32.mrb[0].mxu0
        %v2866 = vpop.f32.mrb[0].mxu0
        %v2867 = vadd.f32 0.0, %v2866
        %v2868 = vpop.f32.mrb[0].mxu0
        %2869 = vmatprep.mubr.bf16.mxu0 0
        %2870 = vmatmul.mubr.bf16.gmra.mrb[0].mxu0 %v2816
        %v2871 = vpop.f32.mrb[0].mxu0
        %v2872 = vadd.f32 0.0, %v2871
        %v2873 = vpop.f32.mrb[0].mxu0
        %v2874 = vpop.f32.mrb[0].mxu0
        %v2875 = vadd.f32 0.0, %v2874
        %v2876 = vpop.f32.mrb[0].mxu0
        %2877 = vmatprep.mubr.bf16.mxu0 0
        %2878 = vmatmul.mubr.bf16.gmra.mrb[0].mxu0 %v2819
        %v2879 = vpop.f32.mrb[0].mxu0
        %v2880 = vadd.f32 0.0, %v2879
        %v2881 = vpop.f32.mrb[0].mxu0
        %v2882 = vpop.f32.mrb[0].mxu0
        %v2883 = vadd.f32 0.0, %v2882
        %v2884 = vpop.f32.mrb[0].mxu0
        %2885 = vdwg.mxu0
        %v2886 = vadd.f32 %v2650, %v2856
        %v2887 = vadd.f32 %v2651, %v2859
        %v2888 = vadd.f32 %v2652, %v2864
        %v2889 = vadd.f32 %v2653, %v2867
        %v2890 = vadd.f32 %v2654, %v2872
        %v2891 = vadd.f32 %v2655, %v2875
        %v2892 = vadd.f32 %v2656, %v2880
        %v2893 = vadd.f32 %v2657, %v2883
        %v2894 = vld [vmem:[%s6] sm:$0x1]
        %v2896 = vlaneseq
        %v2897 = vshrl.u32 %v2896, 7
        %v2898 = vsub.s32 0, %v2897
        %v2899 = vrot.slane %v2894, %v2898
        %v2901 = vadd.f32 %v2886, %v2899
        %v2902 = vadd.f32 %v2887, %v2899
        %v2903 = vadd.f32 %v2888, %v2899
        %v2904 = vadd.f32 %v2889, %v2899
        %v2905 = vadd.f32 %v2890, %v2899
        %v2906 = vadd.f32 %v2891, %v2899
        %v2907 = vadd.f32 %v2892, %v2899
        %v2908 = vadd.f32 %v2893, %v2899
        %v2909 = vmax.f32 %v2901, 0.0
        %v2910 = vmax.f32 %v2902, 0.0
        %v2911 = vmax.f32 %v2903, 0.0
        %v2912 = vmax.f32 %v2904, 0.0
        %v2913 = vmax.f32 %v2905, 0.0
        %v2914 = vmax.f32 %v2906, 0.0
        %v2915 = vmax.f32 %v2907, 0.0
        %v2916 = vmax.f32 %v2908, 0.0
        %v2917 = vpack.c.bf16 %v2910, %v2909
        %v2918 = vpack.c.bf16 %v2912, %v2911
        %v2919 = vpack.c.bf16 %v2914, %v2913
        %v2920 = vpack.c.bf16 %v2916, %v2915
        %v2921 = vld [vmem:[%s7] sm:$0xf]
        %v2922 = vld [vmem:[%s7 + $0x4] sm:$0xf]
        %v2923 = vld [vmem:[%s7 + $0x8] sm:$0xf]
        %v2924 = vld [vmem:[%s7 + $0xc] sm:$0xf]
        %v2925 = vld [vmem:[%s7 + $0x10] sm:$0xf]
        %v2926 = vld [vmem:[%s7 + $0x14] sm:$0xf]
        %v2927 = vld [vmem:[%s7 + $0x18] sm:$0xf]
        %v2928 = vld [vmem:[%s7 + $0x1c] sm:$0xf]
        %v2929 = vld [vmem:[%s8] sm:$0x1]
        %v2931 = vlaneseq
        %v2932 = vshrl.u32 %v2931, 7
        %v2933 = vsub.s32 0, %v2932
        %v2934 = vrot.slane %v2929, %v2933
        %v2944 = vunpack.c.l.b16 %v2921
        %v2945 = vunpack.c.l.b16 %v2922
        %v2946 = vunpack.c.l.b16 %v2923
        %v2947 = vunpack.c.l.b16 %v2924
        %v2948 = vunpack.c.l.b16 %v2925
        %v2949 = vunpack.c.l.b16 %v2926
        %v2950 = vunpack.c.l.b16 %v2927
        %v2951 = vunpack.c.l.b16 %v2928
        %v2952 = vpack.c.b16 %v2945, %v2944
        %v2953 = vpack.c.b16 %v2947, %v2946
        %v2954 = vpack.c.b16 %v2949, %v2948
        %v2955 = vpack.c.b16 %v2951, %v2950
        %v2961 = vsel %vm530, %v2917, 0
        %v2964 = vsel %vm530, %v2918, 0
        %v2967 = vsel %vm530, %v2919, 0
        %v2970 = vsel %vm530, %v2920, 0
        %2972 = vmatprep.subr.bf16.mxu0 0
        %2973 = vmatpush1.bf16.msra.mxu0 %v2952
        %2974 = vmatprep.subr.bf16.mxu0 0
        %2975 = vmatpush1.bf16.msra.mxu0 %v2953
        %2976 = vmatprep.subr.bf16.mxu0 0
        %2977 = vmatpush1.bf16.msra.mxu0 %v2954
        %2978 = vmatprep.subr.bf16.mxu0 0
        %2979 = vmatpush1.bf16.msra.mxu0 %v2955
        %2980 = vmatprep.subr.bf16.mxu0 0
        %2981 = vmatpush1.bf16.msra.mxu0 0
        %2982 = vmatprep.subr.bf16.mxu0 0
        %2983 = vmatpush1.bf16.msra.mxu0 0
        %2984 = vmatprep.subr.bf16.mxu0 0
        %2985 = vmatpush1.bf16.msra.mxu0 0
        %2986 = vmatprep.subr.bf16.mxu0 0
        %2987 = vmatpush1.bf16.msra.mxu0 0
        %2988 = vmatprep.subr.bf16.mxu0 0
        %2989 = vmatpush1.bf16.msra.mxu0 0
        %2990 = vmatprep.subr.bf16.mxu0 0
        %2991 = vmatpush1.bf16.msra.mxu0 0
        %2992 = vmatprep.subr.bf16.mxu0 0
        %2993 = vmatpush1.bf16.msra.mxu0 0
        %2994 = vmatprep.subr.bf16.mxu0 0
        %2995 = vmatpush1.bf16.msra.mxu0 0
        %2996 = vmatprep.subr.bf16.mxu0 0
        %2997 = vmatpush1.bf16.msra.mxu0 0
        %2998 = vmatprep.subr.bf16.mxu0 0
        %2999 = vmatpush1.bf16.msra.mxu0 0
        %3000 = vmatprep.subr.bf16.mxu0 0
        %3001 = vmatpush1.bf16.msra.mxu0 0
        %3002 = vmatprep.subr.bf16.mxu0 0
        %3003 = vmatpush1.bf16.msra.mxu0 0
        %3004 = vmatprep.mubr.bf16.mxu0 0
        %3005 = vmatmul.mubr.bf16.gmra.mrb[0].mxu0 %v2961
        %v3006 = vpop.f32.mrb[0].mxu0
        %v3007 = vadd.f32 %v2934, %v3006
        %v3008 = vpop.f32.mrb[0].mxu0
        %v3009 = vpop.f32.mrb[0].mxu0
        %v3010 = vadd.f32 %v2934, %v3009
        %v3011 = vpop.f32.mrb[0].mxu0
        %3012 = vmatprep.mubr.bf16.mxu0 0
        %3013 = vmatmul.mubr.bf16.gmra.mrb[0].mxu0 %v2964
        %v3014 = vpop.f32.mrb[0].mxu0
        %v3015 = vadd.f32 %v2934, %v3014
        %v3016 = vpop.f32.mrb[0].mxu0
        %v3017 = vpop.f32.mrb[0].mxu0
        %v3018 = vadd.f32 %v2934, %v3017
        %v3019 = vpop.f32.mrb[0].mxu0
        %3020 = vmatprep.mubr.bf16.mxu0 0
        %3021 = vmatmul.mubr.bf16.gmra.mrb[0].mxu0 %v2967
        %v3022 = vpop.f32.mrb[0].mxu0
        %v3023 = vadd.f32 %v2934, %v3022
        %v3024 = vpop.f32.mrb[0].mxu0
        %v3025 = vpop.f32.mrb[0].mxu0
        %v3026 = vadd.f32 %v2934, %v3025
        %v3027 = vpop.f32.mrb[0].mxu0
        %3028 = vmatprep.mubr.bf16.mxu0 0
        %3029 = vmatmul.mubr.bf16.gmra.mrb[0].mxu0 %v2970
        %v3030 = vpop.f32.mrb[0].mxu0
        %v3031 = vadd.f32 %v2934, %v3030
        %v3032 = vpop.f32.mrb[0].mxu0
        %v3033 = vpop.f32.mrb[0].mxu0
        %v3034 = vadd.f32 %v2934, %v3033
        %v3035 = vpop.f32.mrb[0].mxu0
        %3036 = vdwg.mxu0
        %v3037 = vld [vmem:[%s377] sm:$0xf]
        %v3038 = vld [vmem:[%s377 + $0x4] sm:$0xf]
        %v3039 = vld [vmem:[%s377 + $0x8] sm:$0xf]
        %v3040 = vld [vmem:[%s377 + $0xc] sm:$0xf]
        %v3041 = vld [vmem:[%s377 + $0x10] sm:$0xf]
        %v3042 = vld [vmem:[%s377 + $0x14] sm:$0xf]
        %v3043 = vld [vmem:[%s377 + $0x18] sm:$0xf]
        %v3044 = vld [vmem:[%s377 + $0x1c] sm:$0xf]
        %v3045 = vld [vmem:[%s9] sm:$0xf]
        %v3046 = vld [vmem:[%s9 + $0x4] sm:$0xf]
        %v3047 = vld [vmem:[%s9 + $0x8] sm:$0xf]
        %v3048 = vld [vmem:[%s9 + $0xc] sm:$0xf]
        %v3049 = vld [vmem:[%s9 + $0x10] sm:$0xf]
        %v3050 = vld [vmem:[%s9 + $0x14] sm:$0xf]
        %v3051 = vld [vmem:[%s9 + $0x18] sm:$0xf]
        %v3052 = vld [vmem:[%s9 + $0x1c] sm:$0xf]
        %v3061 = vunpack.c.l.b16 %v3037
        %v3062 = vunpack.c.l.b16 %v3038
        %v3063 = vunpack.c.l.b16 %v3039
        %v3064 = vunpack.c.l.b16 %v3040
        %v3065 = vunpack.c.l.b16 %v3041
        %v3066 = vunpack.c.l.b16 %v3042
        %v3067 = vunpack.c.l.b16 %v3043
        %v3068 = vunpack.c.l.b16 %v3044
        %v3069 = vpack.c.b16 %v3062, %v3061
        %v3070 = vpack.c.b16 %v3064, %v3063
        %v3071 = vpack.c.b16 %v3066, %v3065
        %v3072 = vpack.c.b16 %v3068, %v3067
        %v3081 = vunpack.c.l.b16 %v3045
        %v3082 = vunpack.c.l.b16 %v3046
        %v3083 = vunpack.c.l.b16 %v3047
        %v3084 = vunpack.c.l.b16 %v3048
        %v3085 = vunpack.c.l.b16 %v3049
        %v3086 = vunpack.c.l.b16 %v3050
        %v3087 = vunpack.c.l.b16 %v3051
        %v3088 = vunpack.c.l.b16 %v3052
        %v3089 = vpack.c.b16 %v3082, %v3081
        %v3090 = vpack.c.b16 %v3084, %v3083
        %v3091 = vpack.c.b16 %v3086, %v3085
        %v3092 = vpack.c.b16 %v3088, %v3087
        %v3098 = vsel %vm530, %v3069, 0
        %v3101 = vsel %vm530, %v3070, 0
        %v3104 = vsel %vm530, %v3071, 0
        %v3107 = vsel %vm530, %v3072, 0
        %3109 = vmatprep.subr.bf16.mxu0 0
        %3110 = vmatpush1.bf16.msra.mxu0 %v3089
        %3111 = vmatprep.subr.bf16.mxu0 0
        %3112 = vmatpush1.bf16.msra.mxu0 %v3090
        %3113 = vmatprep.subr.bf16.mxu0 0
        %3114 = vmatpush1.bf16.msra.mxu0 %v3091
        %3115 = vmatprep.subr.bf16.mxu0 0
        %3116 = vmatpush1.bf16.msra.mxu0 %v3092
        %3117 = vmatprep.subr.bf16.mxu0 0
        %3118 = vmatpush1.bf16.msra.mxu0 0
        %3119 = vmatprep.subr.bf16.mxu0 0
        %3120 = vmatpush1.bf16.msra.mxu0 0
        %3121 = vmatprep.subr.bf16.mxu0 0
        %3122 = vmatpush1.bf16.msra.mxu0 0
        %3123 = vmatprep.subr.bf16.mxu0 0
        %3124 = vmatpush1.bf16.msra.mxu0 0
        %3125 = vmatprep.subr.bf16.mxu0 0
        %3126 = vmatpush1.bf16.msra.mxu0 0
        %3127 = vmatprep.subr.bf16.mxu0 0
        %3128 = vmatpush1.bf16.msra.mxu0 0
        %3129 = vmatprep.subr.bf16.mxu0 0
        %3130 = vmatpush1.bf16.msra.mxu0 0
        %3131 = vmatprep.subr.bf16.mxu0 0
        %3132 = vmatpush1.bf16.msra.mxu0 0
        %3133 = vmatprep.subr.bf16.mxu0 0
        %3134 = vmatpush1.bf16.msra.mxu0 0
        %3135 = vmatprep.subr.bf16.mxu0 0
        %3136 = vmatpush1.bf16.msra.mxu0 0
        %3137 = vmatprep.subr.bf16.mxu0 0
        %3138 = vmatpush1.bf16.msra.mxu0 0
        %3139 = vmatprep.subr.bf16.mxu0 0
        %3140 = vmatpush1.bf16.msra.mxu0 0
        %3141 = vmatprep.mubr.bf16.mxu0 0
        %3142 = vmatmul.mubr.bf16.gmra.mrb[0].mxu0 %v3098
        %v3143 = vpop.f32.mrb[0].mxu0
        %v3144 = vadd.f32 0.0, %v3143
        %v3145 = vpop.f32.mrb[0].mxu0
        %v3146 = vpop.f32.mrb[0].mxu0
        %v3147 = vadd.f32 0.0, %v3146
        %v3148 = vpop.f32.mrb[0].mxu0
        %3149 = vmatprep.mubr.bf16.mxu0 0
        %3150 = vmatmul.mubr.bf16.gmra.mrb[0].mxu0 %v3101
        %v3151 = vpop.f32.mrb[0].mxu0
        %v3152 = vadd.f32 0.0, %v3151
        %v3153 = vpop.f32.mrb[0].mxu0
        %v3154 = vpop.f32.mrb[0].mxu0
        %v3155 = vadd.f32 0.0, %v3154
        %v3156 = vpop.f32.mrb[0].mxu0
        %3157 = vmatprep.mubr.bf16.mxu0 0
        %3158 = vmatmul.mubr.bf16.gmra.mrb[0].mxu0 %v3104
        %v3159 = vpop.f32.mrb[0].mxu0
        %v3160 = vadd.f32 0.0, %v3159
        %v3161 = vpop.f32.mrb[0].mxu0
        %v3162 = vpop.f32.mrb[0].mxu0
        %v3163 = vadd.f32 0.0, %v3162
        %v3164 = vpop.f32.mrb[0].mxu0
        %3165 = vmatprep.mubr.bf16.mxu0 0
        %3166 = vmatmul.mubr.bf16.gmra.mrb[0].mxu0 %v3107
        %v3167 = vpop.f32.mrb[0].mxu0
        %v3168 = vadd.f32 0.0, %v3167
        %v3169 = vpop.f32.mrb[0].mxu0
        %v3170 = vpop.f32.mrb[0].mxu0
        %v3171 = vadd.f32 0.0, %v3170
        %v3172 = vpop.f32.mrb[0].mxu0
        %3173 = vdwg.mxu0
        %v3174 = vadd.f32 %v3007, %v3144
        %v3175 = vadd.f32 %v3010, %v3147
        %v3176 = vadd.f32 %v3015, %v3152
        %v3177 = vadd.f32 %v3018, %v3155
        %v3178 = vadd.f32 %v3023, %v3160
        %v3179 = vadd.f32 %v3026, %v3163
        %v3180 = vadd.f32 %v3031, %v3168
        %v3181 = vadd.f32 %v3034, %v3171
        %v3182 = vmax.f32 %v3174, 0.0
        %v3183 = vmax.f32 %v3175, 0.0
        %v3184 = vmax.f32 %v3176, 0.0
        %v3185 = vmax.f32 %v3177, 0.0
        %v3186 = vmax.f32 %v3178, 0.0
        %v3187 = vmax.f32 %v3179, 0.0
        %v3188 = vmax.f32 %v3180, 0.0
        %v3189 = vmax.f32 %v3181, 0.0
        %3190 = vst [vmem:[%s367] sm:$0xff] %v3182
        %3191 = vst [vmem:[%s367 + $0x8] sm:$0xff] %v3183
        %3192 = vst [vmem:[%s367 + $0x10] sm:$0xff] %v3184
        %3193 = vst [vmem:[%s367 + $0x18] sm:$0xff] %v3185
        %3194 = vst [vmem:[%s367 + $0x20] sm:$0xff] %v3186
        %3195 = vst [vmem:[%s367 + $0x28] sm:$0xff] %v3187
        %3196 = vst [vmem:[%s367 + $0x30] sm:$0xff] %v3188
        %3197 = vst [vmem:[%s367 + $0x38] sm:$0xff] %v3189
        %s3198 = sand.u32 %s252, 1
        %s3199 = scalar_lea.sflag [#allocation3], %s3198
        %s3200 = sand.u32 %s252, 1
        %s3201 = smul.addr %s3200, 64
        %s3202 = scalar_lea.vmem [#allocation2], %s3201
        // Predicated region
        $region61: #{bottleneck_forward.1} parent=59 // pred_check
          %p3203 = pneg %p262
        $region62: #{bottleneck_forward.1} parent=59 // pred_check_branch
          %3205 = sbr.rel (%p3203) target = $region64
        $region63: #{bottleneck_forward.1} parent=59 // pred_region
          %s3207 = ssub.s32 1024, 1024
          %3208 = vsyncadd %s3199, %s3207
          %s3209 = smul.addr %s24, 8
          %s3210 = smul.addr %s3209, 128
          %s3211 = scalar_lea.hbm %s10, %s3210
          %s3212 = sshll.u32 %s3202, 4
          %s3213 = int_to_ptr.vmem [resolvable:$true] %s3212
          %3218 = dma.vmem_to_hbm [thread:$0]  %s3213, 1024, %s3211, %s3199, 128, 128, 8
        $region64: #{bottleneck_forward.1} parent=59 // pred_fallthru
          _
      $region60: #{bottleneck_forward.1} parent=5 // pred_fallthru
        _
      %p3219 = scmp.le.s32.totalorder 2, %s19
      // Predicated region
      $region65: #{bottleneck_forward.1} parent=5 // pred_check
        %p3220 = pneg %p3219
      $region66: #{bottleneck_forward.1} parent=5 // pred_check_branch
        %3222 = sbr.rel (%p3220) target = $region68
      $region67: #{bottleneck_forward.1} parent=5 // pred_region
        %s3223 = ssub.s32 %s19, 2
        // Predicated region
        $region69: #{bottleneck_forward.1} parent=67 // pred_check
          %p3224 = pneg %p268
        $region70: #{bottleneck_forward.1} parent=67 // pred_check_branch
          %3226 = sbr.rel (%p3224) target = $region72
        $region71: #{bottleneck_forward.1} parent=67 // pred_region
          %s3227 = sand.u32 %s253, 1
          %s3228 = scalar_lea.sflag [#allocation3], %s3227
          %s3229 = sand.u32 %s253, 1
          %s3230 = smul.addr %s3229, 64
          %s3231 = scalar_lea.vmem [#allocation2], %s3230
          %3232 = dma.done %s3228, 1024
        $region72: #{bottleneck_forward.1} parent=67 // pred_fallthru
          _
      $region68: #{bottleneck_forward.1} parent=5 // pred_fallthru
        _
    $region6: #{bottleneck_forward.1} parent=1 // loop_footer
      %s23 = sadd.s32 1, %s19
    $region7: #{bottleneck_forward.1} parent=1 // loop_footer_branch
      %18 = sbr.rel target = $region3
    $region8: #{bottleneck_forward.1} parent=1 // loop_exit
      _
    %3233 = vsyncpa [#allocation3], 1
    %s3234 = scalar_lea.sflag [#allocation3], 1
    %3235 = vsyncpa %s3234, 1

</llo_original>
